<compile_context>
chip_gen: v7x
topology: tpu7x:2x2x1
jax: 0.10.0
libtpu: 0.0.40
codegen_flags: <defaults>
</compile_context>

<pallas_src>
import jax
import jax.numpy as jnp
from jax import lax
from jax.experimental import pallas as pl
from jax.experimental.pallas import tpu as pltpu


def _round_up(x, m):
    return -(-x // m) * m


def _pad_to(a, shape):
    pads = [(0, t - s) for s, t in zip(a.shape, shape)]
    if all(p == (0, 0) for p in pads):
        return a
    return jnp.pad(a, pads)


def _choose_time_chunk(S, target=64):
    """Largest divisor of S that is <= target (keeps the inner loop static)."""
    ts = 1
    for d in range(1, min(S, target) + 1):
        if S % d == 0:
            ts = d
    return ts


def _num_tensorcores():
    try:
        info = pltpu.get_tpu_info()
    except Exception:
        return 1
    for name in ("num_tensorcores", "tensorcores_per_chip", "num_cores", "core_count"):
        v = getattr(info, name, None)
        if isinstance(v, int) and v > 0:
            return v
    return 1


def _vmem_cap_bytes():
    try:
        cap = int(getattr(pltpu.get_tpu_info(), "vmem_capacity_bytes", 64 << 20))
    except Exception:
        cap = 64 << 20
    return (cap * 3) // 4          # ~48 MiB on v7x, ~96 MiB on v5e/v6e


def _make_rnn_kernel(L, TS, has_transition):
    def kernel(*refs):
        if has_transition:
            wx_ref, ust_ref, utt_ref, b_ref, vt_ref, vb_ref, out_ref, h_ref = refs
        else:
            wx_ref, ust_ref, vt_ref, vb_ref, out_ref, h_ref = refs
            utt_ref = b_ref = None

        t = pl.program_id(1)
        nt = pl.num_programs(1)
        Bb, Hp = h_ref.shape[1], h_ref.shape[2]
        mxu_dtype = ust_ref.dtype         # bf16 or f32 MXU operands
        acc = jnp.float32                 # always accumulate in f32

        # Reset the persistent hidden state at the start of each batch block.
        @pl.when(t == 0)
        def _():
            h_ref[...] = jnp.zeros_like(h_ref)

        # Folded biases for layers 1..L-1.  Hoist the (1,Hp)->(Bb,Hp) broadcast
        # only while it is a handful of vregs; otherwise keep narrow rows to
        # limit live-range pressure inside the recurrence.
        biases = []
        if has_transition:
            hoist_bcast = Bb * Hp * 4 * (L - 1) <= (16 << 10)
            for j in range(L - 1):
                row = b_ref[j].astype(acc)                           # (1, Hp)
                biases.append(jnp.broadcast_to(row, (Bb, Hp)) if hoist_bcast else row)

        # Hidden states carried in vregs within the chunk.
        h_init = tuple(h_ref[j].astype(acc) for j in range(L))

        # TODO(synk): for small L and H<=256, pltpu.matmul_push_rhs once per
        # layer would keep the U weights staged in the MXU across all steps.
        def step(i, hs):
            wx_i = wx_ref[i].astype(acc)                             # (Bb, Hp)
            # Same-layer matmuls depend only on the previous step's states, so
            # issue them all up-front -> they pipeline through the MXU.
            s = [jnp.dot(hs[j].astype(mxu_dtype), ust_ref[j],
                         preferred_element_type=acc)
                 for j in range(L)]
            next_h = jnp.maximum(wx_i + s[0], 0.0)
            new_hs = [next_h]
            for j in range(1, L):                                    # serial chain
                z = (s[j] + biases[j - 1]
                     + jnp.dot(next_h.astype(mxu_dtype), utt_ref[j - 1],
                               preferred_element_type=acc))
                next_h = jnp.maximum(z, 0.0)
                new_hs.append(next_h)
            return tuple(new_hs)

        # Full unroll only while the carried state is tiny; cap otherwise so
        # live ranges stay within the 64-vreg file.
        unroll = TS if (TS <= 16 and Bb * Hp <= 8 * 256) else min(4, TS)
        hs = lax.fori_loop(0, TS, step, h_init, unroll=unroll)

        for j in range(L):
            h_ref[j] = hs[j].astype(h_ref.dtype)

        # PyTorch overwrites `output` every step; only the last step survives.
        @pl.when(t == nt - 1)
        def _():
            out_ref[...] = (jnp.dot(hs[L - 1].astype(mxu_dtype), vt_ref[...],
                                    preferred_element_type=acc)
                            + vb_ref[...]).astype(out_ref.dtype)

    return kernel


def rnn_forward(x, params, *, compute_dtype=jnp.float32, num_batch_blocks=None,
                time_chunk_target=64):
    """x: (B, S, D_in) f32.  Returns squeezed (B, O), like the PyTorch module."""
    B, S, D_in = x.shape
    Wt, Wb, USt, USb, UTt, UTb, Vt, Vb = params
    H = Wt.shape[1]
    O = Vt.shape[1]
    L = USt.shape[0]

    if S == 0:
        # PyTorch returns the zero-initialized `output` (loop never runs).
        return jnp.zeros((B, O), jnp.float32)

    # ---- hardware tiles: 8-sublane batch blocks, 128-lane hidden / output ----
    Hp = _round_up(H, 128)
    Op = _round_up(O, 128)

    # ---- batch split: only across real TensorCores, only with a fat M dim ----
    if num_batch_blocks is None:
        n_tc = _num_tensorcores()
        num_batch_blocks = n_tc if (n_tc > 1 and B >= 256 * n_tc) else 1
    nb = max(1, int(num_batch_blocks))
    bb = _round_up(-(-B // nb), 8)
    Bp = bb * nb

    # ---- hoisted input projection: one big, well-utilized matmul ----
    Wt_p = _pad_to(Wt, (D_in, Hp))
    wb0 = _pad_to(Wb + USb[0], (1, Hp))               # W bias + U_same[0] bias folded
    x_tm = jnp.transpose(x, (1, 0, 2)).reshape(S * B, D_in)
    wx = (x_tm @ Wt_p + wb0).reshape(S, B, Hp).astype(compute_dtype)   # time-major
    wx = _pad_to(wx, (S, Bp, Hp))

    ust = _pad_to(USt, (L, Hp, Hp)).astype(compute_dtype)
    vt = _pad_to(Vt, (Hp, Op)).astype(compute_dtype)
    vb = _pad_to(Vb, (1, Op)).astype(jnp.float32)

    has_transition = L > 1
    if has_transition:
        utt = _pad_to(UTt[1:], (L - 1, Hp, Hp)).astype(compute_dtype)  # [0] unused
        b_fold = _pad_to(USb[1:] + UTb[1:], (L - 1, 1, Hp)).astype(jnp.float32)

    # ---- stream Wx over the time axis (flat VMEM, DMA overlaps compute) ----
    TS = _choose_time_chunk(S, time_chunk_target)
    nt = S // TS

    operands = [wx, ust]
    in_specs = [
        pl.BlockSpec((TS, bb, Hp), lambda b, t: (t, b, 0)),    # streamed Wx chunk
        pl.BlockSpec(ust.shape, lambda b, t: (0, 0, 0)),       # resident U_same
    ]
    if has_transition:
        operands += [utt, b_fold]
        in_specs += [
            pl.BlockSpec(utt.shape, lambda b, t: (0, 0, 0)),   # resident U_transition
            pl.BlockSpec(b_fold.shape, lambda b, t: (0, 0, 0)),
        ]
    operands += [vt, vb]
    in_specs += [
        pl.BlockSpec((Hp, Op), lambda b, t: (0, 0)),
        pl.BlockSpec((1, Op), lambda b, t: (0, 0)),
    ]

    # ---- VMEM budget: double-buffered residents + Wx chunk + out + scratch ----
    resident = sum(int(a.size) * a.dtype.itemsize for a in operands[1:])
    chunk_bytes = TS * bb * Hp * wx.dtype.itemsize
    scratch_bytes = L * bb * Hp * 4
    need = 2 * (resident + chunk_bytes) + 2 * bb * Op * 4 + scratch_bytes + (4 << 20)
    vmem_limit = int(min(max(need, 32 << 20), _vmem_cap_bytes()))

    out = pl.pallas_call(
        _make_rnn_kernel(L, TS, has_transition),
        out_shape=jax.ShapeDtypeStruct((Bp, Op), jnp.float32),
        grid=(nb, nt),
        in_specs=in_specs,
        out_specs=pl.BlockSpec((bb, Op), lambda b, t: (b, 0)),
        scratch_shapes=[pltpu.VMEM((L, bb, Hp), jnp.float32)],
        compiler_params=pltpu.CompilerParams(
            dimension_semantics=("parallel", "arbitrary"),
            vmem_limit_bytes=vmem_limit,
        ),
    )(*operands)

    # PyTorch: output = y_i.squeeze(); padded rows/lanes are sliced off here.
    return jnp.squeeze(out[:B, :O])


def init_params(key, input_dim, hidden_dim, output_dim, num_layers):
    """Deterministic PyTorch-Linear-style uniform init; weights pre-transposed."""
    def linear(k, fan_in, fan_out):
        kw, kb = jax.random.split(k)
        bound = 1.0 / jnp.sqrt(fan_in)
        w_t = jax.random.uniform(kw, (fan_in, fan_out), jnp.float32, -bound, bound)
        b = jax.random.uniform(kb, (1, fan_out), jnp.float32, -bound, bound)
        return w_t, b

    keys = jax.random.split(key, 2 + 2 * num_layers)
    Wt, Wb = linear(keys[0], input_dim, hidden_dim)
    Vt, Vb = linear(keys[1], hidden_dim, output_dim)
    us_w, us_b, ut_w, ut_b = [], [], [], []
    for j in range(num_layers):
        w, b = linear(keys[2 + 2 * j], hidden_dim, hidden_dim)
        us_w.append(w); us_b.append(b)
        w2, b2 = linear(keys[3 + 2 * j], hidden_dim, hidden_dim)
        ut_w.append(w2); ut_b.append(b2)      # index 0 unused (matches PyTorch)
    USt = jnp.stack(us_w); USb = jnp.stack(us_b)
    UTt = jnp.stack(ut_w); UTb = jnp.stack(ut_b)
    return (Wt, Wb, USt, USb, UTt, UTb, Vt, Vb)


def rnn_reference(x, params):
    """Pure-JAX reference mirroring the PyTorch loop, for validation."""
    Wt, Wb, USt, USb, UTt, UTb, Vt, Vb = params
    B, S, _ = x.shape
    L, _, H = USt.shape
    all_h = jnp.zeros((L, B, H), jnp.float32)
    out = jnp.zeros((B, Vt.shape[1]), jnp.float32)
    for i in range(S):
        entry = x[:, i]
        h0 = all_h[0]
        next_h = jax.nn.relu(entry @ Wt + Wb + h0 @ USt[0] + USb[0])
        all_h = all_h.at[0].set(next_h)
        for j in range(1, L):
            hj = all_h[j]
            next_h = jax.nn.relu(hj @ USt[j] + USb[j] + next_h @ UTt[j] + UTb[j])
            all_h = all_h.at[j].set(next_h)
        out = next_h @ Vt + Vb
    return jnp.squeeze(out)


if __name__ == "__main__":
    batch, seq, input_dim, hidden_dim, output_dim, num_layers = 2, 8, 16, 32, 8, 3

    key = jax.random.PRNGKey(0)
    k_x, k_p = jax.random.split(key)
    x = jax.random.normal(k_x, (batch, seq, input_dim), jnp.float32)
    params = init_params(k_p, input_dim, hidden_dim, output_dim, num_layers)

    y_ref = rnn_reference(x, params)

    # f32 path: exact-semantics check against the PyTorch-equivalent reference.
    y = jax.block_until_ready(rnn_forward(x, params))
    assert y.shape == y_ref.shape
    assert jnp.allclose(y, y_ref, atol=1e-4, rtol=1e-4), "f32 mismatch vs reference"

    # bf16 weights / activations / Wx (f32 accumulation): v6e/v7x MXU path.
    y_bf16 = jax.block_until_ready(
        rnn_forward(x, params, compute_dtype=jnp.bfloat16))
    assert y_bf16.shape == y_ref.shape
    assert jnp.allclose(y_bf16, y_ref, atol=1e-1, rtol=1e-1), "bf16 mismatch vs reference"

    print("KERNEL_OK")
</pallas_src>

<mosaic_0001>
module attributes {stable_mosaic.version = 11 : i64} {
  func.func @kernel(%arg0: i32, %arg1: i32, %arg2: memref<8x8x128xf32, #tpu.memory_space<vmem>>, %arg3: memref<3x128x128xf32, #tpu.memory_space<vmem>>, %arg4: memref<2x128x128xf32, #tpu.memory_space<vmem>>, %arg5: memref<2x1x128xf32, #tpu.memory_space<vmem>>, %arg6: memref<128x128xf32, #tpu.memory_space<vmem>>, %arg7: memref<1x128xf32, #tpu.memory_space<vmem>>, %arg8: memref<8x128xf32, #tpu.memory_space<vmem>>, %arg9: memref<3x8x128xf32, #tpu.memory_space<vmem>>) attributes {dimension_semantics = [#tpu.dimension_semantics<parallel>, #tpu.dimension_semantics<arbitrary>], iteration_bounds = array<i64: 1, 1>, scalar_prefetch = 0 : i64, scratch_operands = 1 : i64, tpu.core_type = #tpu.core_type<tc>, window_params = [{transform_indices = @transform_0, window_bounds = array<i64: 8, 8, 128>}, {pipeline_mode = #tpu.pipeline_mode<synchronous>, transform_indices = @transform_1, window_bounds = array<i64: 3, 128, 128>}, {pipeline_mode = #tpu.pipeline_mode<synchronous>, transform_indices = @transform_2, window_bounds = array<i64: 2, 128, 128>}, {pipeline_mode = #tpu.pipeline_mode<synchronous>, transform_indices = @transform_3, window_bounds = array<i64: 2, 1, 128>}, {pipeline_mode = #tpu.pipeline_mode<synchronous>, transform_indices = @transform_4, window_bounds = array<i64: 128, 128>}, {pipeline_mode = #tpu.pipeline_mode<synchronous>, transform_indices = @transform_5, window_bounds = array<i64: 1, 128>}, {transform_indices = @transform_6, window_bounds = array<i64: 8, 128>}]} {
    %c0_i32 = arith.constant 0 : i32
    %0 = arith.cmpi eq, %arg1, %c0_i32 : i32
    %1 = arith.extui %0 : i1 to i32
    %c0_i32_0 = arith.constant 0 : i32
    %2 = arith.cmpi ne, %1, %c0_i32_0 : i32
    scf.if %2 {
      %cst_224 = arith.constant 0.000000e+00 : f32
      %261 = vector.broadcast %cst_224 : f32 to vector<3x8x128xf32>
      %c0_225 = arith.constant 0 : index
      %c0_226 = arith.constant 0 : index
      %c0_227 = arith.constant 0 : index
      %262 = vector.load %arg9[%c0_225, %c0_226, %c0_227] : memref<3x8x128xf32, #tpu.memory_space<vmem>>, vector<3x8x128xf32>
      tpu.vector_store %arg9[%c0_225, %c0_226, %c0_227], %261 {strides = array<i32>} : memref<3x8x128xf32, #tpu.memory_space<vmem>>, vector<3x8x128xf32>,
    } else {
    }
    %c0 = arith.constant 0 : index
    %c0_1 = arith.constant 0 : index
    %c0_2 = arith.constant 0 : index
    %3 = vector.load %arg5[%c0, %c0_1, %c0_2] : memref<2x1x128xf32, #tpu.memory_space<vmem>>, vector<1x1x128xf32>
    %4 = vector.shape_cast %3 : vector<1x1x128xf32> to vector<1x128xf32>
    %5 = vector.shape_cast %4 : vector<1x128xf32> to vector<1x128xf32>
    %6 = vector.broadcast %5 : vector<1x128xf32> to vector<8x128xf32>
    %c1 = arith.constant 1 : index
    %c0_3 = arith.constant 0 : index
    %c0_4 = arith.constant 0 : index
    %7 = vector.load %arg5[%c1, %c0_3, %c0_4] : memref<2x1x128xf32, #tpu.memory_space<vmem>>, vector<1x1x128xf32>
    %8 = vector.shape_cast %7 : vector<1x1x128xf32> to vector<1x128xf32>
    %9 = vector.shape_cast %8 : vector<1x128xf32> to vector<1x128xf32>
    %10 = vector.broadcast %9 : vector<1x128xf32> to vector<8x128xf32>
    %c0_5 = arith.constant 0 : index
    %c0_6 = arith.constant 0 : index
    %c0_7 = arith.constant 0 : index
    %11 = vector.load %arg9[%c0_5, %c0_6, %c0_7] : memref<3x8x128xf32, #tpu.memory_space<vmem>>, vector<1x8x128xf32>
    %12 = vector.shape_cast %11 : vector<1x8x128xf32> to vector<8x128xf32>
    %c1_8 = arith.constant 1 : index
    %c0_9 = arith.constant 0 : index
    %c0_10 = arith.constant 0 : index
    %13 = vector.load %arg9[%c1_8, %c0_9, %c0_10] : memref<3x8x128xf32, #tpu.memory_space<vmem>>, vector<1x8x128xf32>
    %14 = vector.shape_cast %13 : vector<1x8x128xf32> to vector<8x128xf32>
    %c2 = arith.constant 2 : index
    %c0_11 = arith.constant 0 : index
    %c0_12 = arith.constant 0 : index
    %15 = vector.load %arg9[%c2, %c0_11, %c0_12] : memref<3x8x128xf32, #tpu.memory_space<vmem>>, vector<1x8x128xf32>
    %16 = vector.shape_cast %15 : vector<1x8x128xf32> to vector<8x128xf32>
    %c0_i32_13 = arith.constant 0 : i32
    %17 = arith.index_cast %c0_i32_13 : i32 to index
    %c0_14 = arith.constant 0 : index
    %c0_15 = arith.constant 0 : index
    %18 = vector.load %arg2[%17, %c0_14, %c0_15] : memref<8x8x128xf32, #tpu.memory_space<vmem>>, vector<1x8x128xf32>
    %19 = vector.shape_cast %18 : vector<1x8x128xf32> to vector<8x128xf32>
    %c0_16 = arith.constant 0 : index
    %c0_17 = arith.constant 0 : index
    %c0_18 = arith.constant 0 : index
    %20 = vector.load %arg3[%c0_16, %c0_17, %c0_18] : memref<3x128x128xf32, #tpu.memory_space<vmem>>, vector<1x128x128xf32>
    %21 = vector.shape_cast %20 : vector<1x128x128xf32> to vector<128x128xf32>
    %cst = arith.constant dense<0.000000e+00> : vector<8x128xf32>
    %22 = tpu.matmul %12, %21, %cst {dimension_numbers = #tpu.dot_dimension_numbers<[1], [0], [0], [1], [0, 0, 1, 1], [], []>} : vector<8x128xf32>, vector<128x128xf32>, vector<8x128xf32> -> vector<8x128xf32>
    %c1_19 = arith.constant 1 : index
    %c0_20 = arith.constant 0 : index
    %c0_21 = arith.constant 0 : index
    %23 = vector.load %arg3[%c1_19, %c0_20, %c0_21] : memref<3x128x128xf32, #tpu.memory_space<vmem>>, vector<1x128x128xf32>
    %24 = vector.shape_cast %23 : vector<1x128x128xf32> to vector<128x128xf32>
    %cst_22 = arith.constant dense<0.000000e+00> : vector<8x128xf32>
    %25 = tpu.matmul %14, %24, %cst_22 {dimension_numbers = #tpu.dot_dimension_numbers<[1], [0], [0], [1], [0, 0, 1, 1], [], []>} : vector<8x128xf32>, vector<128x128xf32>, vector<8x128xf32> -> vector<8x128xf32>
    %c2_23 = arith.constant 2 : index
    %c0_24 = arith.constant 0 : index
    %c0_25 = arith.constant 0 : index
    %26 = vector.load %arg3[%c2_23, %c0_24, %c0_25] : memref<3x128x128xf32, #tpu.memory_space<vmem>>, vector<1x128x128xf32>
    %27 = vector.shape_cast %26 : vector<1x128x128xf32> to vector<128x128xf32>
    %cst_26 = arith.constant dense<0.000000e+00> : vector<8x128xf32>
    %28 = tpu.matmul %16, %27, %cst_26 {dimension_numbers = #tpu.dot_dimension_numbers<[1], [0], [0], [1], [0, 0, 1, 1], [], []>} : vector<8x128xf32>, vector<128x128xf32>, vector<8x128xf32> -> vector<8x128xf32>
    %29 = arith.addf %19, %22 : vector<8x128xf32>
    %cst_27 = arith.constant 0.000000e+00 : f32
    %30 = vector.broadcast %cst_27 : f32 to vector<8x128xf32>
    %31 = arith.maximumf %29, %30 : vector<8x128xf32>
    %32 = arith.addf %25, %6 : vector<8x128xf32>
    %c0_28 = arith.constant 0 : index
    %c0_29 = arith.constant 0 : index
    %c0_30 = arith.constant 0 : index
    %33 = vector.load %arg4[%c0_28, %c0_29, %c0_30] : memref<2x128x128xf32, #tpu.memory_space<vmem>>, vector<1x128x128xf32>
    %34 = vector.shape_cast %33 : vector<1x128x128xf32> to vector<128x128xf32>
    %cst_31 = arith.constant dense<0.000000e+00> : vector<8x128xf32>
    %35 = tpu.matmul %31, %34, %cst_31 {dimension_numbers = #tpu.dot_dimension_numbers<[1], [0], [0], [1], [0, 0, 1, 1], [], []>} : vector<8x128xf32>, vector<128x128xf32>, vector<8x128xf32> -> vector<8x128xf32>
    %36 = arith.addf %32, %35 : vector<8x128xf32>
    %cst_32 = arith.constant 0.000000e+00 : f32
    %37 = vector.broadcast %cst_32 : f32 to vector<8x128xf32>
    %38 = arith.maximumf %36, %37 : vector<8x128xf32>
    %39 = arith.addf %28, %10 : vector<8x128xf32>
    %c1_33 = arith.constant 1 : index
    %c0_34 = arith.constant 0 : index
    %c0_35 = arith.constant 0 : index
    %40 = vector.load %arg4[%c1_33, %c0_34, %c0_35] : memref<2x128x128xf32, #tpu.memory_space<vmem>>, vector<1x128x128xf32>
    %41 = vector.shape_cast %40 : vector<1x128x128xf32> to vector<128x128xf32>
    %cst_36 = arith.constant dense<0.000000e+00> : vector<8x128xf32>
    %42 = tpu.matmul %38, %41, %cst_36 {dimension_numbers = #tpu.dot_dimension_numbers<[1], [0], [0], [1], [0, 0, 1, 1], [], []>} : vector<8x128xf32>, vector<128x128xf32>, vector<8x128xf32> -> vector<8x128xf32>
    %43 = arith.addf %39, %42 : vector<8x128xf32>
    %cst_37 = arith.constant 0.000000e+00 : f32
    %44 = vector.broadcast %cst_37 : f32 to vector<8x128xf32>
    %45 = arith.maximumf %43, %44 : vector<8x128xf32>
    %c1_i32 = arith.constant 1 : i32
    %46 = arith.index_cast %c1_i32 : i32 to index
    %c0_38 = arith.constant 0 : index
    %c0_39 = arith.constant 0 : index
    %47 = vector.load %arg2[%46, %c0_38, %c0_39] : memref<8x8x128xf32, #tpu.memory_space<vmem>>, vector<1x8x128xf32>
    %48 = vector.shape_cast %47 : vector<1x8x128xf32> to vector<8x128xf32>
    %c0_40 = arith.constant 0 : index
    %c0_41 = arith.constant 0 : index
    %c0_42 = arith.constant 0 : index
    %49 = vector.load %arg3[%c0_40, %c0_41, %c0_42] : memref<3x128x128xf32, #tpu.memory_space<vmem>>, vector<1x128x128xf32>
    %50 = vector.shape_cast %49 : vector<1x128x128xf32> to vector<128x128xf32>
    %cst_43 = arith.constant dense<0.000000e+00> : vector<8x128xf32>
    %51 = tpu.matmul %31, %50, %cst_43 {dimension_numbers = #tpu.dot_dimension_numbers<[1], [0], [0], [1], [0, 0, 1, 1], [], []>} : vector<8x128xf32>, vector<128x128xf32>, vector<8x128xf32> -> vector<8x128xf32>
    %c1_44 = arith.constant 1 : index
    %c0_45 = arith.constant 0 : index
    %c0_46 = arith.constant 0 : index
    %52 = vector.load %arg3[%c1_44, %c0_45, %c0_46] : memref<3x128x128xf32, #tpu.memory_space<vmem>>, vector<1x128x128xf32>
    %53 = vector.shape_cast %52 : vector<1x128x128xf32> to vector<128x128xf32>
    %cst_47 = arith.constant dense<0.000000e+00> : vector<8x128xf32>
    %54 = tpu.matmul %38, %53, %cst_47 {dimension_numbers = #tpu.dot_dimension_numbers<[1], [0], [0], [1], [0, 0, 1, 1], [], []>} : vector<8x128xf32>, vector<128x128xf32>, vector<8x128xf32> -> vector<8x128xf32>
    %c2_48 = arith.constant 2 : index
    %c0_49 = arith.constant 0 : index
    %c0_50 = arith.constant 0 : index
    %55 = vector.load %arg3[%c2_48, %c0_49, %c0_50] : memref<3x128x128xf32, #tpu.memory_space<vmem>>, vector<1x128x128xf32>
    %56 = vector.shape_cast %55 : vector<1x128x128xf32> to vector<128x128xf32>
    %cst_51 = arith.constant dense<0.000000e+00> : vector<8x128xf32>
    %57 = tpu.matmul %45, %56, %cst_51 {dimension_numbers = #tpu.dot_dimension_numbers<[1], [0], [0], [1], [0, 0, 1, 1], [], []>} : vector<8x128xf32>, vector<128x128xf32>, vector<8x128xf32> -> vector<8x128xf32>
    %58 = arith.addf %48, %51 : vector<8x128xf32>
    %cst_52 = arith.constant 0.000000e+00 : f32
    %59 = vector.broadcast %cst_52 : f32 to vector<8x128xf32>
    %60 = arith.maximumf %58, %59 : vector<8x128xf32>
    %61 = arith.addf %54, %6 : vector<8x128xf32>
    %c0_53 = arith.constant 0 : index
    %c0_54 = arith.constant 0 : index
    %c0_55 = arith.constant 0 : index
    %62 = vector.load %arg4[%c0_53, %c0_54, %c0_55] : memref<2x128x128xf32, #tpu.memory_space<vmem>>, vector<1x128x128xf32>
    %63 = vector.shape_cast %62 : vector<1x128x128xf32> to vector<128x128xf32>
    %cst_56 = arith.constant dense<0.000000e+00> : vector<8x128xf32>
    %64 = tpu.matmul %60, %63, %cst_56 {dimension_numbers = #tpu.dot_dimension_numbers<[1], [0], [0], [1], [0, 0, 1, 1], [], []>} : vector<8x128xf32>, vector<128x128xf32>, vector<8x128xf32> -> vector<8x128xf32>
    %65 = arith.addf %61, %64 : vector<8x128xf32>
    %cst_57 = arith.constant 0.000000e+00 : f32
    %66 = vector.broadcast %cst_57 : f32 to vector<8x128xf32>
    %67 = arith.maximumf %65, %66 : vector<8x128xf32>
    %68 = arith.addf %57, %10 : vector<8x128xf32>
    %c1_58 = arith.constant 1 : index
    %c0_59 = arith.constant 0 : index
    %c0_60 = arith.constant 0 : index
    %69 = vector.load %arg4[%c1_58, %c0_59, %c0_60] : memref<2x128x128xf32, #tpu.memory_space<vmem>>, vector<1x128x128xf32>
    %70 = vector.shape_cast %69 : vector<1x128x128xf32> to vector<128x128xf32>
    %cst_61 = arith.constant dense<0.000000e+00> : vector<8x128xf32>
    %71 = tpu.matmul %67, %70, %cst_61 {dimension_numbers = #tpu.dot_dimension_numbers<[1], [0], [0], [1], [0, 0, 1, 1], [], []>} : vector<8x128xf32>, vector<128x128xf32>, vector<8x128xf32> -> vector<8x128xf32>
    %72 = arith.addf %68, %71 : vector<8x128xf32>
    %cst_62 = arith.constant 0.000000e+00 : f32
    %73 = vector.broadcast %cst_62 : f32 to vector<8x128xf32>
    %74 = arith.maximumf %72, %73 : vector<8x128xf32>
    %c2_i32 = arith.constant 2 : i32
    %75 = arith.index_cast %c2_i32 : i32 to index
    %c0_63 = arith.constant 0 : index
    %c0_64 = arith.constant 0 : index
    %76 = vector.load %arg2[%75, %c0_63, %c0_64] : memref<8x8x128xf32, #tpu.memory_space<vmem>>, vector<1x8x128xf32>
    %77 = vector.shape_cast %76 : vector<1x8x128xf32> to vector<8x128xf32>
    %c0_65 = arith.constant 0 : index
    %c0_66 = arith.constant 0 : index
    %c0_67 = arith.constant 0 : index
    %78 = vector.load %arg3[%c0_65, %c0_66, %c0_67] : memref<3x128x128xf32, #tpu.memory_space<vmem>>, vector<1x128x128xf32>
    %79 = vector.shape_cast %78 : vector<1x128x128xf32> to vector<128x128xf32>
    %cst_68 = arith.constant dense<0.000000e+00> : vector<8x128xf32>
    %80 = tpu.matmul %60, %79, %cst_68 {dimension_numbers = #tpu.dot_dimension_numbers<[1], [0], [0], [1], [0, 0, 1, 1], [], []>} : vector<8x128xf32>, vector<128x128xf32>, vector<8x128xf32> -> vector<8x128xf32>
    %c1_69 = arith.constant 1 : index
    %c0_70 = arith.constant 0 : index
    %c0_71 = arith.constant 0 : index
    %81 = vector.load %arg3[%c1_69, %c0_70, %c0_71] : memref<3x128x128xf32, #tpu.memory_space<vmem>>, vector<1x128x128xf32>
    %82 = vector.shape_cast %81 : vector<1x128x128xf32> to vector<128x128xf32>
    %cst_72 = arith.constant dense<0.000000e+00> : vector<8x128xf32>
    %83 = tpu.matmul %67, %82, %cst_72 {dimension_numbers = #tpu.dot_dimension_numbers<[1], [0], [0], [1], [0, 0, 1, 1], [], []>} : vector<8x128xf32>, vector<128x128xf32>, vector<8x128xf32> -> vector<8x128xf32>
    %c2_73 = arith.constant 2 : index
    %c0_74 = arith.constant 0 : index
    %c0_75 = arith.constant 0 : index
    %84 = vector.load %arg3[%c2_73, %c0_74, %c0_75] : memref<3x128x128xf32, #tpu.memory_space<vmem>>, vector<1x128x128xf32>
    %85 = vector.shape_cast %84 : vector<1x128x128xf32> to vector<128x128xf32>
    %cst_76 = arith.constant dense<0.000000e+00> : vector<8x128xf32>
    %86 = tpu.matmul %74, %85, %cst_76 {dimension_numbers = #tpu.dot_dimension_numbers<[1], [0], [0], [1], [0, 0, 1, 1], [], []>} : vector<8x128xf32>, vector<128x128xf32>, vector<8x128xf32> -> vector<8x128xf32>
    %87 = arith.addf %77, %80 : vector<8x128xf32>
    %cst_77 = arith.constant 0.000000e+00 : f32
    %88 = vector.broadcast %cst_77 : f32 to vector<8x128xf32>
    %89 = arith.maximumf %87, %88 : vector<8x128xf32>
    %90 = arith.addf %83, %6 : vector<8x128xf32>
    %c0_78 = arith.constant 0 : index
    %c0_79 = arith.constant 0 : index
    %c0_80 = arith.constant 0 : index
    %91 = vector.load %arg4[%c0_78, %c0_79, %c0_80] : memref<2x128x128xf32, #tpu.memory_space<vmem>>, vector<1x128x128xf32>
    %92 = vector.shape_cast %91 : vector<1x128x128xf32> to vector<128x128xf32>
    %cst_81 = arith.constant dense<0.000000e+00> : vector<8x128xf32>
    %93 = tpu.matmul %89, %92, %cst_81 {dimension_numbers = #tpu.dot_dimension_numbers<[1], [0], [0], [1], [0, 0, 1, 1], [], []>} : vector<8x128xf32>, vector<128x128xf32>, vector<8x128xf32> -> vector<8x128xf32>
    %94 = arith.addf %90, %93 : vector<8x128xf32>
    %cst_82 = arith.constant 0.000000e+00 : f32
    %95 = vector.broadcast %cst_82 : f32 to vector<8x128xf32>
    %96 = arith.maximumf %94, %95 : vector<8x128xf32>
    %97 = arith.addf %86, %10 : vector<8x128xf32>
    %c1_83 = arith.constant 1 : index
    %c0_84 = arith.constant 0 : index
    %c0_85 = arith.constant 0 : index
    %98 = vector.load %arg4[%c1_83, %c0_84, %c0_85] : memref<2x128x128xf32, #tpu.memory_space<vmem>>, vector<1x128x128xf32>
    %99 = vector.shape_cast %98 : vector<1x128x128xf32> to vector<128x128xf32>
    %cst_86 = arith.constant dense<0.000000e+00> : vector<8x128xf32>
    %100 = tpu.matmul %96, %99, %cst_86 {dimension_numbers = #tpu.dot_dimension_numbers<[1], [0], [0], [1], [0, 0, 1, 1], [], []>} : vector<8x128xf32>, vector<128x128xf32>, vector<8x128xf32> -> vector<8x128xf32>
    %101 = arith.addf %97, %100 : vector<8x128xf32>
    %cst_87 = arith.constant 0.000000e+00 : f32
    %102 = vector.broadcast %cst_87 : f32 to vector<8x128xf32>
    %103 = arith.maximumf %101, %102 : vector<8x128xf32>
    %c3_i32 = arith.constant 3 : i32
    %104 = arith.index_cast %c3_i32 : i32 to index
    %c0_88 = arith.constant 0 : index
    %c0_89 = arith.constant 0 : index
    %105 = vector.load %arg2[%104, %c0_88, %c0_89] : memref<8x8x128xf32, #tpu.memory_space<vmem>>, vector<1x8x128xf32>
    %106 = vector.shape_cast %105 : vector<1x8x128xf32> to vector<8x128xf32>
    %c0_90 = arith.constant 0 : index
    %c0_91 = arith.constant 0 : index
    %c0_92 = arith.constant 0 : index
    %107 = vector.load %arg3[%c0_90, %c0_91, %c0_92] : memref<3x128x128xf32, #tpu.memory_space<vmem>>, vector<1x128x128xf32>
    %108 = vector.shape_cast %107 : vector<1x128x128xf32> to vector<128x128xf32>
    %cst_93 = arith.constant dense<0.000000e+00> : vector<8x128xf32>
    %109 = tpu.matmul %89, %108, %cst_93 {dimension_numbers = #tpu.dot_dimension_numbers<[1], [0], [0], [1], [0, 0, 1, 1], [], []>} : vector<8x128xf32>, vector<128x128xf32>, vector<8x128xf32> -> vector<8x128xf32>
    %c1_94 = arith.constant 1 : index
    %c0_95 = arith.constant 0 : index
    %c0_96 = arith.constant 0 : index
    %110 = vector.load %arg3[%c1_94, %c0_95, %c0_96] : memref<3x128x128xf32, #tpu.memory_space<vmem>>, vector<1x128x128xf32>
    %111 = vector.shape_cast %110 : vector<1x128x128xf32> to vector<128x128xf32>
    %cst_97 = arith.constant dense<0.000000e+00> : vector<8x128xf32>
    %112 = tpu.matmul %96, %111, %cst_97 {dimension_numbers = #tpu.dot_dimension_numbers<[1], [0], [0], [1], [0, 0, 1, 1], [], []>} : vector<8x128xf32>, vector<128x128xf32>, vector<8x128xf32> -> vector<8x128xf32>
    %c2_98 = arith.constant 2 : index
    %c0_99 = arith.constant 0 : index
    %c0_100 = arith.constant 0 : index
    %113 = vector.load %arg3[%c2_98, %c0_99, %c0_100] : memref<3x128x128xf32, #tpu.memory_space<vmem>>, vector<1x128x128xf32>
    %114 = vector.shape_cast %113 : vector<1x128x128xf32> to vector<128x128xf32>
    %cst_101 = arith.constant dense<0.000000e+00> : vector<8x128xf32>
    %115 = tpu.matmul %103, %114, %cst_101 {dimension_numbers = #tpu.dot_dimension_numbers<[1], [0], [0], [1], [0, 0, 1, 1], [], []>} : vector<8x128xf32>, vector<128x128xf32>, vector<8x128xf32> -> vector<8x128xf32>
    %116 = arith.addf %106, %109 : vector<8x128xf32>
    %cst_102 = arith.constant 0.000000e+00 : f32
    %117 = vector.broadcast %cst_102 : f32 to vector<8x128xf32>
    %118 = arith.maximumf %116, %117 : vector<8x128xf32>
    %119 = arith.addf %112, %6 : vector<8x128xf32>
    %c0_103 = arith.constant 0 : index
    %c0_104 = arith.constant 0 : index
    %c0_105 = arith.constant 0 : index
    %120 = vector.load %arg4[%c0_103, %c0_104, %c0_105] : memref<2x128x128xf32, #tpu.memory_space<vmem>>, vector<1x128x128xf32>
    %121 = vector.shape_cast %120 : vector<1x128x128xf32> to vector<128x128xf32>
    %cst_106 = arith.constant dense<0.000000e+00> : vector<8x128xf32>
    %122 = tpu.matmul %118, %121, %cst_106 {dimension_numbers = #tpu.dot_dimension_numbers<[1], [0], [0], [1], [0, 0, 1, 1], [], []>} : vector<8x128xf32>, vector<128x128xf32>, vector<8x128xf32> -> vector<8x128xf32>
    %123 = arith.addf %119, %122 : vector<8x128xf32>
    %cst_107 = arith.constant 0.000000e+00 : f32
    %124 = vector.broadcast %cst_107 : f32 to vector<8x128xf32>
    %125 = arith.maximumf %123, %124 : vector<8x128xf32>
    %126 = arith.addf %115, %10 : vector<8x128xf32>
    %c1_108 = arith.constant 1 : index
    %c0_109 = arith.constant 0 : index
    %c0_110 = arith.constant 0 : index
    %127 = vector.load %arg4[%c1_108, %c0_109, %c0_110] : memref<2x128x128xf32, #tpu.memory_space<vmem>>, vector<1x128x128xf32>
    %128 = vector.shape_cast %127 : vector<1x128x128xf32> to vector<128x128xf32>
    %cst_111 = arith.constant dense<0.000000e+00> : vector<8x128xf32>
    %129 = tpu.matmul %125, %128, %cst_111 {dimension_numbers = #tpu.dot_dimension_numbers<[1], [0], [0], [1], [0, 0, 1, 1], [], []>} : vector<8x128xf32>, vector<128x128xf32>, vector<8x128xf32> -> vector<8x128xf32>
    %130 = arith.addf %126, %129 : vector<8x128xf32>
    %cst_112 = arith.constant 0.000000e+00 : f32
    %131 = vector.broadcast %cst_112 : f32 to vector<8x128xf32>
    %132 = arith.maximumf %130, %131 : vector<8x128xf32>
    %c4_i32 = arith.constant 4 : i32
    %133 = arith.index_cast %c4_i32 : i32 to index
    %c0_113 = arith.constant 0 : index
    %c0_114 = arith.constant 0 : index
    %134 = vector.load %arg2[%133, %c0_113, %c0_114] : memref<8x8x128xf32, #tpu.memory_space<vmem>>, vector<1x8x128xf32>
    %135 = vector.shape_cast %134 : vector<1x8x128xf32> to vector<8x128xf32>
    %c0_115 = arith.constant 0 : index
    %c0_116 = arith.constant 0 : index
    %c0_117 = arith.constant 0 : index
    %136 = vector.load %arg3[%c0_115, %c0_116, %c0_117] : memref<3x128x128xf32, #tpu.memory_space<vmem>>, vector<1x128x128xf32>
    %137 = vector.shape_cast %136 : vector<1x128x128xf32> to vector<128x128xf32>
    %cst_118 = arith.constant dense<0.000000e+00> : vector<8x128xf32>
    %138 = tpu.matmul %118, %137, %cst_118 {dimension_numbers = #tpu.dot_dimension_numbers<[1], [0], [0], [1], [0, 0, 1, 1], [], []>} : vector<8x128xf32>, vector<128x128xf32>, vector<8x128xf32> -> vector<8x128xf32>
    %c1_119 = arith.constant 1 : index
    %c0_120 = arith.constant 0 : index
    %c0_121 = arith.constant 0 : index
    %139 = vector.load %arg3[%c1_119, %c0_120, %c0_121] : memref<3x128x128xf32, #tpu.memory_space<vmem>>, vector<1x128x128xf32>
    %140 = vector.shape_cast %139 : vector<1x128x128xf32> to vector<128x128xf32>
    %cst_122 = arith.constant dense<0.000000e+00> : vector<8x128xf32>
    %141 = tpu.matmul %125, %140, %cst_122 {dimension_numbers = #tpu.dot_dimension_numbers<[1], [0], [0], [1], [0, 0, 1, 1], [], []>} : vector<8x128xf32>, vector<128x128xf32>, vector<8x128xf32> -> vector<8x128xf32>
    %c2_123 = arith.constant 2 : index
    %c0_124 = arith.constant 0 : index
    %c0_125 = arith.constant 0 : index
    %142 = vector.load %arg3[%c2_123, %c0_124, %c0_125] : memref<3x128x128xf32, #tpu.memory_space<vmem>>, vector<1x128x128xf32>
    %143 = vector.shape_cast %142 : vector<1x128x128xf32> to vector<128x128xf32>
    %cst_126 = arith.constant dense<0.000000e+00> : vector<8x128xf32>
    %144 = tpu.matmul %132, %143, %cst_126 {dimension_numbers = #tpu.dot_dimension_numbers<[1], [0], [0], [1], [0, 0, 1, 1], [], []>} : vector<8x128xf32>, vector<128x128xf32>, vector<8x128xf32> -> vector<8x128xf32>
    %145 = arith.addf %135, %138 : vector<8x128xf32>
    %cst_127 = arith.constant 0.000000e+00 : f32
    %146 = vector.broadcast %cst_127 : f32 to vector<8x128xf32>
    %147 = arith.maximumf %145, %146 : vector<8x128xf32>
    %148 = arith.addf %141, %6 : vector<8x128xf32>
    %c0_128 = arith.constant 0 : index
    %c0_129 = arith.constant 0 : index
    %c0_130 = arith.constant 0 : index
    %149 = vector.load %arg4[%c0_128, %c0_129, %c0_130] : memref<2x128x128xf32, #tpu.memory_space<vmem>>, vector<1x128x128xf32>
    %150 = vector.shape_cast %149 : vector<1x128x128xf32> to vector<128x128xf32>
    %cst_131 = arith.constant dense<0.000000e+00> : vector<8x128xf32>
    %151 = tpu.matmul %147, %150, %cst_131 {dimension_numbers = #tpu.dot_dimension_numbers<[1], [0], [0], [1], [0, 0, 1, 1], [], []>} : vector<8x128xf32>, vector<128x128xf32>, vector<8x128xf32> -> vector<8x128xf32>
    %152 = arith.addf %148, %151 : vector<8x128xf32>
    %cst_132 = arith.constant 0.000000e+00 : f32
    %153 = vector.broadcast %cst_132 : f32 to vector<8x128xf32>
    %154 = arith.maximumf %152, %153 : vector<8x128xf32>
    %155 = arith.addf %144, %10 : vector<8x128xf32>
    %c1_133 = arith.constant 1 : index
    %c0_134 = arith.constant 0 : index
    %c0_135 = arith.constant 0 : index
    %156 = vector.load %arg4[%c1_133, %c0_134, %c0_135] : memref<2x128x128xf32, #tpu.memory_space<vmem>>, vector<1x128x128xf32>
    %157 = vector.shape_cast %156 : vector<1x128x128xf32> to vector<128x128xf32>
    %cst_136 = arith.constant dense<0.000000e+00> : vector<8x128xf32>
    %158 = tpu.matmul %154, %157, %cst_136 {dimension_numbers = #tpu.dot_dimension_numbers<[1], [0], [0], [1], [0, 0, 1, 1], [], []>} : vector<8x128xf32>, vector<128x128xf32>, vector<8x128xf32> -> vector<8x128xf32>
    %159 = arith.addf %155, %158 : vector<8x128xf32>
    %cst_137 = arith.constant 0.000000e+00 : f32
    %160 = vector.broadcast %cst_137 : f32 to vector<8x128xf32>
    %161 = arith.maximumf %159, %160 : vector<8x128xf32>
    %c5_i32 = arith.constant 5 : i32
    %162 = arith.index_cast %c5_i32 : i32 to index
    %c0_138 = arith.constant 0 : index
    %c0_139 = arith.constant 0 : index
    %163 = vector.load %arg2[%162, %c0_138, %c0_139] : memref<8x8x128xf32, #tpu.memory_space<vmem>>, vector<1x8x128xf32>
    %164 = vector.shape_cast %163 : vector<1x8x128xf32> to vector<8x128xf32>
    %c0_140 = arith.constant 0 : index
    %c0_141 = arith.constant 0 : index
    %c0_142 = arith.constant 0 : index
    %165 = vector.load %arg3[%c0_140, %c0_141, %c0_142] : memref<3x128x128xf32, #tpu.memory_space<vmem>>, vector<1x128x128xf32>
    %166 = vector.shape_cast %165 : vector<1x128x128xf32> to vector<128x128xf32>
    %cst_143 = arith.constant dense<0.000000e+00> : vector<8x128xf32>
    %167 = tpu.matmul %147, %166, %cst_143 {dimension_numbers = #tpu.dot_dimension_numbers<[1], [0], [0], [1], [0, 0, 1, 1], [], []>} : vector<8x128xf32>, vector<128x128xf32>, vector<8x128xf32> -> vector<8x128xf32>
    %c1_144 = arith.constant 1 : index
    %c0_145 = arith.constant 0 : index
    %c0_146 = arith.constant 0 : index
    %168 = vector.load %arg3[%c1_144, %c0_145, %c0_146] : memref<3x128x128xf32, #tpu.memory_space<vmem>>, vector<1x128x128xf32>
    %169 = vector.shape_cast %168 : vector<1x128x128xf32> to vector<128x128xf32>
    %cst_147 = arith.constant dense<0.000000e+00> : vector<8x128xf32>
    %170 = tpu.matmul %154, %169, %cst_147 {dimension_numbers = #tpu.dot_dimension_numbers<[1], [0], [0], [1], [0, 0, 1, 1], [], []>} : vector<8x128xf32>, vector<128x128xf32>, vector<8x128xf32> -> vector<8x128xf32>
    %c2_148 = arith.constant 2 : index
    %c0_149 = arith.constant 0 : index
    %c0_150 = arith.constant 0 : index
    %171 = vector.load %arg3[%c2_148, %c0_149, %c0_150] : memref<3x128x128xf32, #tpu.memory_space<vmem>>, vector<1x128x128xf32>
    %172 = vector.shape_cast %171 : vector<1x128x128xf32> to vector<128x128xf32>
    %cst_151 = arith.constant dense<0.000000e+00> : vector<8x128xf32>
    %173 = tpu.matmul %161, %172, %cst_151 {dimension_numbers = #tpu.dot_dimension_numbers<[1], [0], [0], [1], [0, 0, 1, 1], [], []>} : vector<8x128xf32>, vector<128x128xf32>, vector<8x128xf32> -> vector<8x128xf32>
    %174 = arith.addf %164, %167 : vector<8x128xf32>
    %cst_152 = arith.constant 0.000000e+00 : f32
    %175 = vector.broadcast %cst_152 : f32 to vector<8x128xf32>
    %176 = arith.maximumf %174, %175 : vector<8x128xf32>
    %177 = arith.addf %170, %6 : vector<8x128xf32>
    %c0_153 = arith.constant 0 : index
    %c0_154 = arith.constant 0 : index
    %c0_155 = arith.constant 0 : index
    %178 = vector.load %arg4[%c0_153, %c0_154, %c0_155] : memref<2x128x128xf32, #tpu.memory_space<vmem>>, vector<1x128x128xf32>
    %179 = vector.shape_cast %178 : vector<1x128x128xf32> to vector<128x128xf32>
    %cst_156 = arith.constant dense<0.000000e+00> : vector<8x128xf32>
    %180 = tpu.matmul %176, %179, %cst_156 {dimension_numbers = #tpu.dot_dimension_numbers<[1], [0], [0], [1], [0, 0, 1, 1], [], []>} : vector<8x128xf32>, vector<128x128xf32>, vector<8x128xf32> -> vector<8x128xf32>
    %181 = arith.addf %177, %180 : vector<8x128xf32>
    %cst_157 = arith.constant 0.000000e+00 : f32
    %182 = vector.broadcast %cst_157 : f32 to vector<8x128xf32>
    %183 = arith.maximumf %181, %182 : vector<8x128xf32>
    %184 = arith.addf %173, %10 : vector<8x128xf32>
    %c1_158 = arith.constant 1 : index
    %c0_159 = arith.constant 0 : index
    %c0_160 = arith.constant 0 : index
    %185 = vector.load %arg4[%c1_158, %c0_159, %c0_160] : memref<2x128x128xf32, #tpu.memory_space<vmem>>, vector<1x128x128xf32>
    %186 = vector.shape_cast %185 : vector<1x128x128xf32> to vector<128x128xf32>
    %cst_161 = arith.constant dense<0.000000e+00> : vector<8x128xf32>
    %187 = tpu.matmul %183, %186, %cst_161 {dimension_numbers = #tpu.dot_dimension_numbers<[1], [0], [0], [1], [0, 0, 1, 1], [], []>} : vector<8x128xf32>, vector<128x128xf32>, vector<8x128xf32> -> vector<8x128xf32>
    %188 = arith.addf %184, %187 : vector<8x128xf32>
    %cst_162 = arith.constant 0.000000e+00 : f32
    %189 = vector.broadcast %cst_162 : f32 to vector<8x128xf32>
    %190 = arith.maximumf %188, %189 : vector<8x128xf32>
    %c6_i32 = arith.constant 6 : i32
    %191 = arith.index_cast %c6_i32 : i32 to index
    %c0_163 = arith.constant 0 : index
    %c0_164 = arith.constant 0 : index
    %192 = vector.load %arg2[%191, %c0_163, %c0_164] : memref<8x8x128xf32, #tpu.memory_space<vmem>>, vector<1x8x128xf32>
    %193 = vector.shape_cast %192 : vector<1x8x128xf32> to vector<8x128xf32>
    %c0_165 = arith.constant 0 : index
    %c0_166 = arith.constant 0 : index
    %c0_167 = arith.constant 0 : index
    %194 = vector.load %arg3[%c0_165, %c0_166, %c0_167] : memref<3x128x128xf32, #tpu.memory_space<vmem>>, vector<1x128x128xf32>
    %195 = vector.shape_cast %194 : vector<1x128x128xf32> to vector<128x128xf32>
    %cst_168 = arith.constant dense<0.000000e+00> : vector<8x128xf32>
    %196 = tpu.matmul %176, %195, %cst_168 {dimension_numbers = #tpu.dot_dimension_numbers<[1], [0], [0], [1], [0, 0, 1, 1], [], []>} : vector<8x128xf32>, vector<128x128xf32>, vector<8x128xf32> -> vector<8x128xf32>
    %c1_169 = arith.constant 1 : index
    %c0_170 = arith.constant 0 : index
    %c0_171 = arith.constant 0 : index
    %197 = vector.load %arg3[%c1_169, %c0_170, %c0_171] : memref<3x128x128xf32, #tpu.memory_space<vmem>>, vector<1x128x128xf32>
    %198 = vector.shape_cast %197 : vector<1x128x128xf32> to vector<128x128xf32>
    %cst_172 = arith.constant dense<0.000000e+00> : vector<8x128xf32>
    %199 = tpu.matmul %183, %198, %cst_172 {dimension_numbers = #tpu.dot_dimension_numbers<[1], [0], [0], [1], [0, 0, 1, 1], [], []>} : vector<8x128xf32>, vector<128x128xf32>, vector<8x128xf32> -> vector<8x128xf32>
    %c2_173 = arith.constant 2 : index
    %c0_174 = arith.constant 0 : index
    %c0_175 = arith.constant 0 : index
    %200 = vector.load %arg3[%c2_173, %c0_174, %c0_175] : memref<3x128x128xf32, #tpu.memory_space<vmem>>, vector<1x128x128xf32>
    %201 = vector.shape_cast %200 : vector<1x128x128xf32> to vector<128x128xf32>
    %cst_176 = arith.constant dense<0.000000e+00> : vector<8x128xf32>
    %202 = tpu.matmul %190, %201, %cst_176 {dimension_numbers = #tpu.dot_dimension_numbers<[1], [0], [0], [1], [0, 0, 1, 1], [], []>} : vector<8x128xf32>, vector<128x128xf32>, vector<8x128xf32> -> vector<8x128xf32>
    %203 = arith.addf %193, %196 : vector<8x128xf32>
    %cst_177 = arith.constant 0.000000e+00 : f32
    %204 = vector.broadcast %cst_177 : f32 to vector<8x128xf32>
    %205 = arith.maximumf %203, %204 : vector<8x128xf32>
    %206 = arith.addf %199, %6 : vector<8x128xf32>
    %c0_178 = arith.constant 0 : index
    %c0_179 = arith.constant 0 : index
    %c0_180 = arith.constant 0 : index
    %207 = vector.load %arg4[%c0_178, %c0_179, %c0_180] : memref<2x128x128xf32, #tpu.memory_space<vmem>>, vector<1x128x128xf32>
    %208 = vector.shape_cast %207 : vector<1x128x128xf32> to vector<128x128xf32>
    %cst_181 = arith.constant dense<0.000000e+00> : vector<8x128xf32>
    %209 = tpu.matmul %205, %208, %cst_181 {dimension_numbers = #tpu.dot_dimension_numbers<[1], [0], [0], [1], [0, 0, 1, 1], [], []>} : vector<8x128xf32>, vector<128x128xf32>, vector<8x128xf32> -> vector<8x128xf32>
    %210 = arith.addf %206, %209 : vector<8x128xf32>
    %cst_182 = arith.constant 0.000000e+00 : f32
    %211 = vector.broadcast %cst_182 : f32 to vector<8x128xf32>
    %212 = arith.maximumf %210, %211 : vector<8x128xf32>
    %213 = arith.addf %202, %10 : vector<8x128xf32>
    %c1_183 = arith.constant 1 : index
    %c0_184 = arith.constant 0 : index
    %c0_185 = arith.constant 0 : index
    %214 = vector.load %arg4[%c1_183, %c0_184, %c0_185] : memref<2x128x128xf32, #tpu.memory_space<vmem>>, vector<1x128x128xf32>
    %215 = vector.shape_cast %214 : vector<1x128x128xf32> to vector<128x128xf32>
    %cst_186 = arith.constant dense<0.000000e+00> : vector<8x128xf32>
    %216 = tpu.matmul %212, %215, %cst_186 {dimension_numbers = #tpu.dot_dimension_numbers<[1], [0], [0], [1], [0, 0, 1, 1], [], []>} : vector<8x128xf32>, vector<128x128xf32>, vector<8x128xf32> -> vector<8x128xf32>
    %217 = arith.addf %213, %216 : vector<8x128xf32>
    %cst_187 = arith.constant 0.000000e+00 : f32
    %218 = vector.broadcast %cst_187 : f32 to vector<8x128xf32>
    %219 = arith.maximumf %217, %218 : vector<8x128xf32>
    %c7_i32 = arith.constant 7 : i32
    %220 = arith.index_cast %c7_i32 : i32 to index
    %c0_188 = arith.constant 0 : index
    %c0_189 = arith.constant 0 : index
    %221 = vector.load %arg2[%220, %c0_188, %c0_189] : memref<8x8x128xf32, #tpu.memory_space<vmem>>, vector<1x8x128xf32>
    %222 = vector.shape_cast %221 : vector<1x8x128xf32> to vector<8x128xf32>
    %c0_190 = arith.constant 0 : index
    %c0_191 = arith.constant 0 : index
    %c0_192 = arith.constant 0 : index
    %223 = vector.load %arg3[%c0_190, %c0_191, %c0_192] : memref<3x128x128xf32, #tpu.memory_space<vmem>>, vector<1x128x128xf32>
    %224 = vector.shape_cast %223 : vector<1x128x128xf32> to vector<128x128xf32>
    %cst_193 = arith.constant dense<0.000000e+00> : vector<8x128xf32>
    %225 = tpu.matmul %205, %224, %cst_193 {dimension_numbers = #tpu.dot_dimension_numbers<[1], [0], [0], [1], [0, 0, 1, 1], [], []>} : vector<8x128xf32>, vector<128x128xf32>, vector<8x128xf32> -> vector<8x128xf32>
    %c1_194 = arith.constant 1 : index
    %c0_195 = arith.constant 0 : index
    %c0_196 = arith.constant 0 : index
    %226 = vector.load %arg3[%c1_194, %c0_195, %c0_196] : memref<3x128x128xf32, #tpu.memory_space<vmem>>, vector<1x128x128xf32>
    %227 = vector.shape_cast %226 : vector<1x128x128xf32> to vector<128x128xf32>
    %cst_197 = arith.constant dense<0.000000e+00> : vector<8x128xf32>
    %228 = tpu.matmul %212, %227, %cst_197 {dimension_numbers = #tpu.dot_dimension_numbers<[1], [0], [0], [1], [0, 0, 1, 1], [], []>} : vector<8x128xf32>, vector<128x128xf32>, vector<8x128xf32> -> vector<8x128xf32>
    %c2_198 = arith.constant 2 : index
    %c0_199 = arith.constant 0 : index
    %c0_200 = arith.constant 0 : index
    %229 = vector.load %arg3[%c2_198, %c0_199, %c0_200] : memref<3x128x128xf32, #tpu.memory_space<vmem>>, vector<1x128x128xf32>
    %230 = vector.shape_cast %229 : vector<1x128x128xf32> to vector<128x128xf32>
    %cst_201 = arith.constant dense<0.000000e+00> : vector<8x128xf32>
    %231 = tpu.matmul %219, %230, %cst_201 {dimension_numbers = #tpu.dot_dimension_numbers<[1], [0], [0], [1], [0, 0, 1, 1], [], []>} : vector<8x128xf32>, vector<128x128xf32>, vector<8x128xf32> -> vector<8x128xf32>
    %232 = arith.addf %222, %225 : vector<8x128xf32>
    %cst_202 = arith.constant 0.000000e+00 : f32
    %233 = vector.broadcast %cst_202 : f32 to vector<8x128xf32>
    %234 = arith.maximumf %232, %233 : vector<8x128xf32>
    %235 = arith.addf %228, %6 : vector<8x128xf32>
    %c0_203 = arith.constant 0 : index
    %c0_204 = arith.constant 0 : index
    %c0_205 = arith.constant 0 : index
    %236 = vector.load %arg4[%c0_203, %c0_204, %c0_205] : memref<2x128x128xf32, #tpu.memory_space<vmem>>, vector<1x128x128xf32>
    %237 = vector.shape_cast %236 : vector<1x128x128xf32> to vector<128x128xf32>
    %cst_206 = arith.constant dense<0.000000e+00> : vector<8x128xf32>
    %238 = tpu.matmul %234, %237, %cst_206 {dimension_numbers = #tpu.dot_dimension_numbers<[1], [0], [0], [1], [0, 0, 1, 1], [], []>} : vector<8x128xf32>, vector<128x128xf32>, vector<8x128xf32> -> vector<8x128xf32>
    %239 = arith.addf %235, %238 : vector<8x128xf32>
    %cst_207 = arith.constant 0.000000e+00 : f32
    %240 = vector.broadcast %cst_207 : f32 to vector<8x128xf32>
    %241 = arith.maximumf %239, %240 : vector<8x128xf32>
    %242 = arith.addf %231, %10 : vector<8x128xf32>
    %c1_208 = arith.constant 1 : index
    %c0_209 = arith.constant 0 : index
    %c0_210 = arith.constant 0 : index
    %243 = vector.load %arg4[%c1_208, %c0_209, %c0_210] : memref<2x128x128xf32, #tpu.memory_space<vmem>>, vector<1x128x128xf32>
    %244 = vector.shape_cast %243 : vector<1x128x128xf32> to vector<128x128xf32>
    %cst_211 = arith.constant dense<0.000000e+00> : vector<8x128xf32>
    %245 = tpu.matmul %241, %244, %cst_211 {dimension_numbers = #tpu.dot_dimension_numbers<[1], [0], [0], [1], [0, 0, 1, 1], [], []>} : vector<8x128xf32>, vector<128x128xf32>, vector<8x128xf32> -> vector<8x128xf32>
    %246 = arith.addf %242, %245 : vector<8x128xf32>
    %cst_212 = arith.constant 0.000000e+00 : f32
    %247 = vector.broadcast %cst_212 : f32 to vector<8x128xf32>
    %248 = arith.maximumf %246, %247 : vector<8x128xf32>
    %c8_i32 = arith.constant 8 : i32
    %c0_213 = arith.constant 0 : index
    %c0_214 = arith.constant 0 : index
    %c0_215 = arith.constant 0 : index
    %249 = vector.load %arg9[%c0_213, %c0_214, %c0_215] : memref<3x8x128xf32, #tpu.memory_space<vmem>>, vector<1x8x128xf32>
    %250 = vector.shape_cast %249 : vector<1x8x128xf32> to vector<8x128xf32>
    %251 = vector.shape_cast %234 : vector<8x128xf32> to vector<1x8x128xf32>
    tpu.vector_store %arg9[%c0_213, %c0_214, %c0_215], %251 {strides = array<i32>} : memref<3x8x128xf32, #tpu.memory_space<vmem>>, vector<1x8x128xf32>,
    %c1_216 = arith.constant 1 : index
    %c0_217 = arith.constant 0 : index
    %c0_218 = arith.constant 0 : index
    %252 = vector.load %arg9[%c1_216, %c0_217, %c0_218] : memref<3x8x128xf32, #tpu.memory_space<vmem>>, vector<1x8x128xf32>
    %253 = vector.shape_cast %252 : vector<1x8x128xf32> to vector<8x128xf32>
    %254 = vector.shape_cast %241 : vector<8x128xf32> to vector<1x8x128xf32>
    tpu.vector_store %arg9[%c1_216, %c0_217, %c0_218], %254 {strides = array<i32>} : memref<3x8x128xf32, #tpu.memory_space<vmem>>, vector<1x8x128xf32>,
    %c2_219 = arith.constant 2 : index
    %c0_220 = arith.constant 0 : index
    %c0_221 = arith.constant 0 : index
    %255 = vector.load %arg9[%c2_219, %c0_220, %c0_221] : memref<3x8x128xf32, #tpu.memory_space<vmem>>, vector<1x8x128xf32>
    %256 = vector.shape_cast %255 : vector<1x8x128xf32> to vector<8x128xf32>
    %257 = vector.shape_cast %248 : vector<8x128xf32> to vector<1x8x128xf32>
    tpu.vector_store %arg9[%c2_219, %c0_220, %c0_221], %257 {strides = array<i32>} : memref<3x8x128xf32, #tpu.memory_space<vmem>>, vector<1x8x128xf32>,
    %c0_i32_222 = arith.constant 0 : i32
    %258 = arith.cmpi eq, %arg1, %c0_i32_222 : i32
    %259 = arith.extui %258 : i1 to i32
    %c0_i32_223 = arith.constant 0 : i32
    %260 = arith.cmpi ne, %259, %c0_i32_223 : i32
    scf.if %260 {
      %c0_224 = arith.constant 0 : index
      %c0_225 = arith.constant 0 : index
      %261 = vector.load %arg6[%c0_224, %c0_225] : memref<128x128xf32, #tpu.memory_space<vmem>>, vector<128x128xf32>
      %cst_226 = arith.constant dense<0.000000e+00> : vector<8x128xf32>
      %262 = tpu.matmul %248, %261, %cst_226 {dimension_numbers = #tpu.dot_dimension_numbers<[1], [0], [0], [1], [0, 0, 1, 1], [], []>} : vector<8x128xf32>, vector<128x128xf32>, vector<8x128xf32> -> vector<8x128xf32>
      %c0_227 = arith.constant 0 : index
      %c0_228 = arith.constant 0 : index
      %263 = vector.load %arg7[%c0_227, %c0_228] : memref<1x128xf32, #tpu.memory_space<vmem>>, vector<1x128xf32>
      %264 = vector.broadcast %263 : vector<1x128xf32> to vector<8x128xf32>
      %265 = arith.addf %262, %264 : vector<8x128xf32>
      %c0_229 = arith.constant 0 : index
      %c0_230 = arith.constant 0 : index
      %266 = vector.load %arg8[%c0_229, %c0_230] : memref<8x128xf32, #tpu.memory_space<vmem>>, vector<8x128xf32>
      tpu.vector_store %arg8[%c0_229, %c0_230], %265 {strides = array<i32>} : memref<8x128xf32, #tpu.memory_space<vmem>>, vector<8x128xf32>,
    } else {
    }
    return
  }
  func.func @transform_0(%arg0: i32, %arg1: i32) -> (i32, i32, i32) {
    %c0_i32 = arith.constant 0 : i32
    %c0_i32_0 = arith.constant 0 : i32
    return %arg1, %arg0, %c0_i32 : i32, i32, i32
  }
  func.func @transform_1(%arg0: i32, %arg1: i32) -> (i32, i32, i32) {
    %c0_i32 = arith.constant 0 : i32
    %c0_i32_0 = arith.constant 0 : i32
    %c0_i32_1 = arith.constant 0 : i32
    %c0_i32_2 = arith.constant 0 : i32
    return %c0_i32, %c0_i32_0, %c0_i32_1 : i32, i32, i32
  }
  func.func @transform_2(%arg0: i32, %arg1: i32) -> (i32, i32, i32) {
    %c0_i32 = arith.constant 0 : i32
    %c0_i32_0 = arith.constant 0 : i32
    %c0_i32_1 = arith.constant 0 : i32
    %c0_i32_2 = arith.constant 0 : i32
    return %c0_i32, %c0_i32_0, %c0_i32_1 : i32, i32, i32
  }
  func.func @transform_3(%arg0: i32, %arg1: i32) -> (i32, i32, i32) {
    %c0_i32 = arith.constant 0 : i32
    %c0_i32_0 = arith.constant 0 : i32
    %c0_i32_1 = arith.constant 0 : i32
    %c0_i32_2 = arith.constant 0 : i32
    return %c0_i32, %c0_i32_0, %c0_i32_1 : i32, i32, i32
  }
  func.func @transform_4(%arg0: i32, %arg1: i32) -> (i32, i32) {
    %c0_i32 = arith.constant 0 : i32
    %c0_i32_0 = arith.constant 0 : i32
    %c0_i32_1 = arith.constant 0 : i32
    return %c0_i32, %c0_i32_0 : i32, i32
  }
  func.func @transform_5(%arg0: i32, %arg1: i32) -> (i32, i32) {
    %c0_i32 = arith.constant 0 : i32
    %c0_i32_0 = arith.constant 0 : i32
    %c0_i32_1 = arith.constant 0 : i32
    return %c0_i32, %c0_i32_0 : i32, i32
  }
  func.func @transform_6(%arg0: i32, %arg1: i32) -> (i32, i32) {
    %c0_i32 = arith.constant 0 : i32
    %c0_i32_0 = arith.constant 0 : i32
    return %arg0, %c0_i32 : i32, i32
  }
}

</mosaic_0001>

<llo_original>
// kernel: tpu_custom_call.1
$region0: #{tpu_custom_call.1}
  #allocation0 [shape = 'u32[]', space=smem, size = 0x4, offset = 0x4, fixed_abs, tag = 'smem constant byte address 0x4 - core index']
  #allocation1 [shape = 'u32[144,128]{1,0:T(1,128)}', space=vmem, size = 0x12000, scoped, tag = 'internal scratch']
  #allocation2 [shape = 'f32[3,8,128]{2,1,0:T(8,128)}', space=vmem, size = 0x3000, scoped, tag = 'scratch operand']
  %s0 = inlined_call_operand.hbm [shape: f32[8,8,128], index: 0, kind: input, shape index: {}]
  %s1 = inlined_call_operand.hbm [shape: f32[3,128,128], index: 1, kind: input, shape index: {}]
  %s2 = inlined_call_operand.hbm [shape: f32[2,128,128], index: 2, kind: input, shape index: {}]
  %s3 = inlined_call_operand.vmem [shape: f32[2,1,128], index: 3, kind: input, shape index: {}]
  %s4 = inlined_call_operand.hbm [shape: f32[128,128], index: 4, kind: input, shape index: {}]
  %s5 = inlined_call_operand.vmem [shape: f32[1,128], index: 5, kind: input, shape index: {}]
  %s6 = inlined_call_operand.hbm [shape: f32[8,128], index: 6, kind: output, shape index: {}]
  %s7 = sld [smem:[#allocation0]]
  $region58: #{tpu_custom_call.1} parent=0
    _
  %s9 = ssub.s32 1, %s7
  %s10 = scalar_select 0, %s9, %s7
  $region1: #{tpu_custom_call.1} parent=0
    #allocation3 [shape = 'u8[32768]{0}', space=vmem, size = 0x8000, scoped, tag = 'input window, operand 0, single buffered']
    #allocation4 [shape = 's32[1]{0}', space=sflag, size = 0x4, scoped, tag = 'scoped memory for tpu_custom_call.1']
    #allocation5 [shape = 's32[1]{0}', space=sflag, size = 0x4, scoped, tag = 'scoped memory for tpu_custom_call.1']
    #allocation6 [shape = 'u8[196608]{0}', space=vmem, size = 0x30000, scoped, tag = 'input window, operand 1, single buffered']
    #allocation7 [shape = 's32[1]{0}', space=sflag, size = 0x4, scoped, tag = 'scoped memory for tpu_custom_call.1']
    #allocation8 [shape = 'u8[131072]{0}', space=vmem, size = 0x20000, scoped, tag = 'input window, operand 2, single buffered']
    #allocation9 [shape = 'u8[65536]{0}', space=vmem, size = 0x10000, scoped, tag = 'input window, operand 4, single buffered']
    #allocation10 [shape = 's32[1]{0}', space=sflag, size = 0x4, scoped, tag = 'scoped memory for tpu_custom_call.1']
    #allocation11 [shape = 'u8[4096]{0}', space=vmem, size = 0x1000, scoped, tag = 'output window, operand 0, single buffered']
    %11 = vsyncpa [#allocation4], 0
    %12 = vsyncpa [#allocation7], 0
    %13 = vsyncpa [#allocation10], 0
    %14 = vsyncpa [#allocation5], 0
    // Predicated region
    $region2: #{tpu_custom_call.1} parent=1 // pred_check
      _
    $region3: #{tpu_custom_call.1} parent=1 // pred_check_branch
      %16 = sbr.rel (0) target = $region5
    $region4: #{tpu_custom_call.1} parent=1 // pred_region
      %s18 = ssub.s32 1024, 1024
      %19 = vsyncadd [#allocation4], %s18
      %s20 = sshll.u32 [#allocation3], 4
      %s21 = int_to_ptr.vmem [resolvable:$true] %s20
      %26 = dma.hbm_to_vmem [thread:$0]  %s0, 1024, %s21, [#allocation4], 128, 128, 8
    $region5: #{tpu_custom_call.1} parent=1 // pred_fallthru
      _
    // Predicated region
    $region6: #{tpu_custom_call.1} parent=1 // pred_check
      _
    $region7: #{tpu_custom_call.1} parent=1 // pred_check_branch
      %28 = sbr.rel (0) target = $region9
    $region8: #{tpu_custom_call.1} parent=1 // pred_region
      %s30 = ssub.s32 6144, 6144
      %31 = vsyncadd [#allocation7], %s30
      %s32 = sshll.u32 [#allocation6], 4
      %s33 = int_to_ptr.vmem [resolvable:$true] %s32
      %38 = dma.hbm_to_vmem [thread:$0]  %s1, 6144, %s33, [#allocation7], 128, 128, 8
    $region9: #{tpu_custom_call.1} parent=1 // pred_fallthru
      _
    // Predicated region
    $region10: #{tpu_custom_call.1} parent=1 // pred_check
      _
    $region11: #{tpu_custom_call.1} parent=1 // pred_check_branch
      %40 = sbr.rel (0) target = $region13
    $region12: #{tpu_custom_call.1} parent=1 // pred_region
      %s42 = ssub.s32 4096, 4096
      %43 = vsyncadd [#allocation7], %s42
      %s44 = sshll.u32 [#allocation8], 4
      %s45 = int_to_ptr.vmem [resolvable:$true] %s44
      %50 = dma.hbm_to_vmem [thread:$0]  %s2, 4096, %s45, [#allocation7], 128, 128, 8
    $region13: #{tpu_custom_call.1} parent=1 // pred_fallthru
      _
    // Predicated region
    $region14: #{tpu_custom_call.1} parent=1 // pred_check
      _
    $region15: #{tpu_custom_call.1} parent=1 // pred_check_branch
      %52 = sbr.rel (0) target = $region17
    $region16: #{tpu_custom_call.1} parent=1 // pred_region
      _
    $region17: #{tpu_custom_call.1} parent=1 // pred_fallthru
      _
    // Predicated region
    $region18: #{tpu_custom_call.1} parent=1 // pred_check
      _
    $region19: #{tpu_custom_call.1} parent=1 // pred_check_branch
      %54 = sbr.rel (0) target = $region21
    $region20: #{tpu_custom_call.1} parent=1 // pred_region
      %s56 = ssub.s32 2048, 2048
      %57 = vsyncadd [#allocation10], %s56
      %s58 = sshll.u32 [#allocation9], 4
      %s59 = int_to_ptr.vmem [resolvable:$true] %s58
      %64 = dma.hbm_to_vmem [thread:$0]  %s4, 2048, %s59, [#allocation10], 128, 128, 8
    $region21: #{tpu_custom_call.1} parent=1 // pred_fallthru
      _
    // Predicated region
    $region22: #{tpu_custom_call.1} parent=1 // pred_check
      _
    $region23: #{tpu_custom_call.1} parent=1 // pred_check_branch
      %66 = sbr.rel (0) target = $region25
    $region24: #{tpu_custom_call.1} parent=1 // pred_region
      _
    $region25: #{tpu_custom_call.1} parent=1 // pred_fallthru
      _
    // Predicated region
    $region26: #{tpu_custom_call.1} parent=1 // pred_check
      _
    $region27: #{tpu_custom_call.1} parent=1 // pred_check_branch
      %68 = sbr.rel (0) target = $region29
    $region28: #{tpu_custom_call.1} parent=1 // pred_region
      %69 = dma.done [#allocation4], 1024
    $region29: #{tpu_custom_call.1} parent=1 // pred_fallthru
      _
    // Predicated region
    $region30: #{tpu_custom_call.1} parent=1 // pred_check
      _
    $region31: #{tpu_custom_call.1} parent=1 // pred_check_branch
      %71 = sbr.rel (0) target = $region33
    $region32: #{tpu_custom_call.1} parent=1 // pred_region
      %72 = dma.done [#allocation7], 6144
    $region33: #{tpu_custom_call.1} parent=1 // pred_fallthru
      _
    // Predicated region
    $region34: #{tpu_custom_call.1} parent=1 // pred_check
      _
    $region35: #{tpu_custom_call.1} parent=1 // pred_check_branch
      %74 = sbr.rel (0) target = $region37
    $region36: #{tpu_custom_call.1} parent=1 // pred_region
      %75 = dma.done [#allocation7], 4096
    $region37: #{tpu_custom_call.1} parent=1 // pred_fallthru
      _
    // Predicated region
    $region38: #{tpu_custom_call.1} parent=1 // pred_check
      _
    $region39: #{tpu_custom_call.1} parent=1 // pred_check_branch
      %77 = sbr.rel (0) target = $region41
    $region40: #{tpu_custom_call.1} parent=1 // pred_region
      %78 = dma.done [#allocation10], 2048
    $region41: #{tpu_custom_call.1} parent=1 // pred_fallthru
      _
    %p79 = scmp.eq.s32.totalorder 0, 0
    // Predicated region
    $region42: #{tpu_custom_call.1} parent=1 // pred_check
      %p80 = pneg %p79
    $region43: #{tpu_custom_call.1} parent=1 // pred_check_branch
      %82 = sbr.rel (%p80) target = $region45
    $region44: #{tpu_custom_call.1} parent=1 // pred_region
      %83 = vst [vmem:[#allocation2] sm:$0xff] 0.0
      %84 = vst [vmem:[#allocation2 + $0x8] sm:$0xff] 0.0
      %85 = vst [vmem:[#allocation2 + $0x10] sm:$0xff] 0.0
    $region45: #{tpu_custom_call.1} parent=1 // pred_fallthru
      _
    %v86 = vld [vmem:[%s3] sm:$0x1]
    %v88 = vlaneseq
    %v89 = vshrl.u32 %v88, 7
    %v90 = vsub.s32 0, %v89
    %v91 = vrot.slane %v86, %v90
    %s93 = scalar_lea.vmem %s3, 1
    %v94 = vld [vmem:[%s93] sm:$0x1]
    %v96 = vlaneseq
    %v97 = vshrl.u32 %v96, 7
    %v98 = vsub.s32 0, %v97
    %v99 = vrot.slane %v94, %v98
    %v101 = vld [vmem:[#allocation2] sm:$0xff]
    %s102 = scalar_lea.vmem [#allocation2], 8
    %v103 = vld [vmem:[%s102] sm:$0xff]
    %s104 = scalar_lea.vmem [#allocation2], 16
    %v105 = vld [vmem:[%s104] sm:$0xff]
    %v106 = vld [vmem:[#allocation3] sm:$0xff]
    %v107 = vld [vmem:[#allocation6] sm:$0xff]
    %v108 = vld [vmem:[#allocation6 + $0x8] sm:$0xff]
    %v109 = vld [vmem:[#allocation6 + $0x10] sm:$0xff]
    %v110 = vld [vmem:[#allocation6 + $0x18] sm:$0xff]
    %v111 = vld [vmem:[#allocation6 + $0x20] sm:$0xff]
    %v112 = vld [vmem:[#allocation6 + $0x28] sm:$0xff]
    %v113 = vld [vmem:[#allocation6 + $0x30] sm:$0xff]
    %v114 = vld [vmem:[#allocation6 + $0x38] sm:$0xff]
    %v115 = vld [vmem:[#allocation6 + $0x40] sm:$0xff]
    %v116 = vld [vmem:[#allocation6 + $0x48] sm:$0xff]
    %v117 = vld [vmem:[#allocation6 + $0x50] sm:$0xff]
    %v118 = vld [vmem:[#allocation6 + $0x58] sm:$0xff]
    %v119 = vld [vmem:[#allocation6 + $0x60] sm:$0xff]
    %v120 = vld [vmem:[#allocation6 + $0x68] sm:$0xff]
    %v121 = vld [vmem:[#allocation6 + $0x70] sm:$0xff]
    %v122 = vld [vmem:[#allocation6 + $0x78] sm:$0xff]
    %123 = vmatprep.subr.mxu0 0.0
    %124 = vmatpush1.msra.mxu0 %v107
    %125 = vmatprep.subr.mxu0 0.0
    %126 = vmatpush1.msra.mxu0 %v108
    %127 = vmatprep.subr.mxu0 0.0
    %128 = vmatpush1.msra.mxu0 %v109
    %129 = vmatprep.subr.mxu0 0.0
    %130 = vmatpush1.msra.mxu0 %v110
    %131 = vmatprep.subr.mxu0 0.0
    %132 = vmatpush1.msra.mxu0 %v111
    %133 = vmatprep.subr.mxu0 0.0
    %134 = vmatpush1.msra.mxu0 %v112
    %135 = vmatprep.subr.mxu0 0.0
    %136 = vmatpush1.msra.mxu0 %v113
    %137 = vmatprep.subr.mxu0 0.0
    %138 = vmatpush1.msra.mxu0 %v114
    %139 = vmatprep.subr.mxu0 0.0
    %140 = vmatpush1.msra.mxu0 %v115
    %141 = vmatprep.subr.mxu0 0.0
    %142 = vmatpush1.msra.mxu0 %v116
    %143 = vmatprep.subr.mxu0 0.0
    %144 = vmatpush1.msra.mxu0 %v117
    %145 = vmatprep.subr.mxu0 0.0
    %146 = vmatpush1.msra.mxu0 %v118
    %147 = vmatprep.subr.mxu0 0.0
    %148 = vmatpush1.msra.mxu0 %v119
    %149 = vmatprep.subr.mxu0 0.0
    %150 = vmatpush1.msra.mxu0 %v120
    %151 = vmatprep.subr.mxu0 0.0
    %152 = vmatpush1.msra.mxu0 %v121
    %153 = vmatprep.subr.mxu0 0.0
    %154 = vmatpush1.msra.mxu0 %v122
    %155 = vmatprep.subr.mxu0 0.0
    %156 = vmatpush1.msra.mxu0 0.0
    %157 = vmatprep.subr.mxu0 0.0
    %158 = vmatpush1.msra.mxu0 0.0
    %159 = vmatprep.subr.mxu0 0.0
    %160 = vmatpush1.msra.mxu0 0.0
    %161 = vmatprep.subr.mxu0 0.0
    %162 = vmatpush1.msra.mxu0 0.0
    %163 = vmatprep.subr.mxu0 0.0
    %164 = vmatpush1.msra.mxu0 0.0
    %165 = vmatprep.subr.mxu0 0.0
    %166 = vmatpush1.msra.mxu0 0.0
    %167 = vmatprep.subr.mxu0 0.0
    %168 = vmatpush1.msra.mxu0 0.0
    %169 = vmatprep.subr.mxu0 0.0
    %170 = vmatpush1.msra.mxu0 0.0
    %171 = vmatprep.subr.mxu0 0.0
    %172 = vmatpush1.msra.mxu0 0.0
    %173 = vmatprep.subr.mxu0 0.0
    %174 = vmatpush1.msra.mxu0 0.0
    %175 = vmatprep.subr.mxu0 0.0
    %176 = vmatpush1.msra.mxu0 0.0
    %177 = vmatprep.subr.mxu0 0.0
    %178 = vmatpush1.msra.mxu0 0.0
    %179 = vmatprep.subr.mxu0 0.0
    %180 = vmatpush1.msra.mxu0 0.0
    %181 = vmatprep.subr.mxu0 0.0
    %182 = vmatpush1.msra.mxu0 0.0
    %183 = vmatprep.subr.mxu0 0.0
    %184 = vmatpush1.msra.mxu0 0.0
    %185 = vmatprep.subr.mxu0 0.0
    %186 = vmatpush1.msra.mxu0 0.0
    %187 = vmatprep.mubr.f32.mxu0 0.0
    %188 = vmatmul.mubr.f32.gmra.mrb[0].mxu0 %v101
    %v189 = vpop.f32.mrb[0].mxu0
    %v190 = vadd.f32 0.0, %v189
    %v191 = vpop.f32.mrb[0].mxu0
    %192 = vdwg.mxu0
    %s193 = scalar_lea.vmem [#allocation6], 128
    %v194 = vld [vmem:[%s193] sm:$0xff]
    %v195 = vld [vmem:[%s193 + $0x8] sm:$0xff]
    %v196 = vld [vmem:[%s193 + $0x10] sm:$0xff]
    %v197 = vld [vmem:[%s193 + $0x18] sm:$0xff]
    %v198 = vld [vmem:[%s193 + $0x20] sm:$0xff]
    %v199 = vld [vmem:[%s193 + $0x28] sm:$0xff]
    %v200 = vld [vmem:[%s193 + $0x30] sm:$0xff]
    %v201 = vld [vmem:[%s193 + $0x38] sm:$0xff]
    %v202 = vld [vmem:[%s193 + $0x40] sm:$0xff]
    %v203 = vld [vmem:[%s193 + $0x48] sm:$0xff]
    %v204 = vld [vmem:[%s193 + $0x50] sm:$0xff]
    %v205 = vld [vmem:[%s193 + $0x58] sm:$0xff]
    %v206 = vld [vmem:[%s193 + $0x60] sm:$0xff]
    %v207 = vld [vmem:[%s193 + $0x68] sm:$0xff]
    %v208 = vld [vmem:[%s193 + $0x70] sm:$0xff]
    %v209 = vld [vmem:[%s193 + $0x78] sm:$0xff]
    %s210 = scalar_lea.vmem [#allocation6], 256
    %v211 = vld [vmem:[%s210] sm:$0xff]
    %v212 = vld [vmem:[%s210 + $0x8] sm:$0xff]
    %v213 = vld [vmem:[%s210 + $0x10] sm:$0xff]
    %v214 = vld [vmem:[%s210 + $0x18] sm:$0xff]
    %v215 = vld [vmem:[%s210 + $0x20] sm:$0xff]
    %v216 = vld [vmem:[%s210 + $0x28] sm:$0xff]
    %v217 = vld [vmem:[%s210 + $0x30] sm:$0xff]
    %v218 = vld [vmem:[%s210 + $0x38] sm:$0xff]
    %v219 = vld [vmem:[%s210 + $0x40] sm:$0xff]
    %v220 = vld [vmem:[%s210 + $0x48] sm:$0xff]
    %v221 = vld [vmem:[%s210 + $0x50] sm:$0xff]
    %v222 = vld [vmem:[%s210 + $0x58] sm:$0xff]
    %v223 = vld [vmem:[%s210 + $0x60] sm:$0xff]
    %v224 = vld [vmem:[%s210 + $0x68] sm:$0xff]
    %v225 = vld [vmem:[%s210 + $0x70] sm:$0xff]
    %v226 = vld [vmem:[%s210 + $0x78] sm:$0xff]
    %v227 = vadd.f32 %v106, %v190
    %v228 = vmax.f32 %v227, 0.0
    %229 = vmatprep.subr.mxu0 0.0
    %230 = vmatpush1.msra.mxu0 %v194
    %231 = vmatprep.subr.mxu0 0.0
    %232 = vmatpush1.msra.mxu0 %v195
    %233 = vmatprep.subr.mxu0 0.0
    %234 = vmatpush1.msra.mxu0 %v196
    %235 = vmatprep.subr.mxu0 0.0
    %236 = vmatpush1.msra.mxu0 %v197
    %237 = vmatprep.subr.mxu0 0.0
    %238 = vmatpush1.msra.mxu0 %v198
    %239 = vmatprep.subr.mxu0 0.0
    %240 = vmatpush1.msra.mxu0 %v199
    %241 = vmatprep.subr.mxu0 0.0
    %242 = vmatpush1.msra.mxu0 %v200
    %243 = vmatprep.subr.mxu0 0.0
    %244 = vmatpush1.msra.mxu0 %v201
    %245 = vmatprep.subr.mxu0 0.0
    %246 = vmatpush1.msra.mxu0 %v202
    %247 = vmatprep.subr.mxu0 0.0
    %248 = vmatpush1.msra.mxu0 %v203
    %249 = vmatprep.subr.mxu0 0.0
    %250 = vmatpush1.msra.mxu0 %v204
    %251 = vmatprep.subr.mxu0 0.0
    %252 = vmatpush1.msra.mxu0 %v205
    %253 = vmatprep.subr.mxu0 0.0
    %254 = vmatpush1.msra.mxu0 %v206
    %255 = vmatprep.subr.mxu0 0.0
    %256 = vmatpush1.msra.mxu0 %v207
    %257 = vmatprep.subr.mxu0 0.0
    %258 = vmatpush1.msra.mxu0 %v208
    %259 = vmatprep.subr.mxu0 0.0
    %260 = vmatpush1.msra.mxu0 %v209
    %261 = vmatprep.subr.mxu0 0.0
    %262 = vmatpush1.msra.mxu0 0.0
    %263 = vmatprep.subr.mxu0 0.0
    %264 = vmatpush1.msra.mxu0 0.0
    %265 = vmatprep.subr.mxu0 0.0
    %266 = vmatpush1.msra.mxu0 0.0
    %267 = vmatprep.subr.mxu0 0.0
    %268 = vmatpush1.msra.mxu0 0.0
    %269 = vmatprep.subr.mxu0 0.0
    %270 = vmatpush1.msra.mxu0 0.0
    %271 = vmatprep.subr.mxu0 0.0
    %272 = vmatpush1.msra.mxu0 0.0
    %273 = vmatprep.subr.mxu0 0.0
    %274 = vmatpush1.msra.mxu0 0.0
    %275 = vmatprep.subr.mxu0 0.0
    %276 = vmatpush1.msra.mxu0 0.0
    %277 = vmatprep.subr.mxu0 0.0
    %278 = vmatpush1.msra.mxu0 0.0
    %279 = vmatprep.subr.mxu0 0.0
    %280 = vmatpush1.msra.mxu0 0.0
    %281 = vmatprep.subr.mxu0 0.0
    %282 = vmatpush1.msra.mxu0 0.0
    %283 = vmatprep.subr.mxu0 0.0
    %284 = vmatpush1.msra.mxu0 0.0
    %285 = vmatprep.subr.mxu0 0.0
    %286 = vmatpush1.msra.mxu0 0.0
    %287 = vmatprep.subr.mxu0 0.0
    %288 = vmatpush1.msra.mxu0 0.0
    %289 = vmatprep.subr.mxu0 0.0
    %290 = vmatpush1.msra.mxu0 0.0
    %291 = vmatprep.subr.mxu0 0.0
    %292 = vmatpush1.msra.mxu0 0.0
    %293 = vmatprep.mubr.f32.mxu0 0.0
    %294 = vmatmul.mubr.f32.gmra.mrb[0].mxu0 %v103
    %v295 = vpop.f32.mrb[0].mxu0
    %v296 = vadd.f32 %v91, %v295
    %v297 = vpop.f32.mrb[0].mxu0
    %298 = vdwg.mxu0
    %v299 = vld [vmem:[#allocation8] sm:$0xff]
    %v300 = vld [vmem:[#allocation8 + $0x8] sm:$0xff]
    %v301 = vld [vmem:[#allocation8 + $0x10] sm:$0xff]
    %v302 = vld [vmem:[#allocation8 + $0x18] sm:$0xff]
    %v303 = vld [vmem:[#allocation8 + $0x20] sm:$0xff]
    %v304 = vld [vmem:[#allocation8 + $0x28] sm:$0xff]
    %v305 = vld [vmem:[#allocation8 + $0x30] sm:$0xff]
    %v306 = vld [vmem:[#allocation8 + $0x38] sm:$0xff]
    %v307 = vld [vmem:[#allocation8 + $0x40] sm:$0xff]
    %v308 = vld [vmem:[#allocation8 + $0x48] sm:$0xff]
    %v309 = vld [vmem:[#allocation8 + $0x50] sm:$0xff]
    %v310 = vld [vmem:[#allocation8 + $0x58] sm:$0xff]
    %v311 = vld [vmem:[#allocation8 + $0x60] sm:$0xff]
    %v312 = vld [vmem:[#allocation8 + $0x68] sm:$0xff]
    %v313 = vld [vmem:[#allocation8 + $0x70] sm:$0xff]
    %v314 = vld [vmem:[#allocation8 + $0x78] sm:$0xff]
    %315 = vmatprep.subr.mxu0 0.0
    %316 = vmatpush1.msra.mxu0 %v299
    %317 = vmatprep.subr.mxu0 0.0
    %318 = vmatpush1.msra.mxu0 %v300
    %319 = vmatprep.subr.mxu0 0.0
    %320 = vmatpush1.msra.mxu0 %v301
    %321 = vmatprep.subr.mxu0 0.0
    %322 = vmatpush1.msra.mxu0 %v302
    %323 = vmatprep.subr.mxu0 0.0
    %324 = vmatpush1.msra.mxu0 %v303
    %325 = vmatprep.subr.mxu0 0.0
    %326 = vmatpush1.msra.mxu0 %v304
    %327 = vmatprep.subr.mxu0 0.0
    %328 = vmatpush1.msra.mxu0 %v305
    %329 = vmatprep.subr.mxu0 0.0
    %330 = vmatpush1.msra.mxu0 %v306
    %331 = vmatprep.subr.mxu0 0.0
    %332 = vmatpush1.msra.mxu0 %v307
    %333 = vmatprep.subr.mxu0 0.0
    %334 = vmatpush1.msra.mxu0 %v308
    %335 = vmatprep.subr.mxu0 0.0
    %336 = vmatpush1.msra.mxu0 %v309
    %337 = vmatprep.subr.mxu0 0.0
    %338 = vmatpush1.msra.mxu0 %v310
    %339 = vmatprep.subr.mxu0 0.0
    %340 = vmatpush1.msra.mxu0 %v311
    %341 = vmatprep.subr.mxu0 0.0
    %342 = vmatpush1.msra.mxu0 %v312
    %343 = vmatprep.subr.mxu0 0.0
    %344 = vmatpush1.msra.mxu0 %v313
    %345 = vmatprep.subr.mxu0 0.0
    %346 = vmatpush1.msra.mxu0 %v314
    %347 = vmatprep.subr.mxu0 0.0
    %348 = vmatpush1.msra.mxu0 0.0
    %349 = vmatprep.subr.mxu0 0.0
    %350 = vmatpush1.msra.mxu0 0.0
    %351 = vmatprep.subr.mxu0 0.0
    %352 = vmatpush1.msra.mxu0 0.0
    %353 = vmatprep.subr.mxu0 0.0
    %354 = vmatpush1.msra.mxu0 0.0
    %355 = vmatprep.subr.mxu0 0.0
    %356 = vmatpush1.msra.mxu0 0.0
    %357 = vmatprep.subr.mxu0 0.0
    %358 = vmatpush1.msra.mxu0 0.0
    %359 = vmatprep.subr.mxu0 0.0
    %360 = vmatpush1.msra.mxu0 0.0
    %361 = vmatprep.subr.mxu0 0.0
    %362 = vmatpush1.msra.mxu0 0.0
    %363 = vmatprep.subr.mxu0 0.0
    %364 = vmatpush1.msra.mxu0 0.0
    %365 = vmatprep.subr.mxu0 0.0
    %366 = vmatpush1.msra.mxu0 0.0
    %367 = vmatprep.subr.mxu0 0.0
    %368 = vmatpush1.msra.mxu0 0.0
    %369 = vmatprep.subr.mxu0 0.0
    %370 = vmatpush1.msra.mxu0 0.0
    %371 = vmatprep.subr.mxu0 0.0
    %372 = vmatpush1.msra.mxu0 0.0
    %373 = vmatprep.subr.mxu0 0.0
    %374 = vmatpush1.msra.mxu0 0.0
    %375 = vmatprep.subr.mxu0 0.0
    %376 = vmatpush1.msra.mxu0 0.0
    %377 = vmatprep.subr.mxu0 0.0
    %378 = vmatpush1.msra.mxu0 0.0
    %379 = vmatprep.mubr.f32.mxu0 0.0
    %380 = vmatmul.mubr.f32.gmra.mrb[0].mxu0 %v228
    %v381 = vpop.f32.mrb[0].mxu0
    %v382 = vadd.f32 0.0, %v381
    %v383 = vpop.f32.mrb[0].mxu0
    %384 = vdwg.mxu0
    %v385 = vadd.f32 %v296, %v382
    %v386 = vmax.f32 %v385, 0.0
    %387 = vmatprep.subr.mxu0 0.0
    %388 = vmatpush1.msra.mxu0 %v211
    %389 = vmatprep.subr.mxu0 0.0
    %390 = vmatpush1.msra.mxu0 %v212
    %391 = vmatprep.subr.mxu0 0.0
    %392 = vmatpush1.msra.mxu0 %v213
    %393 = vmatprep.subr.mxu0 0.0
    %394 = vmatpush1.msra.mxu0 %v214
    %395 = vmatprep.subr.mxu0 0.0
    %396 = vmatpush1.msra.mxu0 %v215
    %397 = vmatprep.subr.mxu0 0.0
    %398 = vmatpush1.msra.mxu0 %v216
    %399 = vmatprep.subr.mxu0 0.0
    %400 = vmatpush1.msra.mxu0 %v217
    %401 = vmatprep.subr.mxu0 0.0
    %402 = vmatpush1.msra.mxu0 %v218
    %403 = vmatprep.subr.mxu0 0.0
    %404 = vmatpush1.msra.mxu0 %v219
    %405 = vmatprep.subr.mxu0 0.0
    %406 = vmatpush1.msra.mxu0 %v220
    %407 = vmatprep.subr.mxu0 0.0
    %408 = vmatpush1.msra.mxu0 %v221
    %409 = vmatprep.subr.mxu0 0.0
    %410 = vmatpush1.msra.mxu0 %v222
    %411 = vmatprep.subr.mxu0 0.0
    %412 = vmatpush1.msra.mxu0 %v223
    %413 = vmatprep.subr.mxu0 0.0
    %414 = vmatpush1.msra.mxu0 %v224
    %415 = vmatprep.subr.mxu0 0.0
    %416 = vmatpush1.msra.mxu0 %v225
    %417 = vmatprep.subr.mxu0 0.0
    %418 = vmatpush1.msra.mxu0 %v226
    %419 = vmatprep.subr.mxu0 0.0
    %420 = vmatpush1.msra.mxu0 0.0
    %421 = vmatprep.subr.mxu0 0.0
    %422 = vmatpush1.msra.mxu0 0.0
    %423 = vmatprep.subr.mxu0 0.0
    %424 = vmatpush1.msra.mxu0 0.0
    %425 = vmatprep.subr.mxu0 0.0
    %426 = vmatpush1.msra.mxu0 0.0
    %427 = vmatprep.subr.mxu0 0.0
    %428 = vmatpush1.msra.mxu0 0.0
    %429 = vmatprep.subr.mxu0 0.0
    %430 = vmatpush1.msra.mxu0 0.0
    %431 = vmatprep.subr.mxu0 0.0
    %432 = vmatpush1.msra.mxu0 0.0
    %433 = vmatprep.subr.mxu0 0.0
    %434 = vmatpush1.msra.mxu0 0.0
    %435 = vmatprep.subr.mxu0 0.0
    %436 = vmatpush1.msra.mxu0 0.0
    %437 = vmatprep.subr.mxu0 0.0
    %438 = vmatpush1.msra.mxu0 0.0
    %439 = vmatprep.subr.mxu0 0.0
    %440 = vmatpush1.msra.mxu0 0.0
    %441 = vmatprep.subr.mxu0 0.0
    %442 = vmatpush1.msra.mxu0 0.0
    %443 = vmatprep.subr.mxu0 0.0
    %444 = vmatpush1.msra.mxu0 0.0
    %445 = vmatprep.subr.mxu0 0.0
    %446 = vmatpush1.msra.mxu0 0.0
    %447 = vmatprep.subr.mxu0 0.0
    %448 = vmatpush1.msra.mxu0 0.0
    %449 = vmatprep.subr.mxu0 0.0
    %450 = vmatpush1.msra.mxu0 0.0
    %451 = vmatprep.mubr.f32.mxu0 0.0
    %452 = vmatmul.mubr.f32.gmra.mrb[0].mxu0 %v105
    %v453 = vpop.f32.mrb[0].mxu0
    %v454 = vadd.f32 %v99, %v453
    %v455 = vpop.f32.mrb[0].mxu0
    %456 = vdwg.mxu0
    %s457 = scalar_lea.vmem [#allocation8], 128
    %v458 = vld [vmem:[%s457] sm:$0xff]
    %v459 = vld [vmem:[%s457 + $0x8] sm:$0xff]
    %v460 = vld [vmem:[%s457 + $0x10] sm:$0xff]
    %v461 = vld [vmem:[%s457 + $0x18] sm:$0xff]
    %v462 = vld [vmem:[%s457 + $0x20] sm:$0xff]
    %v463 = vld [vmem:[%s457 + $0x28] sm:$0xff]
    %v464 = vld [vmem:[%s457 + $0x30] sm:$0xff]
    %v465 = vld [vmem:[%s457 + $0x38] sm:$0xff]
    %v466 = vld [vmem:[%s457 + $0x40] sm:$0xff]
    %v467 = vld [vmem:[%s457 + $0x48] sm:$0xff]
    %v468 = vld [vmem:[%s457 + $0x50] sm:$0xff]
    %v469 = vld [vmem:[%s457 + $0x58] sm:$0xff]
    %v470 = vld [vmem:[%s457 + $0x60] sm:$0xff]
    %v471 = vld [vmem:[%s457 + $0x68] sm:$0xff]
    %v472 = vld [vmem:[%s457 + $0x70] sm:$0xff]
    %v473 = vld [vmem:[%s457 + $0x78] sm:$0xff]
    %474 = vmatprep.subr.mxu0 0.0
    %475 = vmatpush1.msra.mxu0 %v458
    %476 = vmatprep.subr.mxu0 0.0
    %477 = vmatpush1.msra.mxu0 %v459
    %478 = vmatprep.subr.mxu0 0.0
    %479 = vmatpush1.msra.mxu0 %v460
    %480 = vmatprep.subr.mxu0 0.0
    %481 = vmatpush1.msra.mxu0 %v461
    %482 = vmatprep.subr.mxu0 0.0
    %483 = vmatpush1.msra.mxu0 %v462
    %484 = vmatprep.subr.mxu0 0.0
    %485 = vmatpush1.msra.mxu0 %v463
    %486 = vmatprep.subr.mxu0 0.0
    %487 = vmatpush1.msra.mxu0 %v464
    %488 = vmatprep.subr.mxu0 0.0
    %489 = vmatpush1.msra.mxu0 %v465
    %490 = vmatprep.subr.mxu0 0.0
    %491 = vmatpush1.msra.mxu0 %v466
    %492 = vmatprep.subr.mxu0 0.0
    %493 = vmatpush1.msra.mxu0 %v467
    %494 = vmatprep.subr.mxu0 0.0
    %495 = vmatpush1.msra.mxu0 %v468
    %496 = vmatprep.subr.mxu0 0.0
    %497 = vmatpush1.msra.mxu0 %v469
    %498 = vmatprep.subr.mxu0 0.0
    %499 = vmatpush1.msra.mxu0 %v470
    %500 = vmatprep.subr.mxu0 0.0
    %501 = vmatpush1.msra.mxu0 %v471
    %502 = vmatprep.subr.mxu0 0.0
    %503 = vmatpush1.msra.mxu0 %v472
    %504 = vmatprep.subr.mxu0 0.0
    %505 = vmatpush1.msra.mxu0 %v473
    %506 = vmatprep.subr.mxu0 0.0
    %507 = vmatpush1.msra.mxu0 0.0
    %508 = vmatprep.subr.mxu0 0.0
    %509 = vmatpush1.msra.mxu0 0.0
    %510 = vmatprep.subr.mxu0 0.0
    %511 = vmatpush1.msra.mxu0 0.0
    %512 = vmatprep.subr.mxu0 0.0
    %513 = vmatpush1.msra.mxu0 0.0
    %514 = vmatprep.subr.mxu0 0.0
    %515 = vmatpush1.msra.mxu0 0.0
    %516 = vmatprep.subr.mxu0 0.0
    %517 = vmatpush1.msra.mxu0 0.0
    %518 = vmatprep.subr.mxu0 0.0
    %519 = vmatpush1.msra.mxu0 0.0
    %520 = vmatprep.subr.mxu0 0.0
    %521 = vmatpush1.msra.mxu0 0.0
    %522 = vmatprep.subr.mxu0 0.0
    %523 = vmatpush1.msra.mxu0 0.0
    %524 = vmatprep.subr.mxu0 0.0
    %525 = vmatpush1.msra.mxu0 0.0
    %526 = vmatprep.subr.mxu0 0.0
    %527 = vmatpush1.msra.mxu0 0.0
    %528 = vmatprep.subr.mxu0 0.0
    %529 = vmatpush1.msra.mxu0 0.0
    %530 = vmatprep.subr.mxu0 0.0
    %531 = vmatpush1.msra.mxu0 0.0
    %532 = vmatprep.subr.mxu0 0.0
    %533 = vmatpush1.msra.mxu0 0.0
    %534 = vmatprep.subr.mxu0 0.0
    %535 = vmatpush1.msra.mxu0 0.0
    %536 = vmatprep.subr.mxu0 0.0
    %537 = vmatpush1.msra.mxu0 0.0
    %538 = vmatprep.mubr.f32.mxu0 0.0
    %539 = vmatmul.mubr.f32.gmra.mrb[0].mxu0 %v386
    %v540 = vpop.f32.mrb[0].mxu0
    %v541 = vadd.f32 0.0, %v540
    %v542 = vpop.f32.mrb[0].mxu0
    %543 = vdwg.mxu0
    %v544 = vadd.f32 %v454, %v541
    %v545 = vmax.f32 %v544, 0.0
    %s546 = scalar_lea.vmem [#allocation3], 8
    %v547 = vld [vmem:[%s546] sm:$0xff]
    %548 = vmatprep.subr.mxu0 0.0
    %549 = vmatpush1.msra.mxu0 %v107
    %550 = vmatprep.subr.mxu0 0.0
    %551 = vmatpush1.msra.mxu0 %v108
    %552 = vmatprep.subr.mxu0 0.0
    %553 = vmatpush1.msra.mxu0 %v109
    %554 = vmatprep.subr.mxu0 0.0
    %555 = vmatpush1.msra.mxu0 %v110
    %556 = vmatprep.subr.mxu0 0.0
    %557 = vmatpush1.msra.mxu0 %v111
    %558 = vmatprep.subr.mxu0 0.0
    %559 = vmatpush1.msra.mxu0 %v112
    %560 = vmatprep.subr.mxu0 0.0
    %561 = vmatpush1.msra.mxu0 %v113
    %562 = vmatprep.subr.mxu0 0.0
    %563 = vmatpush1.msra.mxu0 %v114
    %564 = vmatprep.subr.mxu0 0.0
    %565 = vmatpush1.msra.mxu0 %v115
    %566 = vmatprep.subr.mxu0 0.0
    %567 = vmatpush1.msra.mxu0 %v116
    %568 = vmatprep.subr.mxu0 0.0
    %569 = vmatpush1.msra.mxu0 %v117
    %570 = vmatprep.subr.mxu0 0.0
    %571 = vmatpush1.msra.mxu0 %v118
    %572 = vmatprep.subr.mxu0 0.0
    %573 = vmatpush1.msra.mxu0 %v119
    %574 = vmatprep.subr.mxu0 0.0
    %575 = vmatpush1.msra.mxu0 %v120
    %576 = vmatprep.subr.mxu0 0.0
    %577 = vmatpush1.msra.mxu0 %v121
    %578 = vmatprep.subr.mxu0 0.0
    %579 = vmatpush1.msra.mxu0 %v122
    %580 = vmatprep.subr.mxu0 0.0
    %581 = vmatpush1.msra.mxu0 0.0
    %582 = vmatprep.subr.mxu0 0.0
    %583 = vmatpush1.msra.mxu0 0.0
    %584 = vmatprep.subr.mxu0 0.0
    %585 = vmatpush1.msra.mxu0 0.0
    %586 = vmatprep.subr.mxu0 0.0
    %587 = vmatpush1.msra.mxu0 0.0
    %588 = vmatprep.subr.mxu0 0.0
    %589 = vmatpush1.msra.mxu0 0.0
    %590 = vmatprep.subr.mxu0 0.0
    %591 = vmatpush1.msra.mxu0 0.0
    %592 = vmatprep.subr.mxu0 0.0
    %593 = vmatpush1.msra.mxu0 0.0
    %594 = vmatprep.subr.mxu0 0.0
    %595 = vmatpush1.msra.mxu0 0.0
    %596 = vmatprep.subr.mxu0 0.0
    %597 = vmatpush1.msra.mxu0 0.0
    %598 = vmatprep.subr.mxu0 0.0
    %599 = vmatpush1.msra.mxu0 0.0
    %600 = vmatprep.subr.mxu0 0.0
    %601 = vmatpush1.msra.mxu0 0.0
    %602 = vmatprep.subr.mxu0 0.0
    %603 = vmatpush1.msra.mxu0 0.0
    %604 = vmatprep.subr.mxu0 0.0
    %605 = vmatpush1.msra.mxu0 0.0
    %606 = vmatprep.subr.mxu0 0.0
    %607 = vmatpush1.msra.mxu0 0.0
    %608 = vmatprep.subr.mxu0 0.0
    %609 = vmatpush1.msra.mxu0 0.0
    %610 = vmatprep.subr.mxu0 0.0
    %611 = vmatpush1.msra.mxu0 0.0
    %612 = vmatprep.mubr.f32.mxu0 0.0
    %613 = vmatmul.mubr.f32.gmra.mrb[0].mxu0 %v228
    %v614 = vpop.f32.mrb[0].mxu0
    %v615 = vadd.f32 0.0, %v614
    %v616 = vpop.f32.mrb[0].mxu0
    %617 = vdwg.mxu0
    %v618 = vadd.f32 %v547, %v615
    %v619 = vmax.f32 %v618, 0.0
    %620 = vmatprep.subr.mxu0 0.0
    %621 = vmatpush1.msra.mxu0 %v194
    %622 = vmatprep.subr.mxu0 0.0
    %623 = vmatpush1.msra.mxu0 %v195
    %624 = vmatprep.subr.mxu0 0.0
    %625 = vmatpush1.msra.mxu0 %v196
    %626 = vmatprep.subr.mxu0 0.0
    %627 = vmatpush1.msra.mxu0 %v197
    %628 = vmatprep.subr.mxu0 0.0
    %629 = vmatpush1.msra.mxu0 %v198
    %630 = vmatprep.subr.mxu0 0.0
    %631 = vmatpush1.msra.mxu0 %v199
    %632 = vmatprep.subr.mxu0 0.0
    %633 = vmatpush1.msra.mxu0 %v200
    %634 = vmatprep.subr.mxu0 0.0
    %635 = vmatpush1.msra.mxu0 %v201
    %636 = vmatprep.subr.mxu0 0.0
    %637 = vmatpush1.msra.mxu0 %v202
    %638 = vmatprep.subr.mxu0 0.0
    %639 = vmatpush1.msra.mxu0 %v203
    %640 = vmatprep.subr.mxu0 0.0
    %641 = vmatpush1.msra.mxu0 %v204
    %642 = vmatprep.subr.mxu0 0.0
    %643 = vmatpush1.msra.mxu0 %v205
    %644 = vmatprep.subr.mxu0 0.0
    %645 = vmatpush1.msra.mxu0 %v206
    %646 = vmatprep.subr.mxu0 0.0
    %647 = vmatpush1.msra.mxu0 %v207
    %648 = vmatprep.subr.mxu0 0.0
    %649 = vmatpush1.msra.mxu0 %v208
    %650 = vmatprep.subr.mxu0 0.0
    %651 = vmatpush1.msra.mxu0 %v209
    %652 = vmatprep.subr.mxu0 0.0
    %653 = vmatpush1.msra.mxu0 0.0
    %654 = vmatprep.subr.mxu0 0.0
    %655 = vmatpush1.msra.mxu0 0.0
    %656 = vmatprep.subr.mxu0 0.0
    %657 = vmatpush1.msra.mxu0 0.0
    %658 = vmatprep.subr.mxu0 0.0
    %659 = vmatpush1.msra.mxu0 0.0
    %660 = vmatprep.subr.mxu0 0.0
    %661 = vmatpush1.msra.mxu0 0.0
    %662 = vmatprep.subr.mxu0 0.0
    %663 = vmatpush1.msra.mxu0 0.0
    %664 = vmatprep.subr.mxu0 0.0
    %665 = vmatpush1.msra.mxu0 0.0
    %666 = vmatprep.subr.mxu0 0.0
    %667 = vmatpush1.msra.mxu0 0.0
    %668 = vmatprep.subr.mxu0 0.0
    %669 = vmatpush1.msra.mxu0 0.0
    %670 = vmatprep.subr.mxu0 0.0
    %671 = vmatpush1.msra.mxu0 0.0
    %672 = vmatprep.subr.mxu0 0.0
    %673 = vmatpush1.msra.mxu0 0.0
    %674 = vmatprep.subr.mxu0 0.0
    %675 = vmatpush1.msra.mxu0 0.0
    %676 = vmatprep.subr.mxu0 0.0
    %677 = vmatpush1.msra.mxu0 0.0
    %678 = vmatprep.subr.mxu0 0.0
    %679 = vmatpush1.msra.mxu0 0.0
    %680 = vmatprep.subr.mxu0 0.0
    %681 = vmatpush1.msra.mxu0 0.0
    %682 = vmatprep.subr.mxu0 0.0
    %683 = vmatpush1.msra.mxu0 0.0
    %684 = vmatprep.mubr.f32.mxu0 0.0
    %685 = vmatmul.mubr.f32.gmra.mrb[0].mxu0 %v386
    %v686 = vpop.f32.mrb[0].mxu0
    %v687 = vadd.f32 %v91, %v686
    %v688 = vpop.f32.mrb[0].mxu0
    %689 = vdwg.mxu0
    %690 = vmatprep.subr.mxu0 0.0
    %691 = vmatpush1.msra.mxu0 %v299
    %692 = vmatprep.subr.mxu0 0.0
    %693 = vmatpush1.msra.mxu0 %v300
    %694 = vmatprep.subr.mxu0 0.0
    %695 = vmatpush1.msra.mxu0 %v301
    %696 = vmatprep.subr.mxu0 0.0
    %697 = vmatpush1.msra.mxu0 %v302
    %698 = vmatprep.subr.mxu0 0.0
    %699 = vmatpush1.msra.mxu0 %v303
    %700 = vmatprep.subr.mxu0 0.0
    %701 = vmatpush1.msra.mxu0 %v304
    %702 = vmatprep.subr.mxu0 0.0
    %703 = vmatpush1.msra.mxu0 %v305
    %704 = vmatprep.subr.mxu0 0.0
    %705 = vmatpush1.msra.mxu0 %v306
    %706 = vmatprep.subr.mxu0 0.0
    %707 = vmatpush1.msra.mxu0 %v307
    %708 = vmatprep.subr.mxu0 0.0
    %709 = vmatpush1.msra.mxu0 %v308
    %710 = vmatprep.subr.mxu0 0.0
    %711 = vmatpush1.msra.mxu0 %v309
    %712 = vmatprep.subr.mxu0 0.0
    %713 = vmatpush1.msra.mxu0 %v310
    %714 = vmatprep.subr.mxu0 0.0
    %715 = vmatpush1.msra.mxu0 %v311
    %716 = vmatprep.subr.mxu0 0.0
    %717 = vmatpush1.msra.mxu0 %v312
    %718 = vmatprep.subr.mxu0 0.0
    %719 = vmatpush1.msra.mxu0 %v313
    %720 = vmatprep.subr.mxu0 0.0
    %721 = vmatpush1.msra.mxu0 %v314
    %722 = vmatprep.subr.mxu0 0.0
    %723 = vmatpush1.msra.mxu0 0.0
    %724 = vmatprep.subr.mxu0 0.0
    %725 = vmatpush1.msra.mxu0 0.0
    %726 = vmatprep.subr.mxu0 0.0
    %727 = vmatpush1.msra.mxu0 0.0
    %728 = vmatprep.subr.mxu0 0.0
    %729 = vmatpush1.msra.mxu0 0.0
    %730 = vmatprep.subr.mxu0 0.0
    %731 = vmatpush1.msra.mxu0 0.0
    %732 = vmatprep.subr.mxu0 0.0
    %733 = vmatpush1.msra.mxu0 0.0
    %734 = vmatprep.subr.mxu0 0.0
    %735 = vmatpush1.msra.mxu0 0.0
    %736 = vmatprep.subr.mxu0 0.0
    %737 = vmatpush1.msra.mxu0 0.0
    %738 = vmatprep.subr.mxu0 0.0
    %739 = vmatpush1.msra.mxu0 0.0
    %740 = vmatprep.subr.mxu0 0.0
    %741 = vmatpush1.msra.mxu0 0.0
    %742 = vmatprep.subr.mxu0 0.0
    %743 = vmatpush1.msra.mxu0 0.0
    %744 = vmatprep.subr.mxu0 0.0
    %745 = vmatpush1.msra.mxu0 0.0
    %746 = vmatprep.subr.mxu0 0.0
    %747 = vmatpush1.msra.mxu0 0.0
    %748 = vmatprep.subr.mxu0 0.0
    %749 = vmatpush1.msra.mxu0 0.0
    %750 = vmatprep.subr.mxu0 0.0
    %751 = vmatpush1.msra.mxu0 0.0
    %752 = vmatprep.subr.mxu0 0.0
    %753 = vmatpush1.msra.mxu0 0.0
    %754 = vmatprep.mubr.f32.mxu0 0.0
    %755 = vmatmul.mubr.f32.gmra.mrb[0].mxu0 %v619
    %v756 = vpop.f32.mrb[0].mxu0
    %v757 = vadd.f32 0.0, %v756
    %v758 = vpop.f32.mrb[0].mxu0
    %759 = vdwg.mxu0
    %v760 = vadd.f32 %v687, %v757
    %v761 = vmax.f32 %v760, 0.0
    %762 = vmatprep.subr.mxu0 0.0
    %763 = vmatpush1.msra.mxu0 %v211
    %764 = vmatprep.subr.mxu0 0.0
    %765 = vmatpush1.msra.mxu0 %v212
    %766 = vmatprep.subr.mxu0 0.0
    %767 = vmatpush1.msra.mxu0 %v213
    %768 = vmatprep.subr.mxu0 0.0
    %769 = vmatpush1.msra.mxu0 %v214
    %770 = vmatprep.subr.mxu0 0.0
    %771 = vmatpush1.msra.mxu0 %v215
    %772 = vmatprep.subr.mxu0 0.0
    %773 = vmatpush1.msra.mxu0 %v216
    %774 = vmatprep.subr.mxu0 0.0
    %775 = vmatpush1.msra.mxu0 %v217
    %776 = vmatprep.subr.mxu0 0.0
    %777 = vmatpush1.msra.mxu0 %v218
    %778 = vmatprep.subr.mxu0 0.0
    %779 = vmatpush1.msra.mxu0 %v219
    %780 = vmatprep.subr.mxu0 0.0
    %781 = vmatpush1.msra.mxu0 %v220
    %782 = vmatprep.subr.mxu0 0.0
    %783 = vmatpush1.msra.mxu0 %v221
    %784 = vmatprep.subr.mxu0 0.0
    %785 = vmatpush1.msra.mxu0 %v222
    %786 = vmatprep.subr.mxu0 0.0
    %787 = vmatpush1.msra.mxu0 %v223
    %788 = vmatprep.subr.mxu0 0.0
    %789 = vmatpush1.msra.mxu0 %v224
    %790 = vmatprep.subr.mxu0 0.0
    %791 = vmatpush1.msra.mxu0 %v225
    %792 = vmatprep.subr.mxu0 0.0
    %793 = vmatpush1.msra.mxu0 %v226
    %794 = vmatprep.subr.mxu0 0.0
    %795 = vmatpush1.msra.mxu0 0.0
    %796 = vmatprep.subr.mxu0 0.0
    %797 = vmatpush1.msra.mxu0 0.0
    %798 = vmatprep.subr.mxu0 0.0
    %799 = vmatpush1.msra.mxu0 0.0
    %800 = vmatprep.subr.mxu0 0.0
    %801 = vmatpush1.msra.mxu0 0.0
    %802 = vmatprep.subr.mxu0 0.0
    %803 = vmatpush1.msra.mxu0 0.0
    %804 = vmatprep.subr.mxu0 0.0
    %805 = vmatpush1.msra.mxu0 0.0
    %806 = vmatprep.subr.mxu0 0.0
    %807 = vmatpush1.msra.mxu0 0.0
    %808 = vmatprep.subr.mxu0 0.0
    %809 = vmatpush1.msra.mxu0 0.0
    %810 = vmatprep.subr.mxu0 0.0
    %811 = vmatpush1.msra.mxu0 0.0
    %812 = vmatprep.subr.mxu0 0.0
    %813 = vmatpush1.msra.mxu0 0.0
    %814 = vmatprep.subr.mxu0 0.0
    %815 = vmatpush1.msra.mxu0 0.0
    %816 = vmatprep.subr.mxu0 0.0
    %817 = vmatpush1.msra.mxu0 0.0
    %818 = vmatprep.subr.mxu0 0.0
    %819 = vmatpush1.msra.mxu0 0.0
    %820 = vmatprep.subr.mxu0 0.0
    %821 = vmatpush1.msra.mxu0 0.0
    %822 = vmatprep.subr.mxu0 0.0
    %823 = vmatpush1.msra.mxu0 0.0
    %824 = vmatprep.subr.mxu0 0.0
    %825 = vmatpush1.msra.mxu0 0.0
    %826 = vmatprep.mubr.f32.mxu0 0.0
    %827 = vmatmul.mubr.f32.gmra.mrb[0].mxu0 %v545
    %v828 = vpop.f32.mrb[0].mxu0
    %v829 = vadd.f32 %v99, %v828
    %v830 = vpop.f32.mrb[0].mxu0
    %831 = vdwg.mxu0
    %832 = vmatprep.subr.mxu0 0.0
    %833 = vmatpush1.msra.mxu0 %v458
    %834 = vmatprep.subr.mxu0 0.0
    %835 = vmatpush1.msra.mxu0 %v459
    %836 = vmatprep.subr.mxu0 0.0
    %837 = vmatpush1.msra.mxu0 %v460
    %838 = vmatprep.subr.mxu0 0.0
    %839 = vmatpush1.msra.mxu0 %v461
    %840 = vmatprep.subr.mxu0 0.0
    %841 = vmatpush1.msra.mxu0 %v462
    %842 = vmatprep.subr.mxu0 0.0
    %843 = vmatpush1.msra.mxu0 %v463
    %844 = vmatprep.subr.mxu0 0.0
    %845 = vmatpush1.msra.mxu0 %v464
    %846 = vmatprep.subr.mxu0 0.0
    %847 = vmatpush1.msra.mxu0 %v465
    %848 = vmatprep.subr.mxu0 0.0
    %849 = vmatpush1.msra.mxu0 %v466
    %850 = vmatprep.subr.mxu0 0.0
    %851 = vmatpush1.msra.mxu0 %v467
    %852 = vmatprep.subr.mxu0 0.0
    %853 = vmatpush1.msra.mxu0 %v468
    %854 = vmatprep.subr.mxu0 0.0
    %855 = vmatpush1.msra.mxu0 %v469
    %856 = vmatprep.subr.mxu0 0.0
    %857 = vmatpush1.msra.mxu0 %v470
    %858 = vmatprep.subr.mxu0 0.0
    %859 = vmatpush1.msra.mxu0 %v471
    %860 = vmatprep.subr.mxu0 0.0
    %861 = vmatpush1.msra.mxu0 %v472
    %862 = vmatprep.subr.mxu0 0.0
    %863 = vmatpush1.msra.mxu0 %v473
    %864 = vmatprep.subr.mxu0 0.0
    %865 = vmatpush1.msra.mxu0 0.0
    %866 = vmatprep.subr.mxu0 0.0
    %867 = vmatpush1.msra.mxu0 0.0
    %868 = vmatprep.subr.mxu0 0.0
    %869 = vmatpush1.msra.mxu0 0.0
    %870 = vmatprep.subr.mxu0 0.0
    %871 = vmatpush1.msra.mxu0 0.0
    %872 = vmatprep.subr.mxu0 0.0
    %873 = vmatpush1.msra.mxu0 0.0
    %874 = vmatprep.subr.mxu0 0.0
    %875 = vmatpush1.msra.mxu0 0.0
    %876 = vmatprep.subr.mxu0 0.0
    %877 = vmatpush1.msra.mxu0 0.0
    %878 = vmatprep.subr.mxu0 0.0
    %879 = vmatpush1.msra.mxu0 0.0
    %880 = vmatprep.subr.mxu0 0.0
    %881 = vmatpush1.msra.mxu0 0.0
    %882 = vmatprep.subr.mxu0 0.0
    %883 = vmatpush1.msra.mxu0 0.0
    %884 = vmatprep.subr.mxu0 0.0
    %885 = vmatpush1.msra.mxu0 0.0
    %886 = vmatprep.subr.mxu0 0.0
    %887 = vmatpush1.msra.mxu0 0.0
    %888 = vmatprep.subr.mxu0 0.0
    %889 = vmatpush1.msra.mxu0 0.0
    %890 = vmatprep.subr.mxu0 0.0
    %891 = vmatpush1.msra.mxu0 0.0
    %892 = vmatprep.subr.mxu0 0.0
    %893 = vmatpush1.msra.mxu0 0.0
    %894 = vmatprep.subr.mxu0 0.0
    %895 = vmatpush1.msra.mxu0 0.0
    %896 = vmatprep.mubr.f32.mxu0 0.0
    %897 = vmatmul.mubr.f32.gmra.mrb[0].mxu0 %v761
    %v898 = vpop.f32.mrb[0].mxu0
    %v899 = vadd.f32 0.0, %v898
    %v900 = vpop.f32.mrb[0].mxu0
    %901 = vdwg.mxu0
    %v902 = vadd.f32 %v829, %v899
    %v903 = vmax.f32 %v902, 0.0
    %s904 = scalar_lea.vmem [#allocation3], 16
    %v905 = vld [vmem:[%s904] sm:$0xff]
    %906 = vmatprep.subr.mxu0 0.0
    %907 = vmatpush1.msra.mxu0 %v107
    %908 = vmatprep.subr.mxu0 0.0
    %909 = vmatpush1.msra.mxu0 %v108
    %910 = vmatprep.subr.mxu0 0.0
    %911 = vmatpush1.msra.mxu0 %v109
    %912 = vmatprep.subr.mxu0 0.0
    %913 = vmatpush1.msra.mxu0 %v110
    %914 = vmatprep.subr.mxu0 0.0
    %915 = vmatpush1.msra.mxu0 %v111
    %916 = vmatprep.subr.mxu0 0.0
    %917 = vmatpush1.msra.mxu0 %v112
    %918 = vmatprep.subr.mxu0 0.0
    %919 = vmatpush1.msra.mxu0 %v113
    %920 = vmatprep.subr.mxu0 0.0
    %921 = vmatpush1.msra.mxu0 %v114
    %922 = vmatprep.subr.mxu0 0.0
    %923 = vmatpush1.msra.mxu0 %v115
    %924 = vmatprep.subr.mxu0 0.0
    %925 = vmatpush1.msra.mxu0 %v116
    %926 = vmatprep.subr.mxu0 0.0
    %927 = vmatpush1.msra.mxu0 %v117
    %928 = vmatprep.subr.mxu0 0.0
    %929 = vmatpush1.msra.mxu0 %v118
    %930 = vmatprep.subr.mxu0 0.0
    %931 = vmatpush1.msra.mxu0 %v119
    %932 = vmatprep.subr.mxu0 0.0
    %933 = vmatpush1.msra.mxu0 %v120
    %934 = vmatprep.subr.mxu0 0.0
    %935 = vmatpush1.msra.mxu0 %v121
    %936 = vmatprep.subr.mxu0 0.0
    %937 = vmatpush1.msra.mxu0 %v122
    %938 = vmatprep.subr.mxu0 0.0
    %939 = vmatpush1.msra.mxu0 0.0
    %940 = vmatprep.subr.mxu0 0.0
    %941 = vmatpush1.msra.mxu0 0.0
    %942 = vmatprep.subr.mxu0 0.0
    %943 = vmatpush1.msra.mxu0 0.0
    %944 = vmatprep.subr.mxu0 0.0
    %945 = vmatpush1.msra.mxu0 0.0
    %946 = vmatprep.subr.mxu0 0.0
    %947 = vmatpush1.msra.mxu0 0.0
    %948 = vmatprep.subr.mxu0 0.0
    %949 = vmatpush1.msra.mxu0 0.0
    %950 = vmatprep.subr.mxu0 0.0
    %951 = vmatpush1.msra.mxu0 0.0
    %952 = vmatprep.subr.mxu0 0.0
    %953 = vmatpush1.msra.mxu0 0.0
    %954 = vmatprep.subr.mxu0 0.0
    %955 = vmatpush1.msra.mxu0 0.0
    %956 = vmatprep.subr.mxu0 0.0
    %957 = vmatpush1.msra.mxu0 0.0
    %958 = vmatprep.subr.mxu0 0.0
    %959 = vmatpush1.msra.mxu0 0.0
    %960 = vmatprep.subr.mxu0 0.0
    %961 = vmatpush1.msra.mxu0 0.0
    %962 = vmatprep.subr.mxu0 0.0
    %963 = vmatpush1.msra.mxu0 0.0
    %964 = vmatprep.subr.mxu0 0.0
    %965 = vmatpush1.msra.mxu0 0.0
    %966 = vmatprep.subr.mxu0 0.0
    %967 = vmatpush1.msra.mxu0 0.0
    %968 = vmatprep.subr.mxu0 0.0
    %969 = vmatpush1.msra.mxu0 0.0
    %970 = vmatprep.mubr.f32.mxu0 0.0
    %971 = vmatmul.mubr.f32.gmra.mrb[0].mxu0 %v619
    %v972 = vpop.f32.mrb[0].mxu0
    %v973 = vadd.f32 0.0, %v972
    %v974 = vpop.f32.mrb[0].mxu0
    %975 = vdwg.mxu0
    %v976 = vadd.f32 %v905, %v973
    %v977 = vmax.f32 %v976, 0.0
    %978 = vmatprep.subr.mxu0 0.0
    %979 = vmatpush1.msra.mxu0 %v194
    %980 = vmatprep.subr.mxu0 0.0
    %981 = vmatpush1.msra.mxu0 %v195
    %982 = vmatprep.subr.mxu0 0.0
    %983 = vmatpush1.msra.mxu0 %v196
    %984 = vmatprep.subr.mxu0 0.0
    %985 = vmatpush1.msra.mxu0 %v197
    %986 = vmatprep.subr.mxu0 0.0
    %987 = vmatpush1.msra.mxu0 %v198
    %988 = vmatprep.subr.mxu0 0.0
    %989 = vmatpush1.msra.mxu0 %v199
    %990 = vmatprep.subr.mxu0 0.0
    %991 = vmatpush1.msra.mxu0 %v200
    %992 = vmatprep.subr.mxu0 0.0
    %993 = vmatpush1.msra.mxu0 %v201
    %994 = vmatprep.subr.mxu0 0.0
    %995 = vmatpush1.msra.mxu0 %v202
    %996 = vmatprep.subr.mxu0 0.0
    %997 = vmatpush1.msra.mxu0 %v203
    %998 = vmatprep.subr.mxu0 0.0
    %999 = vmatpush1.msra.mxu0 %v204
    %1000 = vmatprep.subr.mxu0 0.0
    %1001 = vmatpush1.msra.mxu0 %v205
    %1002 = vmatprep.subr.mxu0 0.0
    %1003 = vmatpush1.msra.mxu0 %v206
    %1004 = vmatprep.subr.mxu0 0.0
    %1005 = vmatpush1.msra.mxu0 %v207
    %1006 = vmatprep.subr.mxu0 0.0
    %1007 = vmatpush1.msra.mxu0 %v208
    %1008 = vmatprep.subr.mxu0 0.0
    %1009 = vmatpush1.msra.mxu0 %v209
    %1010 = vmatprep.subr.mxu0 0.0
    %1011 = vmatpush1.msra.mxu0 0.0
    %1012 = vmatprep.subr.mxu0 0.0
    %1013 = vmatpush1.msra.mxu0 0.0
    %1014 = vmatprep.subr.mxu0 0.0
    %1015 = vmatpush1.msra.mxu0 0.0
    %1016 = vmatprep.subr.mxu0 0.0
    %1017 = vmatpush1.msra.mxu0 0.0
    %1018 = vmatprep.subr.mxu0 0.0
    %1019 = vmatpush1.msra.mxu0 0.0
    %1020 = vmatprep.subr.mxu0 0.0
    %1021 = vmatpush1.msra.mxu0 0.0
    %1022 = vmatprep.subr.mxu0 0.0
    %1023 = vmatpush1.msra.mxu0 0.0
    %1024 = vmatprep.subr.mxu0 0.0
    %1025 = vmatpush1.msra.mxu0 0.0
    %1026 = vmatprep.subr.mxu0 0.0
    %1027 = vmatpush1.msra.mxu0 0.0
    %1028 = vmatprep.subr.mxu0 0.0
    %1029 = vmatpush1.msra.mxu0 0.0
    %1030 = vmatprep.subr.mxu0 0.0
    %1031 = vmatpush1.msra.mxu0 0.0
    %1032 = vmatprep.subr.mxu0 0.0
    %1033 = vmatpush1.msra.mxu0 0.0
    %1034 = vmatprep.subr.mxu0 0.0
    %1035 = vmatpush1.msra.mxu0 0.0
    %1036 = vmatprep.subr.mxu0 0.0
    %1037 = vmatpush1.msra.mxu0 0.0
    %1038 = vmatprep.subr.mxu0 0.0
    %1039 = vmatpush1.msra.mxu0 0.0
    %1040 = vmatprep.subr.mxu0 0.0
    %1041 = vmatpush1.msra.mxu0 0.0
    %1042 = vmatprep.mubr.f32.mxu0 0.0
    %1043 = vmatmul.mubr.f32.gmra.mrb[0].mxu0 %v761
    %v1044 = vpop.f32.mrb[0].mxu0
    %v1045 = vadd.f32 %v91, %v1044
    %v1046 = vpop.f32.mrb[0].mxu0
    %1047 = vdwg.mxu0
    %1048 = vmatprep.subr.mxu0 0.0
    %1049 = vmatpush1.msra.mxu0 %v299
    %1050 = vmatprep.subr.mxu0 0.0
    %1051 = vmatpush1.msra.mxu0 %v300
    %1052 = vmatprep.subr.mxu0 0.0
    %1053 = vmatpush1.msra.mxu0 %v301
    %1054 = vmatprep.subr.mxu0 0.0
    %1055 = vmatpush1.msra.mxu0 %v302
    %1056 = vmatprep.subr.mxu0 0.0
    %1057 = vmatpush1.msra.mxu0 %v303
    %1058 = vmatprep.subr.mxu0 0.0
    %1059 = vmatpush1.msra.mxu0 %v304
    %1060 = vmatprep.subr.mxu0 0.0
    %1061 = vmatpush1.msra.mxu0 %v305
    %1062 = vmatprep.subr.mxu0 0.0
    %1063 = vmatpush1.msra.mxu0 %v306
    %1064 = vmatprep.subr.mxu0 0.0
    %1065 = vmatpush1.msra.mxu0 %v307
    %1066 = vmatprep.subr.mxu0 0.0
    %1067 = vmatpush1.msra.mxu0 %v308
    %1068 = vmatprep.subr.mxu0 0.0
    %1069 = vmatpush1.msra.mxu0 %v309
    %1070 = vmatprep.subr.mxu0 0.0
    %1071 = vmatpush1.msra.mxu0 %v310
    %1072 = vmatprep.subr.mxu0 0.0
    %1073 = vmatpush1.msra.mxu0 %v311
    %1074 = vmatprep.subr.mxu0 0.0
    %1075 = vmatpush1.msra.mxu0 %v312
    %1076 = vmatprep.subr.mxu0 0.0
    %1077 = vmatpush1.msra.mxu0 %v313
    %1078 = vmatprep.subr.mxu0 0.0
    %1079 = vmatpush1.msra.mxu0 %v314
    %1080 = vmatprep.subr.mxu0 0.0
    %1081 = vmatpush1.msra.mxu0 0.0
    %1082 = vmatprep.subr.mxu0 0.0
    %1083 = vmatpush1.msra.mxu0 0.0
    %1084 = vmatprep.subr.mxu0 0.0
    %1085 = vmatpush1.msra.mxu0 0.0
    %1086 = vmatprep.subr.mxu0 0.0
    %1087 = vmatpush1.msra.mxu0 0.0
    %1088 = vmatprep.subr.mxu0 0.0
    %1089 = vmatpush1.msra.mxu0 0.0
    %1090 = vmatprep.subr.mxu0 0.0
    %1091 = vmatpush1.msra.mxu0 0.0
    %1092 = vmatprep.subr.mxu0 0.0
    %1093 = vmatpush1.msra.mxu0 0.0
    %1094 = vmatprep.subr.mxu0 0.0
    %1095 = vmatpush1.msra.mxu0 0.0
    %1096 = vmatprep.subr.mxu0 0.0
    %1097 = vmatpush1.msra.mxu0 0.0
    %1098 = vmatprep.subr.mxu0 0.0
    %1099 = vmatpush1.msra.mxu0 0.0
    %1100 = vmatprep.subr.mxu0 0.0
    %1101 = vmatpush1.msra.mxu0 0.0
    %1102 = vmatprep.subr.mxu0 0.0
    %1103 = vmatpush1.msra.mxu0 0.0
    %1104 = vmatprep.subr.mxu0 0.0
    %1105 = vmatpush1.msra.mxu0 0.0
    %1106 = vmatprep.subr.mxu0 0.0
    %1107 = vmatpush1.msra.mxu0 0.0
    %1108 = vmatprep.subr.mxu0 0.0
    %1109 = vmatpush1.msra.mxu0 0.0
    %1110 = vmatprep.subr.mxu0 0.0
    %1111 = vmatpush1.msra.mxu0 0.0
    %1112 = vmatprep.mubr.f32.mxu0 0.0
    %1113 = vmatmul.mubr.f32.gmra.mrb[0].mxu0 %v977
    %v1114 = vpop.f32.mrb[0].mxu0
    %v1115 = vadd.f32 0.0, %v1114
    %v1116 = vpop.f32.mrb[0].mxu0
    %1117 = vdwg.mxu0
    %v1118 = vadd.f32 %v1045, %v1115
    %v1119 = vmax.f32 %v1118, 0.0
    %1120 = vmatprep.subr.mxu0 0.0
    %1121 = vmatpush1.msra.mxu0 %v211
    %1122 = vmatprep.subr.mxu0 0.0
    %1123 = vmatpush1.msra.mxu0 %v212
    %1124 = vmatprep.subr.mxu0 0.0
    %1125 = vmatpush1.msra.mxu0 %v213
    %1126 = vmatprep.subr.mxu0 0.0
    %1127 = vmatpush1.msra.mxu0 %v214
    %1128 = vmatprep.subr.mxu0 0.0
    %1129 = vmatpush1.msra.mxu0 %v215
    %1130 = vmatprep.subr.mxu0 0.0
    %1131 = vmatpush1.msra.mxu0 %v216
    %1132 = vmatprep.subr.mxu0 0.0
    %1133 = vmatpush1.msra.mxu0 %v217
    %1134 = vmatprep.subr.mxu0 0.0
    %1135 = vmatpush1.msra.mxu0 %v218
    %1136 = vmatprep.subr.mxu0 0.0
    %1137 = vmatpush1.msra.mxu0 %v219
    %1138 = vmatprep.subr.mxu0 0.0
    %1139 = vmatpush1.msra.mxu0 %v220
    %1140 = vmatprep.subr.mxu0 0.0
    %1141 = vmatpush1.msra.mxu0 %v221
    %1142 = vmatprep.subr.mxu0 0.0
    %1143 = vmatpush1.msra.mxu0 %v222
    %1144 = vmatprep.subr.mxu0 0.0
    %1145 = vmatpush1.msra.mxu0 %v223
    %1146 = vmatprep.subr.mxu0 0.0
    %1147 = vmatpush1.msra.mxu0 %v224
    %1148 = vmatprep.subr.mxu0 0.0
    %1149 = vmatpush1.msra.mxu0 %v225
    %1150 = vmatprep.subr.mxu0 0.0
    %1151 = vmatpush1.msra.mxu0 %v226
    %1152 = vmatprep.subr.mxu0 0.0
    %1153 = vmatpush1.msra.mxu0 0.0
    %1154 = vmatprep.subr.mxu0 0.0
    %1155 = vmatpush1.msra.mxu0 0.0
    %1156 = vmatprep.subr.mxu0 0.0
    %1157 = vmatpush1.msra.mxu0 0.0
    %1158 = vmatprep.subr.mxu0 0.0
    %1159 = vmatpush1.msra.mxu0 0.0
    %1160 = vmatprep.subr.mxu0 0.0
    %1161 = vmatpush1.msra.mxu0 0.0
    %1162 = vmatprep.subr.mxu0 0.0
    %1163 = vmatpush1.msra.mxu0 0.0
    %1164 = vmatprep.subr.mxu0 0.0
    %1165 = vmatpush1.msra.mxu0 0.0
    %1166 = vmatprep.subr.mxu0 0.0
    %1167 = vmatpush1.msra.mxu0 0.0
    %1168 = vmatprep.subr.mxu0 0.0
    %1169 = vmatpush1.msra.mxu0 0.0
    %1170 = vmatprep.subr.mxu0 0.0
    %1171 = vmatpush1.msra.mxu0 0.0
    %1172 = vmatprep.subr.mxu0 0.0
    %1173 = vmatpush1.msra.mxu0 0.0
    %1174 = vmatprep.subr.mxu0 0.0
    %1175 = vmatpush1.msra.mxu0 0.0
    %1176 = vmatprep.subr.mxu0 0.0
    %1177 = vmatpush1.msra.mxu0 0.0
    %1178 = vmatprep.subr.mxu0 0.0
    %1179 = vmatpush1.msra.mxu0 0.0
    %1180 = vmatprep.subr.mxu0 0.0
    %1181 = vmatpush1.msra.mxu0 0.0
    %1182 = vmatprep.subr.mxu0 0.0
    %1183 = vmatpush1.msra.mxu0 0.0
    %1184 = vmatprep.mubr.f32.mxu0 0.0
    %1185 = vmatmul.mubr.f32.gmra.mrb[0].mxu0 %v903
    %v1186 = vpop.f32.mrb[0].mxu0
    %v1187 = vadd.f32 %v99, %v1186
    %v1188 = vpop.f32.mrb[0].mxu0
    %1189 = vdwg.mxu0
    %1190 = vmatprep.subr.mxu0 0.0
    %1191 = vmatpush1.msra.mxu0 %v458
    %1192 = vmatprep.subr.mxu0 0.0
    %1193 = vmatpush1.msra.mxu0 %v459
    %1194 = vmatprep.subr.mxu0 0.0
    %1195 = vmatpush1.msra.mxu0 %v460
    %1196 = vmatprep.subr.mxu0 0.0
    %1197 = vmatpush1.msra.mxu0 %v461
    %1198 = vmatprep.subr.mxu0 0.0
    %1199 = vmatpush1.msra.mxu0 %v462
    %1200 = vmatprep.subr.mxu0 0.0
    %1201 = vmatpush1.msra.mxu0 %v463
    %1202 = vmatprep.subr.mxu0 0.0
    %1203 = vmatpush1.msra.mxu0 %v464
    %1204 = vmatprep.subr.mxu0 0.0
    %1205 = vmatpush1.msra.mxu0 %v465
    %1206 = vmatprep.subr.mxu0 0.0
    %1207 = vmatpush1.msra.mxu0 %v466
    %1208 = vmatprep.subr.mxu0 0.0
    %1209 = vmatpush1.msra.mxu0 %v467
    %1210 = vmatprep.subr.mxu0 0.0
    %1211 = vmatpush1.msra.mxu0 %v468
    %1212 = vmatprep.subr.mxu0 0.0
    %1213 = vmatpush1.msra.mxu0 %v469
    %1214 = vmatprep.subr.mxu0 0.0
    %1215 = vmatpush1.msra.mxu0 %v470
    %1216 = vmatprep.subr.mxu0 0.0
    %1217 = vmatpush1.msra.mxu0 %v471
    %1218 = vmatprep.subr.mxu0 0.0
    %1219 = vmatpush1.msra.mxu0 %v472
    %1220 = vmatprep.subr.mxu0 0.0
    %1221 = vmatpush1.msra.mxu0 %v473
    %1222 = vmatprep.subr.mxu0 0.0
    %1223 = vmatpush1.msra.mxu0 0.0
    %1224 = vmatprep.subr.mxu0 0.0
    %1225 = vmatpush1.msra.mxu0 0.0
    %1226 = vmatprep.subr.mxu0 0.0
    %1227 = vmatpush1.msra.mxu0 0.0
    %1228 = vmatprep.subr.mxu0 0.0
    %1229 = vmatpush1.msra.mxu0 0.0
    %1230 = vmatprep.subr.mxu0 0.0
    %1231 = vmatpush1.msra.mxu0 0.0
    %1232 = vmatprep.subr.mxu0 0.0
    %1233 = vmatpush1.msra.mxu0 0.0
    %1234 = vmatprep.subr.mxu0 0.0
    %1235 = vmatpush1.msra.mxu0 0.0
    %1236 = vmatprep.subr.mxu0 0.0
    %1237 = vmatpush1.msra.mxu0 0.0
    %1238 = vmatprep.subr.mxu0 0.0
    %1239 = vmatpush1.msra.mxu0 0.0
    %1240 = vmatprep.subr.mxu0 0.0
    %1241 = vmatpush1.msra.mxu0 0.0
    %1242 = vmatprep.subr.mxu0 0.0
    %1243 = vmatpush1.msra.mxu0 0.0
    %1244 = vmatprep.subr.mxu0 0.0
    %1245 = vmatpush1.msra.mxu0 0.0
    %1246 = vmatprep.subr.mxu0 0.0
    %1247 = vmatpush1.msra.mxu0 0.0
    %1248 = vmatprep.subr.mxu0 0.0
    %1249 = vmatpush1.msra.mxu0 0.0
    %1250 = vmatprep.subr.mxu0 0.0
    %1251 = vmatpush1.msra.mxu0 0.0
    %1252 = vmatprep.subr.mxu0 0.0
    %1253 = vmatpush1.msra.mxu0 0.0
    %1254 = vmatprep.mubr.f32.mxu0 0.0
    %1255 = vmatmul.mubr.f32.gmra.mrb[0].mxu0 %v1119
    %v1256 = vpop.f32.mrb[0].mxu0
    %v1257 = vadd.f32 0.0, %v1256
    %v1258 = vpop.f32.mrb[0].mxu0
    %1259 = vdwg.mxu0
    %v1260 = vadd.f32 %v1187, %v1257
    %v1261 = vmax.f32 %v1260, 0.0
    %s1262 = scalar_lea.vmem [#allocation3], 24
    %v1263 = vld [vmem:[%s1262] sm:$0xff]
    %1264 = vmatprep.subr.mxu0 0.0
    %1265 = vmatpush1.msra.mxu0 %v107
    %1266 = vmatprep.subr.mxu0 0.0
    %1267 = vmatpush1.msra.mxu0 %v108
    %1268 = vmatprep.subr.mxu0 0.0
    %1269 = vmatpush1.msra.mxu0 %v109
    %1270 = vmatprep.subr.mxu0 0.0
    %1271 = vmatpush1.msra.mxu0 %v110
    %1272 = vmatprep.subr.mxu0 0.0
    %1273 = vmatpush1.msra.mxu0 %v111
    %1274 = vmatprep.subr.mxu0 0.0
    %1275 = vmatpush1.msra.mxu0 %v112
    %1276 = vmatprep.subr.mxu0 0.0
    %1277 = vmatpush1.msra.mxu0 %v113
    %1278 = vmatprep.subr.mxu0 0.0
    %1279 = vmatpush1.msra.mxu0 %v114
    %1280 = vmatprep.subr.mxu0 0.0
    %1281 = vmatpush1.msra.mxu0 %v115
    %1282 = vmatprep.subr.mxu0 0.0
    %1283 = vmatpush1.msra.mxu0 %v116
    %1284 = vmatprep.subr.mxu0 0.0
    %1285 = vmatpush1.msra.mxu0 %v117
    %1286 = vmatprep.subr.mxu0 0.0
    %1287 = vmatpush1.msra.mxu0 %v118
    %1288 = vmatprep.subr.mxu0 0.0
    %1289 = vmatpush1.msra.mxu0 %v119
    %1290 = vmatprep.subr.mxu0 0.0
    %1291 = vmatpush1.msra.mxu0 %v120
    %1292 = vmatprep.subr.mxu0 0.0
    %1293 = vmatpush1.msra.mxu0 %v121
    %1294 = vmatprep.subr.mxu0 0.0
    %1295 = vmatpush1.msra.mxu0 %v122
    %1296 = vmatprep.subr.mxu0 0.0
    %1297 = vmatpush1.msra.mxu0 0.0
    %1298 = vmatprep.subr.mxu0 0.0
    %1299 = vmatpush1.msra.mxu0 0.0
    %1300 = vmatprep.subr.mxu0 0.0
    %1301 = vmatpush1.msra.mxu0 0.0
    %1302 = vmatprep.subr.mxu0 0.0
    %1303 = vmatpush1.msra.mxu0 0.0
    %1304 = vmatprep.subr.mxu0 0.0
    %1305 = vmatpush1.msra.mxu0 0.0
    %1306 = vmatprep.subr.mxu0 0.0
    %1307 = vmatpush1.msra.mxu0 0.0
    %1308 = vmatprep.subr.mxu0 0.0
    %1309 = vmatpush1.msra.mxu0 0.0
    %1310 = vmatprep.subr.mxu0 0.0
    %1311 = vmatpush1.msra.mxu0 0.0
    %1312 = vmatprep.subr.mxu0 0.0
    %1313 = vmatpush1.msra.mxu0 0.0
    %1314 = vmatprep.subr.mxu0 0.0
    %1315 = vmatpush1.msra.mxu0 0.0
    %1316 = vmatprep.subr.mxu0 0.0
    %1317 = vmatpush1.msra.mxu0 0.0
    %1318 = vmatprep.subr.mxu0 0.0
    %1319 = vmatpush1.msra.mxu0 0.0
    %1320 = vmatprep.subr.mxu0 0.0
    %1321 = vmatpush1.msra.mxu0 0.0
    %1322 = vmatprep.subr.mxu0 0.0
    %1323 = vmatpush1.msra.mxu0 0.0
    %1324 = vmatprep.subr.mxu0 0.0
    %1325 = vmatpush1.msra.mxu0 0.0
    %1326 = vmatprep.subr.mxu0 0.0
    %1327 = vmatpush1.msra.mxu0 0.0
    %1328 = vmatprep.mubr.f32.mxu0 0.0
    %1329 = vmatmul.mubr.f32.gmra.mrb[0].mxu0 %v977
    %v1330 = vpop.f32.mrb[0].mxu0
    %v1331 = vadd.f32 0.0, %v1330
    %v1332 = vpop.f32.mrb[0].mxu0
    %1333 = vdwg.mxu0
    %v1334 = vadd.f32 %v1263, %v1331
    %v1335 = vmax.f32 %v1334, 0.0
    %1336 = vmatprep.subr.mxu0 0.0
    %1337 = vmatpush1.msra.mxu0 %v194
    %1338 = vmatprep.subr.mxu0 0.0
    %1339 = vmatpush1.msra.mxu0 %v195
    %1340 = vmatprep.subr.mxu0 0.0
    %1341 = vmatpush1.msra.mxu0 %v196
    %1342 = vmatprep.subr.mxu0 0.0
    %1343 = vmatpush1.msra.mxu0 %v197
    %1344 = vmatprep.subr.mxu0 0.0
    %1345 = vmatpush1.msra.mxu0 %v198
    %1346 = vmatprep.subr.mxu0 0.0
    %1347 = vmatpush1.msra.mxu0 %v199
    %1348 = vmatprep.subr.mxu0 0.0
    %1349 = vmatpush1.msra.mxu0 %v200
    %1350 = vmatprep.subr.mxu0 0.0
    %1351 = vmatpush1.msra.mxu0 %v201
    %1352 = vmatprep.subr.mxu0 0.0
    %1353 = vmatpush1.msra.mxu0 %v202
    %1354 = vmatprep.subr.mxu0 0.0
    %1355 = vmatpush1.msra.mxu0 %v203
    %1356 = vmatprep.subr.mxu0 0.0
    %1357 = vmatpush1.msra.mxu0 %v204
    %1358 = vmatprep.subr.mxu0 0.0
    %1359 = vmatpush1.msra.mxu0 %v205
    %1360 = vmatprep.subr.mxu0 0.0
    %1361 = vmatpush1.msra.mxu0 %v206
    %1362 = vmatprep.subr.mxu0 0.0
    %1363 = vmatpush1.msra.mxu0 %v207
    %1364 = vmatprep.subr.mxu0 0.0
    %1365 = vmatpush1.msra.mxu0 %v208
    %1366 = vmatprep.subr.mxu0 0.0
    %1367 = vmatpush1.msra.mxu0 %v209
    %1368 = vmatprep.subr.mxu0 0.0
    %1369 = vmatpush1.msra.mxu0 0.0
    %1370 = vmatprep.subr.mxu0 0.0
    %1371 = vmatpush1.msra.mxu0 0.0
    %1372 = vmatprep.subr.mxu0 0.0
    %1373 = vmatpush1.msra.mxu0 0.0
    %1374 = vmatprep.subr.mxu0 0.0
    %1375 = vmatpush1.msra.mxu0 0.0
    %1376 = vmatprep.subr.mxu0 0.0
    %1377 = vmatpush1.msra.mxu0 0.0
    %1378 = vmatprep.subr.mxu0 0.0
    %1379 = vmatpush1.msra.mxu0 0.0
    %1380 = vmatprep.subr.mxu0 0.0
    %1381 = vmatpush1.msra.mxu0 0.0
    %1382 = vmatprep.subr.mxu0 0.0
    %1383 = vmatpush1.msra.mxu0 0.0
    %1384 = vmatprep.subr.mxu0 0.0
    %1385 = vmatpush1.msra.mxu0 0.0
    %1386 = vmatprep.subr.mxu0 0.0
    %1387 = vmatpush1.msra.mxu0 0.0
    %1388 = vmatprep.subr.mxu0 0.0
    %1389 = vmatpush1.msra.mxu0 0.0
    %1390 = vmatprep.subr.mxu0 0.0
    %1391 = vmatpush1.msra.mxu0 0.0
    %1392 = vmatprep.subr.mxu0 0.0
    %1393 = vmatpush1.msra.mxu0 0.0
    %1394 = vmatprep.subr.mxu0 0.0
    %1395 = vmatpush1.msra.mxu0 0.0
    %1396 = vmatprep.subr.mxu0 0.0
    %1397 = vmatpush1.msra.mxu0 0.0
    %1398 = vmatprep.subr.mxu0 0.0
    %1399 = vmatpush1.msra.mxu0 0.0
    %1400 = vmatprep.mubr.f32.mxu0 0.0
    %1401 = vmatmul.mubr.f32.gmra.mrb[0].mxu0 %v1119
    %v1402 = vpop.f32.mrb[0].mxu0
    %v1403 = vadd.f32 %v91, %v1402
    %v1404 = vpop.f32.mrb[0].mxu0
    %1405 = vdwg.mxu0
    %1406 = vmatprep.subr.mxu0 0.0
    %1407 = vmatpush1.msra.mxu0 %v299
    %1408 = vmatprep.subr.mxu0 0.0
    %1409 = vmatpush1.msra.mxu0 %v300
    %1410 = vmatprep.subr.mxu0 0.0
    %1411 = vmatpush1.msra.mxu0 %v301
    %1412 = vmatprep.subr.mxu0 0.0
    %1413 = vmatpush1.msra.mxu0 %v302
    %1414 = vmatprep.subr.mxu0 0.0
    %1415 = vmatpush1.msra.mxu0 %v303
    %1416 = vmatprep.subr.mxu0 0.0
    %1417 = vmatpush1.msra.mxu0 %v304
    %1418 = vmatprep.subr.mxu0 0.0
    %1419 = vmatpush1.msra.mxu0 %v305
    %1420 = vmatprep.subr.mxu0 0.0
    %1421 = vmatpush1.msra.mxu0 %v306
    %1422 = vmatprep.subr.mxu0 0.0
    %1423 = vmatpush1.msra.mxu0 %v307
    %1424 = vmatprep.subr.mxu0 0.0
    %1425 = vmatpush1.msra.mxu0 %v308
    %1426 = vmatprep.subr.mxu0 0.0
    %1427 = vmatpush1.msra.mxu0 %v309
    %1428 = vmatprep.subr.mxu0 0.0
    %1429 = vmatpush1.msra.mxu0 %v310
    %1430 = vmatprep.subr.mxu0 0.0
    %1431 = vmatpush1.msra.mxu0 %v311
    %1432 = vmatprep.subr.mxu0 0.0
    %1433 = vmatpush1.msra.mxu0 %v312
    %1434 = vmatprep.subr.mxu0 0.0
    %1435 = vmatpush1.msra.mxu0 %v313
    %1436 = vmatprep.subr.mxu0 0.0
    %1437 = vmatpush1.msra.mxu0 %v314
    %1438 = vmatprep.subr.mxu0 0.0
    %1439 = vmatpush1.msra.mxu0 0.0
    %1440 = vmatprep.subr.mxu0 0.0
    %1441 = vmatpush1.msra.mxu0 0.0
    %1442 = vmatprep.subr.mxu0 0.0
    %1443 = vmatpush1.msra.mxu0 0.0
    %1444 = vmatprep.subr.mxu0 0.0
    %1445 = vmatpush1.msra.mxu0 0.0
    %1446 = vmatprep.subr.mxu0 0.0
    %1447 = vmatpush1.msra.mxu0 0.0
    %1448 = vmatprep.subr.mxu0 0.0
    %1449 = vmatpush1.msra.mxu0 0.0
    %1450 = vmatprep.subr.mxu0 0.0
    %1451 = vmatpush1.msra.mxu0 0.0
    %1452 = vmatprep.subr.mxu0 0.0
    %1453 = vmatpush1.msra.mxu0 0.0
    %1454 = vmatprep.subr.mxu0 0.0
    %1455 = vmatpush1.msra.mxu0 0.0
    %1456 = vmatprep.subr.mxu0 0.0
    %1457 = vmatpush1.msra.mxu0 0.0
    %1458 = vmatprep.subr.mxu0 0.0
    %1459 = vmatpush1.msra.mxu0 0.0
    %1460 = vmatprep.subr.mxu0 0.0
    %1461 = vmatpush1.msra.mxu0 0.0
    %1462 = vmatprep.subr.mxu0 0.0
    %1463 = vmatpush1.msra.mxu0 0.0
    %1464 = vmatprep.subr.mxu0 0.0
    %1465 = vmatpush1.msra.mxu0 0.0
    %1466 = vmatprep.subr.mxu0 0.0
    %1467 = vmatpush1.msra.mxu0 0.0
    %1468 = vmatprep.subr.mxu0 0.0
    %1469 = vmatpush1.msra.mxu0 0.0
    %1470 = vmatprep.mubr.f32.mxu0 0.0
    %1471 = vmatmul.mubr.f32.gmra.mrb[0].mxu0 %v1335
    %v1472 = vpop.f32.mrb[0].mxu0
    %v1473 = vadd.f32 0.0, %v1472
    %v1474 = vpop.f32.mrb[0].mxu0
    %1475 = vdwg.mxu0
    %v1476 = vadd.f32 %v1403, %v1473
    %v1477 = vmax.f32 %v1476, 0.0
    %1478 = vmatprep.subr.mxu0 0.0
    %1479 = vmatpush1.msra.mxu0 %v211
    %1480 = vmatprep.subr.mxu0 0.0
    %1481 = vmatpush1.msra.mxu0 %v212
    %1482 = vmatprep.subr.mxu0 0.0
    %1483 = vmatpush1.msra.mxu0 %v213
    %1484 = vmatprep.subr.mxu0 0.0
    %1485 = vmatpush1.msra.mxu0 %v214
    %1486 = vmatprep.subr.mxu0 0.0
    %1487 = vmatpush1.msra.mxu0 %v215
    %1488 = vmatprep.subr.mxu0 0.0
    %1489 = vmatpush1.msra.mxu0 %v216
    %1490 = vmatprep.subr.mxu0 0.0
    %1491 = vmatpush1.msra.mxu0 %v217
    %1492 = vmatprep.subr.mxu0 0.0
    %1493 = vmatpush1.msra.mxu0 %v218
    %1494 = vmatprep.subr.mxu0 0.0
    %1495 = vmatpush1.msra.mxu0 %v219
    %1496 = vmatprep.subr.mxu0 0.0
    %1497 = vmatpush1.msra.mxu0 %v220
    %1498 = vmatprep.subr.mxu0 0.0
    %1499 = vmatpush1.msra.mxu0 %v221
    %1500 = vmatprep.subr.mxu0 0.0
    %1501 = vmatpush1.msra.mxu0 %v222
    %1502 = vmatprep.subr.mxu0 0.0
    %1503 = vmatpush1.msra.mxu0 %v223
    %1504 = vmatprep.subr.mxu0 0.0
    %1505 = vmatpush1.msra.mxu0 %v224
    %1506 = vmatprep.subr.mxu0 0.0
    %1507 = vmatpush1.msra.mxu0 %v225
    %1508 = vmatprep.subr.mxu0 0.0
    %1509 = vmatpush1.msra.mxu0 %v226
    %1510 = vmatprep.subr.mxu0 0.0
    %1511 = vmatpush1.msra.mxu0 0.0
    %1512 = vmatprep.subr.mxu0 0.0
    %1513 = vmatpush1.msra.mxu0 0.0
    %1514 = vmatprep.subr.mxu0 0.0
    %1515 = vmatpush1.msra.mxu0 0.0
    %1516 = vmatprep.subr.mxu0 0.0
    %1517 = vmatpush1.msra.mxu0 0.0
    %1518 = vmatprep.subr.mxu0 0.0
    %1519 = vmatpush1.msra.mxu0 0.0
    %1520 = vmatprep.subr.mxu0 0.0
    %1521 = vmatpush1.msra.mxu0 0.0
    %1522 = vmatprep.subr.mxu0 0.0
    %1523 = vmatpush1.msra.mxu0 0.0
    %1524 = vmatprep.subr.mxu0 0.0
    %1525 = vmatpush1.msra.mxu0 0.0
    %1526 = vmatprep.subr.mxu0 0.0
    %1527 = vmatpush1.msra.mxu0 0.0
    %1528 = vmatprep.subr.mxu0 0.0
    %1529 = vmatpush1.msra.mxu0 0.0
    %1530 = vmatprep.subr.mxu0 0.0
    %1531 = vmatpush1.msra.mxu0 0.0
    %1532 = vmatprep.subr.mxu0 0.0
    %1533 = vmatpush1.msra.mxu0 0.0
    %1534 = vmatprep.subr.mxu0 0.0
    %1535 = vmatpush1.msra.mxu0 0.0
    %1536 = vmatprep.subr.mxu0 0.0
    %1537 = vmatpush1.msra.mxu0 0.0
    %1538 = vmatprep.subr.mxu0 0.0
    %1539 = vmatpush1.msra.mxu0 0.0
    %1540 = vmatprep.subr.mxu0 0.0
    %1541 = vmatpush1.msra.mxu0 0.0
    %1542 = vmatprep.mubr.f32.mxu0 0.0
    %1543 = vmatmul.mubr.f32.gmra.mrb[0].mxu0 %v1261
    %v1544 = vpop.f32.mrb[0].mxu0
    %v1545 = vadd.f32 %v99, %v1544
    %v1546 = vpop.f32.mrb[0].mxu0
    %1547 = vdwg.mxu0
    %1548 = vmatprep.subr.mxu0 0.0
    %1549 = vmatpush1.msra.mxu0 %v458
    %1550 = vmatprep.subr.mxu0 0.0
    %1551 = vmatpush1.msra.mxu0 %v459
    %1552 = vmatprep.subr.mxu0 0.0
    %1553 = vmatpush1.msra.mxu0 %v460
    %1554 = vmatprep.subr.mxu0 0.0
    %1555 = vmatpush1.msra.mxu0 %v461
    %1556 = vmatprep.subr.mxu0 0.0
    %1557 = vmatpush1.msra.mxu0 %v462
    %1558 = vmatprep.subr.mxu0 0.0
    %1559 = vmatpush1.msra.mxu0 %v463
    %1560 = vmatprep.subr.mxu0 0.0
    %1561 = vmatpush1.msra.mxu0 %v464
    %1562 = vmatprep.subr.mxu0 0.0
    %1563 = vmatpush1.msra.mxu0 %v465
    %1564 = vmatprep.subr.mxu0 0.0
    %1565 = vmatpush1.msra.mxu0 %v466
    %1566 = vmatprep.subr.mxu0 0.0
    %1567 = vmatpush1.msra.mxu0 %v467
    %1568 = vmatprep.subr.mxu0 0.0
    %1569 = vmatpush1.msra.mxu0 %v468
    %1570 = vmatprep.subr.mxu0 0.0
    %1571 = vmatpush1.msra.mxu0 %v469
    %1572 = vmatprep.subr.mxu0 0.0
    %1573 = vmatpush1.msra.mxu0 %v470
    %1574 = vmatprep.subr.mxu0 0.0
    %1575 = vmatpush1.msra.mxu0 %v471
    %1576 = vmatprep.subr.mxu0 0.0
    %1577 = vmatpush1.msra.mxu0 %v472
    %1578 = vmatprep.subr.mxu0 0.0
    %1579 = vmatpush1.msra.mxu0 %v473
    %1580 = vmatprep.subr.mxu0 0.0
    %1581 = vmatpush1.msra.mxu0 0.0
    %1582 = vmatprep.subr.mxu0 0.0
    %1583 = vmatpush1.msra.mxu0 0.0
    %1584 = vmatprep.subr.mxu0 0.0
    %1585 = vmatpush1.msra.mxu0 0.0
    %1586 = vmatprep.subr.mxu0 0.0
    %1587 = vmatpush1.msra.mxu0 0.0
    %1588 = vmatprep.subr.mxu0 0.0
    %1589 = vmatpush1.msra.mxu0 0.0
    %1590 = vmatprep.subr.mxu0 0.0
    %1591 = vmatpush1.msra.mxu0 0.0
    %1592 = vmatprep.subr.mxu0 0.0
    %1593 = vmatpush1.msra.mxu0 0.0
    %1594 = vmatprep.subr.mxu0 0.0
    %1595 = vmatpush1.msra.mxu0 0.0
    %1596 = vmatprep.subr.mxu0 0.0
    %1597 = vmatpush1.msra.mxu0 0.0
    %1598 = vmatprep.subr.mxu0 0.0
    %1599 = vmatpush1.msra.mxu0 0.0
    %1600 = vmatprep.subr.mxu0 0.0
    %1601 = vmatpush1.msra.mxu0 0.0
    %1602 = vmatprep.subr.mxu0 0.0
    %1603 = vmatpush1.msra.mxu0 0.0
    %1604 = vmatprep.subr.mxu0 0.0
    %1605 = vmatpush1.msra.mxu0 0.0
    %1606 = vmatprep.subr.mxu0 0.0
    %1607 = vmatpush1.msra.mxu0 0.0
    %1608 = vmatprep.subr.mxu0 0.0
    %1609 = vmatpush1.msra.mxu0 0.0
    %1610 = vmatprep.subr.mxu0 0.0
    %1611 = vmatpush1.msra.mxu0 0.0
    %1612 = vmatprep.mubr.f32.mxu0 0.0
    %1613 = vmatmul.mubr.f32.gmra.mrb[0].mxu0 %v1477
    %v1614 = vpop.f32.mrb[0].mxu0
    %v1615 = vadd.f32 0.0, %v1614
    %v1616 = vpop.f32.mrb[0].mxu0
    %1617 = vdwg.mxu0
    %v1618 = vadd.f32 %v1545, %v1615
    %v1619 = vmax.f32 %v1618, 0.0
    %s1620 = scalar_lea.vmem [#allocation3], 32
    %v1621 = vld [vmem:[%s1620] sm:$0xff]
    %1622 = vmatprep.subr.mxu0 0.0
    %1623 = vmatpush1.msra.mxu0 %v107
    %1624 = vmatprep.subr.mxu0 0.0
    %1625 = vmatpush1.msra.mxu0 %v108
    %1626 = vmatprep.subr.mxu0 0.0
    %1627 = vmatpush1.msra.mxu0 %v109
    %1628 = vmatprep.subr.mxu0 0.0
    %1629 = vmatpush1.msra.mxu0 %v110
    %1630 = vmatprep.subr.mxu0 0.0
    %1631 = vmatpush1.msra.mxu0 %v111
    %1632 = vmatprep.subr.mxu0 0.0
    %1633 = vmatpush1.msra.mxu0 %v112
    %1634 = vmatprep.subr.mxu0 0.0
    %1635 = vmatpush1.msra.mxu0 %v113
    %1636 = vmatprep.subr.mxu0 0.0
    %1637 = vmatpush1.msra.mxu0 %v114
    %1638 = vmatprep.subr.mxu0 0.0
    %1639 = vmatpush1.msra.mxu0 %v115
    %1640 = vmatprep.subr.mxu0 0.0
    %1641 = vmatpush1.msra.mxu0 %v116
    %1642 = vmatprep.subr.mxu0 0.0
    %1643 = vmatpush1.msra.mxu0 %v117
    %1644 = vmatprep.subr.mxu0 0.0
    %1645 = vmatpush1.msra.mxu0 %v118
    %1646 = vmatprep.subr.mxu0 0.0
    %1647 = vmatpush1.msra.mxu0 %v119
    %1648 = vmatprep.subr.mxu0 0.0
    %1649 = vmatpush1.msra.mxu0 %v120
    %1650 = vmatprep.subr.mxu0 0.0
    %1651 = vmatpush1.msra.mxu0 %v121
    %1652 = vmatprep.subr.mxu0 0.0
    %1653 = vmatpush1.msra.mxu0 %v122
    %1654 = vmatprep.subr.mxu0 0.0
    %1655 = vmatpush1.msra.mxu0 0.0
    %1656 = vmatprep.subr.mxu0 0.0
    %1657 = vmatpush1.msra.mxu0 0.0
    %1658 = vmatprep.subr.mxu0 0.0
    %1659 = vmatpush1.msra.mxu0 0.0
    %1660 = vmatprep.subr.mxu0 0.0
    %1661 = vmatpush1.msra.mxu0 0.0
    %1662 = vmatprep.subr.mxu0 0.0
    %1663 = vmatpush1.msra.mxu0 0.0
    %1664 = vmatprep.subr.mxu0 0.0
    %1665 = vmatpush1.msra.mxu0 0.0
    %1666 = vmatprep.subr.mxu0 0.0
    %1667 = vmatpush1.msra.mxu0 0.0
    %1668 = vmatprep.subr.mxu0 0.0
    %1669 = vmatpush1.msra.mxu0 0.0
    %1670 = vmatprep.subr.mxu0 0.0
    %1671 = vmatpush1.msra.mxu0 0.0
    %1672 = vmatprep.subr.mxu0 0.0
    %1673 = vmatpush1.msra.mxu0 0.0
    %1674 = vmatprep.subr.mxu0 0.0
    %1675 = vmatpush1.msra.mxu0 0.0
    %1676 = vmatprep.subr.mxu0 0.0
    %1677 = vmatpush1.msra.mxu0 0.0
    %1678 = vmatprep.subr.mxu0 0.0
    %1679 = vmatpush1.msra.mxu0 0.0
    %1680 = vmatprep.subr.mxu0 0.0
    %1681 = vmatpush1.msra.mxu0 0.0
    %1682 = vmatprep.subr.mxu0 0.0
    %1683 = vmatpush1.msra.mxu0 0.0
    %1684 = vmatprep.subr.mxu0 0.0
    %1685 = vmatpush1.msra.mxu0 0.0
    %1686 = vmatprep.mubr.f32.mxu0 0.0
    %1687 = vmatmul.mubr.f32.gmra.mrb[0].mxu0 %v1335
    %v1688 = vpop.f32.mrb[0].mxu0
    %v1689 = vadd.f32 0.0, %v1688
    %v1690 = vpop.f32.mrb[0].mxu0
    %1691 = vdwg.mxu0
    %v1692 = vadd.f32 %v1621, %v1689
    %v1693 = vmax.f32 %v1692, 0.0
    %1694 = vmatprep.subr.mxu0 0.0
    %1695 = vmatpush1.msra.mxu0 %v194
    %1696 = vmatprep.subr.mxu0 0.0
    %1697 = vmatpush1.msra.mxu0 %v195
    %1698 = vmatprep.subr.mxu0 0.0
    %1699 = vmatpush1.msra.mxu0 %v196
    %1700 = vmatprep.subr.mxu0 0.0
    %1701 = vmatpush1.msra.mxu0 %v197
    %1702 = vmatprep.subr.mxu0 0.0
    %1703 = vmatpush1.msra.mxu0 %v198
    %1704 = vmatprep.subr.mxu0 0.0
    %1705 = vmatpush1.msra.mxu0 %v199
    %1706 = vmatprep.subr.mxu0 0.0
    %1707 = vmatpush1.msra.mxu0 %v200
    %1708 = vmatprep.subr.mxu0 0.0
    %1709 = vmatpush1.msra.mxu0 %v201
    %1710 = vmatprep.subr.mxu0 0.0
    %1711 = vmatpush1.msra.mxu0 %v202
    %1712 = vmatprep.subr.mxu0 0.0
    %1713 = vmatpush1.msra.mxu0 %v203
    %1714 = vmatprep.subr.mxu0 0.0
    %1715 = vmatpush1.msra.mxu0 %v204
    %1716 = vmatprep.subr.mxu0 0.0
    %1717 = vmatpush1.msra.mxu0 %v205
    %1718 = vmatprep.subr.mxu0 0.0
    %1719 = vmatpush1.msra.mxu0 %v206
    %1720 = vmatprep.subr.mxu0 0.0
    %1721 = vmatpush1.msra.mxu0 %v207
    %1722 = vmatprep.subr.mxu0 0.0
    %1723 = vmatpush1.msra.mxu0 %v208
    %1724 = vmatprep.subr.mxu0 0.0
    %1725 = vmatpush1.msra.mxu0 %v209
    %1726 = vmatprep.subr.mxu0 0.0
    %1727 = vmatpush1.msra.mxu0 0.0
    %1728 = vmatprep.subr.mxu0 0.0
    %1729 = vmatpush1.msra.mxu0 0.0
    %1730 = vmatprep.subr.mxu0 0.0
    %1731 = vmatpush1.msra.mxu0 0.0
    %1732 = vmatprep.subr.mxu0 0.0
    %1733 = vmatpush1.msra.mxu0 0.0
    %1734 = vmatprep.subr.mxu0 0.0
    %1735 = vmatpush1.msra.mxu0 0.0
    %1736 = vmatprep.subr.mxu0 0.0
    %1737 = vmatpush1.msra.mxu0 0.0
    %1738 = vmatprep.subr.mxu0 0.0
    %1739 = vmatpush1.msra.mxu0 0.0
    %1740 = vmatprep.subr.mxu0 0.0
    %1741 = vmatpush1.msra.mxu0 0.0
    %1742 = vmatprep.subr.mxu0 0.0
    %1743 = vmatpush1.msra.mxu0 0.0
    %1744 = vmatprep.subr.mxu0 0.0
    %1745 = vmatpush1.msra.mxu0 0.0
    %1746 = vmatprep.subr.mxu0 0.0
    %1747 = vmatpush1.msra.mxu0 0.0
    %1748 = vmatprep.subr.mxu0 0.0
    %1749 = vmatpush1.msra.mxu0 0.0
    %1750 = vmatprep.subr.mxu0 0.0
    %1751 = vmatpush1.msra.mxu0 0.0
    %1752 = vmatprep.subr.mxu0 0.0
    %1753 = vmatpush1.msra.mxu0 0.0
    %1754 = vmatprep.subr.mxu0 0.0
    %1755 = vmatpush1.msra.mxu0 0.0
    %1756 = vmatprep.subr.mxu0 0.0
    %1757 = vmatpush1.msra.mxu0 0.0
    %1758 = vmatprep.mubr.f32.mxu0 0.0
    %1759 = vmatmul.mubr.f32.gmra.mrb[0].mxu0 %v1477
    %v1760 = vpop.f32.mrb[0].mxu0
    %v1761 = vadd.f32 %v91, %v1760
    %v1762 = vpop.f32.mrb[0].mxu0
    %1763 = vdwg.mxu0
    %1764 = vmatprep.subr.mxu0 0.0
    %1765 = vmatpush1.msra.mxu0 %v299
    %1766 = vmatprep.subr.mxu0 0.0
    %1767 = vmatpush1.msra.mxu0 %v300
    %1768 = vmatprep.subr.mxu0 0.0
    %1769 = vmatpush1.msra.mxu0 %v301
    %1770 = vmatprep.subr.mxu0 0.0
    %1771 = vmatpush1.msra.mxu0 %v302
    %1772 = vmatprep.subr.mxu0 0.0
    %1773 = vmatpush1.msra.mxu0 %v303
    %1774 = vmatprep.subr.mxu0 0.0
    %1775 = vmatpush1.msra.mxu0 %v304
    %1776 = vmatprep.subr.mxu0 0.0
    %1777 = vmatpush1.msra.mxu0 %v305
    %1778 = vmatprep.subr.mxu0 0.0
    %1779 = vmatpush1.msra.mxu0 %v306
    %1780 = vmatprep.subr.mxu0 0.0
    %1781 = vmatpush1.msra.mxu0 %v307
    %1782 = vmatprep.subr.mxu0 0.0
    %1783 = vmatpush1.msra.mxu0 %v308
    %1784 = vmatprep.subr.mxu0 0.0
    %1785 = vmatpush1.msra.mxu0 %v309
    %1786 = vmatprep.subr.mxu0 0.0
    %1787 = vmatpush1.msra.mxu0 %v310
    %1788 = vmatprep.subr.mxu0 0.0
    %1789 = vmatpush1.msra.mxu0 %v311
    %1790 = vmatprep.subr.mxu0 0.0
    %1791 = vmatpush1.msra.mxu0 %v312
    %1792 = vmatprep.subr.mxu0 0.0
    %1793 = vmatpush1.msra.mxu0 %v313
    %1794 = vmatprep.subr.mxu0 0.0
    %1795 = vmatpush1.msra.mxu0 %v314
    %1796 = vmatprep.subr.mxu0 0.0
    %1797 = vmatpush1.msra.mxu0 0.0
    %1798 = vmatprep.subr.mxu0 0.0
    %1799 = vmatpush1.msra.mxu0 0.0
    %1800 = vmatprep.subr.mxu0 0.0
    %1801 = vmatpush1.msra.mxu0 0.0
    %1802 = vmatprep.subr.mxu0 0.0
    %1803 = vmatpush1.msra.mxu0 0.0
    %1804 = vmatprep.subr.mxu0 0.0
    %1805 = vmatpush1.msra.mxu0 0.0
    %1806 = vmatprep.subr.mxu0 0.0
    %1807 = vmatpush1.msra.mxu0 0.0
    %1808 = vmatprep.subr.mxu0 0.0
    %1809 = vmatpush1.msra.mxu0 0.0
    %1810 = vmatprep.subr.mxu0 0.0
    %1811 = vmatpush1.msra.mxu0 0.0
    %1812 = vmatprep.subr.mxu0 0.0
    %1813 = vmatpush1.msra.mxu0 0.0
    %1814 = vmatprep.subr.mxu0 0.0
    %1815 = vmatpush1.msra.mxu0 0.0
    %1816 = vmatprep.subr.mxu0 0.0
    %1817 = vmatpush1.msra.mxu0 0.0
    %1818 = vmatprep.subr.mxu0 0.0
    %1819 = vmatpush1.msra.mxu0 0.0
    %1820 = vmatprep.subr.mxu0 0.0
    %1821 = vmatpush1.msra.mxu0 0.0
    %1822 = vmatprep.subr.mxu0 0.0
    %1823 = vmatpush1.msra.mxu0 0.0
    %1824 = vmatprep.subr.mxu0 0.0
    %1825 = vmatpush1.msra.mxu0 0.0
    %1826 = vmatprep.subr.mxu0 0.0
    %1827 = vmatpush1.msra.mxu0 0.0
    %1828 = vmatprep.mubr.f32.mxu0 0.0
    %1829 = vmatmul.mubr.f32.gmra.mrb[0].mxu0 %v1693
    %v1830 = vpop.f32.mrb[0].mxu0
    %v1831 = vadd.f32 0.0, %v1830
    %v1832 = vpop.f32.mrb[0].mxu0
    %1833 = vdwg.mxu0
    %v1834 = vadd.f32 %v1761, %v1831
    %v1835 = vmax.f32 %v1834, 0.0
    %1836 = vmatprep.subr.mxu0 0.0
    %1837 = vmatpush1.msra.mxu0 %v211
    %1838 = vmatprep.subr.mxu0 0.0
    %1839 = vmatpush1.msra.mxu0 %v212
    %1840 = vmatprep.subr.mxu0 0.0
    %1841 = vmatpush1.msra.mxu0 %v213
    %1842 = vmatprep.subr.mxu0 0.0
    %1843 = vmatpush1.msra.mxu0 %v214
    %1844 = vmatprep.subr.mxu0 0.0
    %1845 = vmatpush1.msra.mxu0 %v215
    %1846 = vmatprep.subr.mxu0 0.0
    %1847 = vmatpush1.msra.mxu0 %v216
    %1848 = vmatprep.subr.mxu0 0.0
    %1849 = vmatpush1.msra.mxu0 %v217
    %1850 = vmatprep.subr.mxu0 0.0
    %1851 = vmatpush1.msra.mxu0 %v218
    %1852 = vmatprep.subr.mxu0 0.0
    %1853 = vmatpush1.msra.mxu0 %v219
    %1854 = vmatprep.subr.mxu0 0.0
    %1855 = vmatpush1.msra.mxu0 %v220
    %1856 = vmatprep.subr.mxu0 0.0
    %1857 = vmatpush1.msra.mxu0 %v221
    %1858 = vmatprep.subr.mxu0 0.0
    %1859 = vmatpush1.msra.mxu0 %v222
    %1860 = vmatprep.subr.mxu0 0.0
    %1861 = vmatpush1.msra.mxu0 %v223
    %1862 = vmatprep.subr.mxu0 0.0
    %1863 = vmatpush1.msra.mxu0 %v224
    %1864 = vmatprep.subr.mxu0 0.0
    %1865 = vmatpush1.msra.mxu0 %v225
    %1866 = vmatprep.subr.mxu0 0.0
    %1867 = vmatpush1.msra.mxu0 %v226
    %1868 = vmatprep.subr.mxu0 0.0
    %1869 = vmatpush1.msra.mxu0 0.0
    %1870 = vmatprep.subr.mxu0 0.0
    %1871 = vmatpush1.msra.mxu0 0.0
    %1872 = vmatprep.subr.mxu0 0.0
    %1873 = vmatpush1.msra.mxu0 0.0
    %1874 = vmatprep.subr.mxu0 0.0
    %1875 = vmatpush1.msra.mxu0 0.0
    %1876 = vmatprep.subr.mxu0 0.0
    %1877 = vmatpush1.msra.mxu0 0.0
    %1878 = vmatprep.subr.mxu0 0.0
    %1879 = vmatpush1.msra.mxu0 0.0
    %1880 = vmatprep.subr.mxu0 0.0
    %1881 = vmatpush1.msra.mxu0 0.0
    %1882 = vmatprep.subr.mxu0 0.0
    %1883 = vmatpush1.msra.mxu0 0.0
    %1884 = vmatprep.subr.mxu0 0.0
    %1885 = vmatpush1.msra.mxu0 0.0
    %1886 = vmatprep.subr.mxu0 0.0
    %1887 = vmatpush1.msra.mxu0 0.0
    %1888 = vmatprep.subr.mxu0 0.0
    %1889 = vmatpush1.msra.mxu0 0.0
    %1890 = vmatprep.subr.mxu0 0.0
    %1891 = vmatpush1.msra.mxu0 0.0
    %1892 = vmatprep.subr.mxu0 0.0
    %1893 = vmatpush1.msra.mxu0 0.0
    %1894 = vmatprep.subr.mxu0 0.0
    %1895 = vmatpush1.msra.mxu0 0.0
    %1896 = vmatprep.subr.mxu0 0.0
    %1897 = vmatpush1.msra.mxu0 0.0
    %1898 = vmatprep.subr.mxu0 0.0
    %1899 = vmatpush1.msra.mxu0 0.0
    %1900 = vmatprep.mubr.f32.mxu0 0.0
    %1901 = vmatmul.mubr.f32.gmra.mrb[0].mxu0 %v1619
    %v1902 = vpop.f32.mrb[0].mxu0
    %v1903 = vadd.f32 %v99, %v1902
    %v1904 = vpop.f32.mrb[0].mxu0
    %1905 = vdwg.mxu0
    %1906 = vmatprep.subr.mxu0 0.0
    %1907 = vmatpush1.msra.mxu0 %v458
    %1908 = vmatprep.subr.mxu0 0.0
    %1909 = vmatpush1.msra.mxu0 %v459
    %1910 = vmatprep.subr.mxu0 0.0
    %1911 = vmatpush1.msra.mxu0 %v460
    %1912 = vmatprep.subr.mxu0 0.0
    %1913 = vmatpush1.msra.mxu0 %v461
    %1914 = vmatprep.subr.mxu0 0.0
    %1915 = vmatpush1.msra.mxu0 %v462
    %1916 = vmatprep.subr.mxu0 0.0
    %1917 = vmatpush1.msra.mxu0 %v463
    %1918 = vmatprep.subr.mxu0 0.0
    %1919 = vmatpush1.msra.mxu0 %v464
    %1920 = vmatprep.subr.mxu0 0.0
    %1921 = vmatpush1.msra.mxu0 %v465
    %1922 = vmatprep.subr.mxu0 0.0
    %1923 = vmatpush1.msra.mxu0 %v466
    %1924 = vmatprep.subr.mxu0 0.0
    %1925 = vmatpush1.msra.mxu0 %v467
    %1926 = vmatprep.subr.mxu0 0.0
    %1927 = vmatpush1.msra.mxu0 %v468
    %1928 = vmatprep.subr.mxu0 0.0
    %1929 = vmatpush1.msra.mxu0 %v469
    %1930 = vmatprep.subr.mxu0 0.0
    %1931 = vmatpush1.msra.mxu0 %v470
    %1932 = vmatprep.subr.mxu0 0.0
    %1933 = vmatpush1.msra.mxu0 %v471
    %1934 = vmatprep.subr.mxu0 0.0
    %1935 = vmatpush1.msra.mxu0 %v472
    %1936 = vmatprep.subr.mxu0 0.0
    %1937 = vmatpush1.msra.mxu0 %v473
    %1938 = vmatprep.subr.mxu0 0.0
    %1939 = vmatpush1.msra.mxu0 0.0
    %1940 = vmatprep.subr.mxu0 0.0
    %1941 = vmatpush1.msra.mxu0 0.0
    %1942 = vmatprep.subr.mxu0 0.0
    %1943 = vmatpush1.msra.mxu0 0.0
    %1944 = vmatprep.subr.mxu0 0.0
    %1945 = vmatpush1.msra.mxu0 0.0
    %1946 = vmatprep.subr.mxu0 0.0
    %1947 = vmatpush1.msra.mxu0 0.0
    %1948 = vmatprep.subr.mxu0 0.0
    %1949 = vmatpush1.msra.mxu0 0.0
    %1950 = vmatprep.subr.mxu0 0.0
    %1951 = vmatpush1.msra.mxu0 0.0
    %1952 = vmatprep.subr.mxu0 0.0
    %1953 = vmatpush1.msra.mxu0 0.0
    %1954 = vmatprep.subr.mxu0 0.0
    %1955 = vmatpush1.msra.mxu0 0.0
    %1956 = vmatprep.subr.mxu0 0.0
    %1957 = vmatpush1.msra.mxu0 0.0
    %1958 = vmatprep.subr.mxu0 0.0
    %1959 = vmatpush1.msra.mxu0 0.0
    %1960 = vmatprep.subr.mxu0 0.0
    %1961 = vmatpush1.msra.mxu0 0.0
    %1962 = vmatprep.subr.mxu0 0.0
    %1963 = vmatpush1.msra.mxu0 0.0
    %1964 = vmatprep.subr.mxu0 0.0
    %1965 = vmatpush1.msra.mxu0 0.0
    %1966 = vmatprep.subr.mxu0 0.0
    %1967 = vmatpush1.msra.mxu0 0.0
    %1968 = vmatprep.subr.mxu0 0.0
    %1969 = vmatpush1.msra.mxu0 0.0
    %1970 = vmatprep.mubr.f32.mxu0 0.0
    %1971 = vmatmul.mubr.f32.gmra.mrb[0].mxu0 %v1835
    %v1972 = vpop.f32.mrb[0].mxu0
    %v1973 = vadd.f32 0.0, %v1972
    %v1974 = vpop.f32.mrb[0].mxu0
    %1975 = vdwg.mxu0
    %v1976 = vadd.f32 %v1903, %v1973
    %v1977 = vmax.f32 %v1976, 0.0
    %s1978 = scalar_lea.vmem [#allocation3], 40
    %v1979 = vld [vmem:[%s1978] sm:$0xff]
    %1980 = vmatprep.subr.mxu0 0.0
    %1981 = vmatpush1.msra.mxu0 %v107
    %1982 = vmatprep.subr.mxu0 0.0
    %1983 = vmatpush1.msra.mxu0 %v108
    %1984 = vmatprep.subr.mxu0 0.0
    %1985 = vmatpush1.msra.mxu0 %v109
    %1986 = vmatprep.subr.mxu0 0.0
    %1987 = vmatpush1.msra.mxu0 %v110
    %1988 = vmatprep.subr.mxu0 0.0
    %1989 = vmatpush1.msra.mxu0 %v111
    %1990 = vmatprep.subr.mxu0 0.0
    %1991 = vmatpush1.msra.mxu0 %v112
    %1992 = vmatprep.subr.mxu0 0.0
    %1993 = vmatpush1.msra.mxu0 %v113
    %1994 = vmatprep.subr.mxu0 0.0
    %1995 = vmatpush1.msra.mxu0 %v114
    %1996 = vmatprep.subr.mxu0 0.0
    %1997 = vmatpush1.msra.mxu0 %v115
    %1998 = vmatprep.subr.mxu0 0.0
    %1999 = vmatpush1.msra.mxu0 %v116
    %2000 = vmatprep.subr.mxu0 0.0
    %2001 = vmatpush1.msra.mxu0 %v117
    %2002 = vmatprep.subr.mxu0 0.0
    %2003 = vmatpush1.msra.mxu0 %v118
    %2004 = vmatprep.subr.mxu0 0.0
    %2005 = vmatpush1.msra.mxu0 %v119
    %2006 = vmatprep.subr.mxu0 0.0
    %2007 = vmatpush1.msra.mxu0 %v120
    %2008 = vmatprep.subr.mxu0 0.0
    %2009 = vmatpush1.msra.mxu0 %v121
    %2010 = vmatprep.subr.mxu0 0.0
    %2011 = vmatpush1.msra.mxu0 %v122
    %2012 = vmatprep.subr.mxu0 0.0
    %2013 = vmatpush1.msra.mxu0 0.0
    %2014 = vmatprep.subr.mxu0 0.0
    %2015 = vmatpush1.msra.mxu0 0.0
    %2016 = vmatprep.subr.mxu0 0.0
    %2017 = vmatpush1.msra.mxu0 0.0
    %2018 = vmatprep.subr.mxu0 0.0
    %2019 = vmatpush1.msra.mxu0 0.0
    %2020 = vmatprep.subr.mxu0 0.0
    %2021 = vmatpush1.msra.mxu0 0.0
    %2022 = vmatprep.subr.mxu0 0.0
    %2023 = vmatpush1.msra.mxu0 0.0
    %2024 = vmatprep.subr.mxu0 0.0
    %2025 = vmatpush1.msra.mxu0 0.0
    %2026 = vmatprep.subr.mxu0 0.0
    %2027 = vmatpush1.msra.mxu0 0.0
    %2028 = vmatprep.subr.mxu0 0.0
    %2029 = vmatpush1.msra.mxu0 0.0
    %2030 = vmatprep.subr.mxu0 0.0
    %2031 = vmatpush1.msra.mxu0 0.0
    %2032 = vmatprep.subr.mxu0 0.0
    %2033 = vmatpush1.msra.mxu0 0.0
    %2034 = vmatprep.subr.mxu0 0.0
    %2035 = vmatpush1.msra.mxu0 0.0
    %2036 = vmatprep.subr.mxu0 0.0
    %2037 = vmatpush1.msra.mxu0 0.0
    %2038 = vmatprep.subr.mxu0 0.0
    %2039 = vmatpush1.msra.mxu0 0.0
    %2040 = vmatprep.subr.mxu0 0.0
    %2041 = vmatpush1.msra.mxu0 0.0
    %2042 = vmatprep.subr.mxu0 0.0
    %2043 = vmatpush1.msra.mxu0 0.0
    %2044 = vmatprep.mubr.f32.mxu0 0.0
    %2045 = vmatmul.mubr.f32.gmra.mrb[0].mxu0 %v1693
    %v2046 = vpop.f32.mrb[0].mxu0
    %v2047 = vadd.f32 0.0, %v2046
    %v2048 = vpop.f32.mrb[0].mxu0
    %2049 = vdwg.mxu0
    %v2050 = vadd.f32 %v1979, %v2047
    %v2051 = vmax.f32 %v2050, 0.0
    %2052 = vmatprep.subr.mxu0 0.0
    %2053 = vmatpush1.msra.mxu0 %v194
    %2054 = vmatprep.subr.mxu0 0.0
    %2055 = vmatpush1.msra.mxu0 %v195
    %2056 = vmatprep.subr.mxu0 0.0
    %2057 = vmatpush1.msra.mxu0 %v196
    %2058 = vmatprep.subr.mxu0 0.0
    %2059 = vmatpush1.msra.mxu0 %v197
    %2060 = vmatprep.subr.mxu0 0.0
    %2061 = vmatpush1.msra.mxu0 %v198
    %2062 = vmatprep.subr.mxu0 0.0
    %2063 = vmatpush1.msra.mxu0 %v199
    %2064 = vmatprep.subr.mxu0 0.0
    %2065 = vmatpush1.msra.mxu0 %v200
    %2066 = vmatprep.subr.mxu0 0.0
    %2067 = vmatpush1.msra.mxu0 %v201
    %2068 = vmatprep.subr.mxu0 0.0
    %2069 = vmatpush1.msra.mxu0 %v202
    %2070 = vmatprep.subr.mxu0 0.0
    %2071 = vmatpush1.msra.mxu0 %v203
    %2072 = vmatprep.subr.mxu0 0.0
    %2073 = vmatpush1.msra.mxu0 %v204
    %2074 = vmatprep.subr.mxu0 0.0
    %2075 = vmatpush1.msra.mxu0 %v205
    %2076 = vmatprep.subr.mxu0 0.0
    %2077 = vmatpush1.msra.mxu0 %v206
    %2078 = vmatprep.subr.mxu0 0.0
    %2079 = vmatpush1.msra.mxu0 %v207
    %2080 = vmatprep.subr.mxu0 0.0
    %2081 = vmatpush1.msra.mxu0 %v208
    %2082 = vmatprep.subr.mxu0 0.0
    %2083 = vmatpush1.msra.mxu0 %v209
    %2084 = vmatprep.subr.mxu0 0.0
    %2085 = vmatpush1.msra.mxu0 0.0
    %2086 = vmatprep.subr.mxu0 0.0
    %2087 = vmatpush1.msra.mxu0 0.0
    %2088 = vmatprep.subr.mxu0 0.0
    %2089 = vmatpush1.msra.mxu0 0.0
    %2090 = vmatprep.subr.mxu0 0.0
    %2091 = vmatpush1.msra.mxu0 0.0
    %2092 = vmatprep.subr.mxu0 0.0
    %2093 = vmatpush1.msra.mxu0 0.0
    %2094 = vmatprep.subr.mxu0 0.0
    %2095 = vmatpush1.msra.mxu0 0.0
    %2096 = vmatprep.subr.mxu0 0.0
    %2097 = vmatpush1.msra.mxu0 0.0
    %2098 = vmatprep.subr.mxu0 0.0
    %2099 = vmatpush1.msra.mxu0 0.0
    %2100 = vmatprep.subr.mxu0 0.0
    %2101 = vmatpush1.msra.mxu0 0.0
    %2102 = vmatprep.subr.mxu0 0.0
    %2103 = vmatpush1.msra.mxu0 0.0
    %2104 = vmatprep.subr.mxu0 0.0
    %2105 = vmatpush1.msra.mxu0 0.0
    %2106 = vmatprep.subr.mxu0 0.0
    %2107 = vmatpush1.msra.mxu0 0.0
    %2108 = vmatprep.subr.mxu0 0.0
    %2109 = vmatpush1.msra.mxu0 0.0
    %2110 = vmatprep.subr.mxu0 0.0
    %2111 = vmatpush1.msra.mxu0 0.0
    %2112 = vmatprep.subr.mxu0 0.0
    %2113 = vmatpush1.msra.mxu0 0.0
    %2114 = vmatprep.subr.mxu0 0.0
    %2115 = vmatpush1.msra.mxu0 0.0
    %2116 = vmatprep.mubr.f32.mxu0 0.0
    %2117 = vmatmul.mubr.f32.gmra.mrb[0].mxu0 %v1835
    %v2118 = vpop.f32.mrb[0].mxu0
    %v2119 = vadd.f32 %v91, %v2118
    %v2120 = vpop.f32.mrb[0].mxu0
    %2121 = vdwg.mxu0
    %2122 = vmatprep.subr.mxu0 0.0
    %2123 = vmatpush1.msra.mxu0 %v299
    %2124 = vmatprep.subr.mxu0 0.0
    %2125 = vmatpush1.msra.mxu0 %v300
    %2126 = vmatprep.subr.mxu0 0.0
    %2127 = vmatpush1.msra.mxu0 %v301
    %2128 = vmatprep.subr.mxu0 0.0
    %2129 = vmatpush1.msra.mxu0 %v302
    %2130 = vmatprep.subr.mxu0 0.0
    %2131 = vmatpush1.msra.mxu0 %v303
    %2132 = vmatprep.subr.mxu0 0.0
    %2133 = vmatpush1.msra.mxu0 %v304
    %2134 = vmatprep.subr.mxu0 0.0
    %2135 = vmatpush1.msra.mxu0 %v305
    %2136 = vmatprep.subr.mxu0 0.0
    %2137 = vmatpush1.msra.mxu0 %v306
    %2138 = vmatprep.subr.mxu0 0.0
    %2139 = vmatpush1.msra.mxu0 %v307
    %2140 = vmatprep.subr.mxu0 0.0
    %2141 = vmatpush1.msra.mxu0 %v308
    %2142 = vmatprep.subr.mxu0 0.0
    %2143 = vmatpush1.msra.mxu0 %v309
    %2144 = vmatprep.subr.mxu0 0.0
    %2145 = vmatpush1.msra.mxu0 %v310
    %2146 = vmatprep.subr.mxu0 0.0
    %2147 = vmatpush1.msra.mxu0 %v311
    %2148 = vmatprep.subr.mxu0 0.0
    %2149 = vmatpush1.msra.mxu0 %v312
    %2150 = vmatprep.subr.mxu0 0.0
    %2151 = vmatpush1.msra.mxu0 %v313
    %2152 = vmatprep.subr.mxu0 0.0
    %2153 = vmatpush1.msra.mxu0 %v314
    %2154 = vmatprep.subr.mxu0 0.0
    %2155 = vmatpush1.msra.mxu0 0.0
    %2156 = vmatprep.subr.mxu0 0.0
    %2157 = vmatpush1.msra.mxu0 0.0
    %2158 = vmatprep.subr.mxu0 0.0
    %2159 = vmatpush1.msra.mxu0 0.0
    %2160 = vmatprep.subr.mxu0 0.0
    %2161 = vmatpush1.msra.mxu0 0.0
    %2162 = vmatprep.subr.mxu0 0.0
    %2163 = vmatpush1.msra.mxu0 0.0
    %2164 = vmatprep.subr.mxu0 0.0
    %2165 = vmatpush1.msra.mxu0 0.0
    %2166 = vmatprep.subr.mxu0 0.0
    %2167 = vmatpush1.msra.mxu0 0.0
    %2168 = vmatprep.subr.mxu0 0.0
    %2169 = vmatpush1.msra.mxu0 0.0
    %2170 = vmatprep.subr.mxu0 0.0
    %2171 = vmatpush1.msra.mxu0 0.0
    %2172 = vmatprep.subr.mxu0 0.0
    %2173 = vmatpush1.msra.mxu0 0.0
    %2174 = vmatprep.subr.mxu0 0.0
    %2175 = vmatpush1.msra.mxu0 0.0
    %2176 = vmatprep.subr.mxu0 0.0
    %2177 = vmatpush1.msra.mxu0 0.0
    %2178 = vmatprep.subr.mxu0 0.0
    %2179 = vmatpush1.msra.mxu0 0.0
    %2180 = vmatprep.subr.mxu0 0.0
    %2181 = vmatpush1.msra.mxu0 0.0
    %2182 = vmatprep.subr.mxu0 0.0
    %2183 = vmatpush1.msra.mxu0 0.0
    %2184 = vmatprep.subr.mxu0 0.0
    %2185 = vmatpush1.msra.mxu0 0.0
    %2186 = vmatprep.mubr.f32.mxu0 0.0
    %2187 = vmatmul.mubr.f32.gmra.mrb[0].mxu0 %v2051
    %v2188 = vpop.f32.mrb[0].mxu0
    %v2189 = vadd.f32 0.0, %v2188
    %v2190 = vpop.f32.mrb[0].mxu0
    %2191 = vdwg.mxu0
    %v2192 = vadd.f32 %v2119, %v2189
    %v2193 = vmax.f32 %v2192, 0.0
    %2194 = vmatprep.subr.mxu0 0.0
    %2195 = vmatpush1.msra.mxu0 %v211
    %2196 = vmatprep.subr.mxu0 0.0
    %2197 = vmatpush1.msra.mxu0 %v212
    %2198 = vmatprep.subr.mxu0 0.0
    %2199 = vmatpush1.msra.mxu0 %v213
    %2200 = vmatprep.subr.mxu0 0.0
    %2201 = vmatpush1.msra.mxu0 %v214
    %2202 = vmatprep.subr.mxu0 0.0
    %2203 = vmatpush1.msra.mxu0 %v215
    %2204 = vmatprep.subr.mxu0 0.0
    %2205 = vmatpush1.msra.mxu0 %v216
    %2206 = vmatprep.subr.mxu0 0.0
    %2207 = vmatpush1.msra.mxu0 %v217
    %2208 = vmatprep.subr.mxu0 0.0
    %2209 = vmatpush1.msra.mxu0 %v218
    %2210 = vmatprep.subr.mxu0 0.0
    %2211 = vmatpush1.msra.mxu0 %v219
    %2212 = vmatprep.subr.mxu0 0.0
    %2213 = vmatpush1.msra.mxu0 %v220
    %2214 = vmatprep.subr.mxu0 0.0
    %2215 = vmatpush1.msra.mxu0 %v221
    %2216 = vmatprep.subr.mxu0 0.0
    %2217 = vmatpush1.msra.mxu0 %v222
    %2218 = vmatprep.subr.mxu0 0.0
    %2219 = vmatpush1.msra.mxu0 %v223
    %2220 = vmatprep.subr.mxu0 0.0
    %2221 = vmatpush1.msra.mxu0 %v224
    %2222 = vmatprep.subr.mxu0 0.0
    %2223 = vmatpush1.msra.mxu0 %v225
    %2224 = vmatprep.subr.mxu0 0.0
    %2225 = vmatpush1.msra.mxu0 %v226
    %2226 = vmatprep.subr.mxu0 0.0
    %2227 = vmatpush1.msra.mxu0 0.0
    %2228 = vmatprep.subr.mxu0 0.0
    %2229 = vmatpush1.msra.mxu0 0.0
    %2230 = vmatprep.subr.mxu0 0.0
    %2231 = vmatpush1.msra.mxu0 0.0
    %2232 = vmatprep.subr.mxu0 0.0
    %2233 = vmatpush1.msra.mxu0 0.0
    %2234 = vmatprep.subr.mxu0 0.0
    %2235 = vmatpush1.msra.mxu0 0.0
    %2236 = vmatprep.subr.mxu0 0.0
    %2237 = vmatpush1.msra.mxu0 0.0
    %2238 = vmatprep.subr.mxu0 0.0
    %2239 = vmatpush1.msra.mxu0 0.0
    %2240 = vmatprep.subr.mxu0 0.0
    %2241 = vmatpush1.msra.mxu0 0.0
    %2242 = vmatprep.subr.mxu0 0.0
    %2243 = vmatpush1.msra.mxu0 0.0
    %2244 = vmatprep.subr.mxu0 0.0
    %2245 = vmatpush1.msra.mxu0 0.0
    %2246 = vmatprep.subr.mxu0 0.0
    %2247 = vmatpush1.msra.mxu0 0.0
    %2248 = vmatprep.subr.mxu0 0.0
    %2249 = vmatpush1.msra.mxu0 0.0
    %2250 = vmatprep.subr.mxu0 0.0
    %2251 = vmatpush1.msra.mxu0 0.0
    %2252 = vmatprep.subr.mxu0 0.0
    %2253 = vmatpush1.msra.mxu0 0.0
    %2254 = vmatprep.subr.mxu0 0.0
    %2255 = vmatpush1.msra.mxu0 0.0
    %2256 = vmatprep.subr.mxu0 0.0
    %2257 = vmatpush1.msra.mxu0 0.0
    %2258 = vmatprep.mubr.f32.mxu0 0.0
    %2259 = vmatmul.mubr.f32.gmra.mrb[0].mxu0 %v1977
    %v2260 = vpop.f32.mrb[0].mxu0
    %v2261 = vadd.f32 %v99, %v2260
    %v2262 = vpop.f32.mrb[0].mxu0
    %2263 = vdwg.mxu0
    %2264 = vmatprep.subr.mxu0 0.0
    %2265 = vmatpush1.msra.mxu0 %v458
    %2266 = vmatprep.subr.mxu0 0.0
    %2267 = vmatpush1.msra.mxu0 %v459
    %2268 = vmatprep.subr.mxu0 0.0
    %2269 = vmatpush1.msra.mxu0 %v460
    %2270 = vmatprep.subr.mxu0 0.0
    %2271 = vmatpush1.msra.mxu0 %v461
    %2272 = vmatprep.subr.mxu0 0.0
    %2273 = vmatpush1.msra.mxu0 %v462
    %2274 = vmatprep.subr.mxu0 0.0
    %2275 = vmatpush1.msra.mxu0 %v463
    %2276 = vmatprep.subr.mxu0 0.0
    %2277 = vmatpush1.msra.mxu0 %v464
    %2278 = vmatprep.subr.mxu0 0.0
    %2279 = vmatpush1.msra.mxu0 %v465
    %2280 = vmatprep.subr.mxu0 0.0
    %2281 = vmatpush1.msra.mxu0 %v466
    %2282 = vmatprep.subr.mxu0 0.0
    %2283 = vmatpush1.msra.mxu0 %v467
    %2284 = vmatprep.subr.mxu0 0.0
    %2285 = vmatpush1.msra.mxu0 %v468
    %2286 = vmatprep.subr.mxu0 0.0
    %2287 = vmatpush1.msra.mxu0 %v469
    %2288 = vmatprep.subr.mxu0 0.0
    %2289 = vmatpush1.msra.mxu0 %v470
    %2290 = vmatprep.subr.mxu0 0.0
    %2291 = vmatpush1.msra.mxu0 %v471
    %2292 = vmatprep.subr.mxu0 0.0
    %2293 = vmatpush1.msra.mxu0 %v472
    %2294 = vmatprep.subr.mxu0 0.0
    %2295 = vmatpush1.msra.mxu0 %v473
    %2296 = vmatprep.subr.mxu0 0.0
    %2297 = vmatpush1.msra.mxu0 0.0
    %2298 = vmatprep.subr.mxu0 0.0
    %2299 = vmatpush1.msra.mxu0 0.0
    %2300 = vmatprep.subr.mxu0 0.0
    %2301 = vmatpush1.msra.mxu0 0.0
    %2302 = vmatprep.subr.mxu0 0.0
    %2303 = vmatpush1.msra.mxu0 0.0
    %2304 = vmatprep.subr.mxu0 0.0
    %2305 = vmatpush1.msra.mxu0 0.0
    %2306 = vmatprep.subr.mxu0 0.0
    %2307 = vmatpush1.msra.mxu0 0.0
    %2308 = vmatprep.subr.mxu0 0.0
    %2309 = vmatpush1.msra.mxu0 0.0
    %2310 = vmatprep.subr.mxu0 0.0
    %2311 = vmatpush1.msra.mxu0 0.0
    %2312 = vmatprep.subr.mxu0 0.0
    %2313 = vmatpush1.msra.mxu0 0.0
    %2314 = vmatprep.subr.mxu0 0.0
    %2315 = vmatpush1.msra.mxu0 0.0
    %2316 = vmatprep.subr.mxu0 0.0
    %2317 = vmatpush1.msra.mxu0 0.0
    %2318 = vmatprep.subr.mxu0 0.0
    %2319 = vmatpush1.msra.mxu0 0.0
    %2320 = vmatprep.subr.mxu0 0.0
    %2321 = vmatpush1.msra.mxu0 0.0
    %2322 = vmatprep.subr.mxu0 0.0
    %2323 = vmatpush1.msra.mxu0 0.0
    %2324 = vmatprep.subr.mxu0 0.0
    %2325 = vmatpush1.msra.mxu0 0.0
    %2326 = vmatprep.subr.mxu0 0.0
    %2327 = vmatpush1.msra.mxu0 0.0
    %2328 = vmatprep.mubr.f32.mxu0 0.0
    %2329 = vmatmul.mubr.f32.gmra.mrb[0].mxu0 %v2193
    %v2330 = vpop.f32.mrb[0].mxu0
    %v2331 = vadd.f32 0.0, %v2330
    %v2332 = vpop.f32.mrb[0].mxu0
    %2333 = vdwg.mxu0
    %v2334 = vadd.f32 %v2261, %v2331
    %v2335 = vmax.f32 %v2334, 0.0
    %s2336 = scalar_lea.vmem [#allocation3], 48
    %v2337 = vld [vmem:[%s2336] sm:$0xff]
    %2338 = vmatprep.subr.mxu0 0.0
    %2339 = vmatpush1.msra.mxu0 %v107
    %2340 = vmatprep.subr.mxu0 0.0
    %2341 = vmatpush1.msra.mxu0 %v108
    %2342 = vmatprep.subr.mxu0 0.0
    %2343 = vmatpush1.msra.mxu0 %v109
    %2344 = vmatprep.subr.mxu0 0.0
    %2345 = vmatpush1.msra.mxu0 %v110
    %2346 = vmatprep.subr.mxu0 0.0
    %2347 = vmatpush1.msra.mxu0 %v111
    %2348 = vmatprep.subr.mxu0 0.0
    %2349 = vmatpush1.msra.mxu0 %v112
    %2350 = vmatprep.subr.mxu0 0.0
    %2351 = vmatpush1.msra.mxu0 %v113
    %2352 = vmatprep.subr.mxu0 0.0
    %2353 = vmatpush1.msra.mxu0 %v114
    %2354 = vmatprep.subr.mxu0 0.0
    %2355 = vmatpush1.msra.mxu0 %v115
    %2356 = vmatprep.subr.mxu0 0.0
    %2357 = vmatpush1.msra.mxu0 %v116
    %2358 = vmatprep.subr.mxu0 0.0
    %2359 = vmatpush1.msra.mxu0 %v117
    %2360 = vmatprep.subr.mxu0 0.0
    %2361 = vmatpush1.msra.mxu0 %v118
    %2362 = vmatprep.subr.mxu0 0.0
    %2363 = vmatpush1.msra.mxu0 %v119
    %2364 = vmatprep.subr.mxu0 0.0
    %2365 = vmatpush1.msra.mxu0 %v120
    %2366 = vmatprep.subr.mxu0 0.0
    %2367 = vmatpush1.msra.mxu0 %v121
    %2368 = vmatprep.subr.mxu0 0.0
    %2369 = vmatpush1.msra.mxu0 %v122
    %2370 = vmatprep.subr.mxu0 0.0
    %2371 = vmatpush1.msra.mxu0 0.0
    %2372 = vmatprep.subr.mxu0 0.0
    %2373 = vmatpush1.msra.mxu0 0.0
    %2374 = vmatprep.subr.mxu0 0.0
    %2375 = vmatpush1.msra.mxu0 0.0
    %2376 = vmatprep.subr.mxu0 0.0
    %2377 = vmatpush1.msra.mxu0 0.0
    %2378 = vmatprep.subr.mxu0 0.0
    %2379 = vmatpush1.msra.mxu0 0.0
    %2380 = vmatprep.subr.mxu0 0.0
    %2381 = vmatpush1.msra.mxu0 0.0
    %2382 = vmatprep.subr.mxu0 0.0
    %2383 = vmatpush1.msra.mxu0 0.0
    %2384 = vmatprep.subr.mxu0 0.0
    %2385 = vmatpush1.msra.mxu0 0.0
    %2386 = vmatprep.subr.mxu0 0.0
    %2387 = vmatpush1.msra.mxu0 0.0
    %2388 = vmatprep.subr.mxu0 0.0
    %2389 = vmatpush1.msra.mxu0 0.0
    %2390 = vmatprep.subr.mxu0 0.0
    %2391 = vmatpush1.msra.mxu0 0.0
    %2392 = vmatprep.subr.mxu0 0.0
    %2393 = vmatpush1.msra.mxu0 0.0
    %2394 = vmatprep.subr.mxu0 0.0
    %2395 = vmatpush1.msra.mxu0 0.0
    %2396 = vmatprep.subr.mxu0 0.0
    %2397 = vmatpush1.msra.mxu0 0.0
    %2398 = vmatprep.subr.mxu0 0.0
    %2399 = vmatpush1.msra.mxu0 0.0
    %2400 = vmatprep.subr.mxu0 0.0
    %2401 = vmatpush1.msra.mxu0 0.0
    %2402 = vmatprep.mubr.f32.mxu0 0.0
    %2403 = vmatmul.mubr.f32.gmra.mrb[0].mxu0 %v2051
    %v2404 = vpop.f32.mrb[0].mxu0
    %v2405 = vadd.f32 0.0, %v2404
    %v2406 = vpop.f32.mrb[0].mxu0
    %2407 = vdwg.mxu0
    %v2408 = vadd.f32 %v2337, %v2405
    %v2409 = vmax.f32 %v2408, 0.0
    %2410 = vmatprep.subr.mxu0 0.0
    %2411 = vmatpush1.msra.mxu0 %v194
    %2412 = vmatprep.subr.mxu0 0.0
    %2413 = vmatpush1.msra.mxu0 %v195
    %2414 = vmatprep.subr.mxu0 0.0
    %2415 = vmatpush1.msra.mxu0 %v196
    %2416 = vmatprep.subr.mxu0 0.0
    %2417 = vmatpush1.msra.mxu0 %v197
    %2418 = vmatprep.subr.mxu0 0.0
    %2419 = vmatpush1.msra.mxu0 %v198
    %2420 = vmatprep.subr.mxu0 0.0
    %2421 = vmatpush1.msra.mxu0 %v199
    %2422 = vmatprep.subr.mxu0 0.0
    %2423 = vmatpush1.msra.mxu0 %v200
    %2424 = vmatprep.subr.mxu0 0.0
    %2425 = vmatpush1.msra.mxu0 %v201
    %2426 = vmatprep.subr.mxu0 0.0
    %2427 = vmatpush1.msra.mxu0 %v202
    %2428 = vmatprep.subr.mxu0 0.0
    %2429 = vmatpush1.msra.mxu0 %v203
    %2430 = vmatprep.subr.mxu0 0.0
    %2431 = vmatpush1.msra.mxu0 %v204
    %2432 = vmatprep.subr.mxu0 0.0
    %2433 = vmatpush1.msra.mxu0 %v205
    %2434 = vmatprep.subr.mxu0 0.0
    %2435 = vmatpush1.msra.mxu0 %v206
    %2436 = vmatprep.subr.mxu0 0.0
    %2437 = vmatpush1.msra.mxu0 %v207
    %2438 = vmatprep.subr.mxu0 0.0
    %2439 = vmatpush1.msra.mxu0 %v208
    %2440 = vmatprep.subr.mxu0 0.0
    %2441 = vmatpush1.msra.mxu0 %v209
    %2442 = vmatprep.subr.mxu0 0.0
    %2443 = vmatpush1.msra.mxu0 0.0
    %2444 = vmatprep.subr.mxu0 0.0
    %2445 = vmatpush1.msra.mxu0 0.0
    %2446 = vmatprep.subr.mxu0 0.0
    %2447 = vmatpush1.msra.mxu0 0.0
    %2448 = vmatprep.subr.mxu0 0.0
    %2449 = vmatpush1.msra.mxu0 0.0
    %2450 = vmatprep.subr.mxu0 0.0
    %2451 = vmatpush1.msra.mxu0 0.0
    %2452 = vmatprep.subr.mxu0 0.0
    %2453 = vmatpush1.msra.mxu0 0.0
    %2454 = vmatprep.subr.mxu0 0.0
    %2455 = vmatpush1.msra.mxu0 0.0
    %2456 = vmatprep.subr.mxu0 0.0
    %2457 = vmatpush1.msra.mxu0 0.0
    %2458 = vmatprep.subr.mxu0 0.0
    %2459 = vmatpush1.msra.mxu0 0.0
    %2460 = vmatprep.subr.mxu0 0.0
    %2461 = vmatpush1.msra.mxu0 0.0
    %2462 = vmatprep.subr.mxu0 0.0
    %2463 = vmatpush1.msra.mxu0 0.0
    %2464 = vmatprep.subr.mxu0 0.0
    %2465 = vmatpush1.msra.mxu0 0.0
    %2466 = vmatprep.subr.mxu0 0.0
    %2467 = vmatpush1.msra.mxu0 0.0
    %2468 = vmatprep.subr.mxu0 0.0
    %2469 = vmatpush1.msra.mxu0 0.0
    %2470 = vmatprep.subr.mxu0 0.0
    %2471 = vmatpush1.msra.mxu0 0.0
    %2472 = vmatprep.subr.mxu0 0.0
    %2473 = vmatpush1.msra.mxu0 0.0
    %2474 = vmatprep.mubr.f32.mxu0 0.0
    %2475 = vmatmul.mubr.f32.gmra.mrb[0].mxu0 %v2193
    %v2476 = vpop.f32.mrb[0].mxu0
    %v2477 = vadd.f32 %v91, %v2476
    %v2478 = vpop.f32.mrb[0].mxu0
    %2479 = vdwg.mxu0
    %2480 = vmatprep.subr.mxu0 0.0
    %2481 = vmatpush1.msra.mxu0 %v299
    %2482 = vmatprep.subr.mxu0 0.0
    %2483 = vmatpush1.msra.mxu0 %v300
    %2484 = vmatprep.subr.mxu0 0.0
    %2485 = vmatpush1.msra.mxu0 %v301
    %2486 = vmatprep.subr.mxu0 0.0
    %2487 = vmatpush1.msra.mxu0 %v302
    %2488 = vmatprep.subr.mxu0 0.0
    %2489 = vmatpush1.msra.mxu0 %v303
    %2490 = vmatprep.subr.mxu0 0.0
    %2491 = vmatpush1.msra.mxu0 %v304
    %2492 = vmatprep.subr.mxu0 0.0
    %2493 = vmatpush1.msra.mxu0 %v305
    %2494 = vmatprep.subr.mxu0 0.0
    %2495 = vmatpush1.msra.mxu0 %v306
    %2496 = vmatprep.subr.mxu0 0.0
    %2497 = vmatpush1.msra.mxu0 %v307
    %2498 = vmatprep.subr.mxu0 0.0
    %2499 = vmatpush1.msra.mxu0 %v308
    %2500 = vmatprep.subr.mxu0 0.0
    %2501 = vmatpush1.msra.mxu0 %v309
    %2502 = vmatprep.subr.mxu0 0.0
    %2503 = vmatpush1.msra.mxu0 %v310
    %2504 = vmatprep.subr.mxu0 0.0
    %2505 = vmatpush1.msra.mxu0 %v311
    %2506 = vmatprep.subr.mxu0 0.0
    %2507 = vmatpush1.msra.mxu0 %v312
    %2508 = vmatprep.subr.mxu0 0.0
    %2509 = vmatpush1.msra.mxu0 %v313
    %2510 = vmatprep.subr.mxu0 0.0
    %2511 = vmatpush1.msra.mxu0 %v314
    %2512 = vmatprep.subr.mxu0 0.0
    %2513 = vmatpush1.msra.mxu0 0.0
    %2514 = vmatprep.subr.mxu0 0.0
    %2515 = vmatpush1.msra.mxu0 0.0
    %2516 = vmatprep.subr.mxu0 0.0
    %2517 = vmatpush1.msra.mxu0 0.0
    %2518 = vmatprep.subr.mxu0 0.0
    %2519 = vmatpush1.msra.mxu0 0.0
    %2520 = vmatprep.subr.mxu0 0.0
    %2521 = vmatpush1.msra.mxu0 0.0
    %2522 = vmatprep.subr.mxu0 0.0
    %2523 = vmatpush1.msra.mxu0 0.0
    %2524 = vmatprep.subr.mxu0 0.0
    %2525 = vmatpush1.msra.mxu0 0.0
    %2526 = vmatprep.subr.mxu0 0.0
    %2527 = vmatpush1.msra.mxu0 0.0
    %2528 = vmatprep.subr.mxu0 0.0
    %2529 = vmatpush1.msra.mxu0 0.0
    %2530 = vmatprep.subr.mxu0 0.0
    %2531 = vmatpush1.msra.mxu0 0.0
    %2532 = vmatprep.subr.mxu0 0.0
    %2533 = vmatpush1.msra.mxu0 0.0
    %2534 = vmatprep.subr.mxu0 0.0
    %2535 = vmatpush1.msra.mxu0 0.0
    %2536 = vmatprep.subr.mxu0 0.0
    %2537 = vmatpush1.msra.mxu0 0.0
    %2538 = vmatprep.subr.mxu0 0.0
    %2539 = vmatpush1.msra.mxu0 0.0
    %2540 = vmatprep.subr.mxu0 0.0
    %2541 = vmatpush1.msra.mxu0 0.0
    %2542 = vmatprep.subr.mxu0 0.0
    %2543 = vmatpush1.msra.mxu0 0.0
    %2544 = vmatprep.mubr.f32.mxu0 0.0
    %2545 = vmatmul.mubr.f32.gmra.mrb[0].mxu0 %v2409
    %v2546 = vpop.f32.mrb[0].mxu0
    %v2547 = vadd.f32 0.0, %v2546
    %v2548 = vpop.f32.mrb[0].mxu0
    %2549 = vdwg.mxu0
    %v2550 = vadd.f32 %v2477, %v2547
    %v2551 = vmax.f32 %v2550, 0.0
    %2552 = vmatprep.subr.mxu0 0.0
    %2553 = vmatpush1.msra.mxu0 %v211
    %2554 = vmatprep.subr.mxu0 0.0
    %2555 = vmatpush1.msra.mxu0 %v212
    %2556 = vmatprep.subr.mxu0 0.0
    %2557 = vmatpush1.msra.mxu0 %v213
    %2558 = vmatprep.subr.mxu0 0.0
    %2559 = vmatpush1.msra.mxu0 %v214
    %2560 = vmatprep.subr.mxu0 0.0
    %2561 = vmatpush1.msra.mxu0 %v215
    %2562 = vmatprep.subr.mxu0 0.0
    %2563 = vmatpush1.msra.mxu0 %v216
    %2564 = vmatprep.subr.mxu0 0.0
    %2565 = vmatpush1.msra.mxu0 %v217
    %2566 = vmatprep.subr.mxu0 0.0
    %2567 = vmatpush1.msra.mxu0 %v218
    %2568 = vmatprep.subr.mxu0 0.0
    %2569 = vmatpush1.msra.mxu0 %v219
    %2570 = vmatprep.subr.mxu0 0.0
    %2571 = vmatpush1.msra.mxu0 %v220
    %2572 = vmatprep.subr.mxu0 0.0
    %2573 = vmatpush1.msra.mxu0 %v221
    %2574 = vmatprep.subr.mxu0 0.0
    %2575 = vmatpush1.msra.mxu0 %v222
    %2576 = vmatprep.subr.mxu0 0.0
    %2577 = vmatpush1.msra.mxu0 %v223
    %2578 = vmatprep.subr.mxu0 0.0
    %2579 = vmatpush1.msra.mxu0 %v224
    %2580 = vmatprep.subr.mxu0 0.0
    %2581 = vmatpush1.msra.mxu0 %v225
    %2582 = vmatprep.subr.mxu0 0.0
    %2583 = vmatpush1.msra.mxu0 %v226
    %2584 = vmatprep.subr.mxu0 0.0
    %2585 = vmatpush1.msra.mxu0 0.0
    %2586 = vmatprep.subr.mxu0 0.0
    %2587 = vmatpush1.msra.mxu0 0.0
    %2588 = vmatprep.subr.mxu0 0.0
    %2589 = vmatpush1.msra.mxu0 0.0
    %2590 = vmatprep.subr.mxu0 0.0
    %2591 = vmatpush1.msra.mxu0 0.0
    %2592 = vmatprep.subr.mxu0 0.0
    %2593 = vmatpush1.msra.mxu0 0.0
    %2594 = vmatprep.subr.mxu0 0.0
    %2595 = vmatpush1.msra.mxu0 0.0
    %2596 = vmatprep.subr.mxu0 0.0
    %2597 = vmatpush1.msra.mxu0 0.0
    %2598 = vmatprep.subr.mxu0 0.0
    %2599 = vmatpush1.msra.mxu0 0.0
    %2600 = vmatprep.subr.mxu0 0.0
    %2601 = vmatpush1.msra.mxu0 0.0
    %2602 = vmatprep.subr.mxu0 0.0
    %2603 = vmatpush1.msra.mxu0 0.0
    %2604 = vmatprep.subr.mxu0 0.0
    %2605 = vmatpush1.msra.mxu0 0.0
    %2606 = vmatprep.subr.mxu0 0.0
    %2607 = vmatpush1.msra.mxu0 0.0
    %2608 = vmatprep.subr.mxu0 0.0
    %2609 = vmatpush1.msra.mxu0 0.0
    %2610 = vmatprep.subr.mxu0 0.0
    %2611 = vmatpush1.msra.mxu0 0.0
    %2612 = vmatprep.subr.mxu0 0.0
    %2613 = vmatpush1.msra.mxu0 0.0
    %2614 = vmatprep.subr.mxu0 0.0
    %2615 = vmatpush1.msra.mxu0 0.0
    %2616 = vmatprep.mubr.f32.mxu0 0.0
    %2617 = vmatmul.mubr.f32.gmra.mrb[0].mxu0 %v2335
    %v2618 = vpop.f32.mrb[0].mxu0
    %v2619 = vadd.f32 %v99, %v2618
    %v2620 = vpop.f32.mrb[0].mxu0
    %2621 = vdwg.mxu0
    %2622 = vmatprep.subr.mxu0 0.0
    %2623 = vmatpush1.msra.mxu0 %v458
    %2624 = vmatprep.subr.mxu0 0.0
    %2625 = vmatpush1.msra.mxu0 %v459
    %2626 = vmatprep.subr.mxu0 0.0
    %2627 = vmatpush1.msra.mxu0 %v460
    %2628 = vmatprep.subr.mxu0 0.0
    %2629 = vmatpush1.msra.mxu0 %v461
    %2630 = vmatprep.subr.mxu0 0.0
    %2631 = vmatpush1.msra.mxu0 %v462
    %2632 = vmatprep.subr.mxu0 0.0
    %2633 = vmatpush1.msra.mxu0 %v463
    %2634 = vmatprep.subr.mxu0 0.0
    %2635 = vmatpush1.msra.mxu0 %v464
    %2636 = vmatprep.subr.mxu0 0.0
    %2637 = vmatpush1.msra.mxu0 %v465
    %2638 = vmatprep.subr.mxu0 0.0
    %2639 = vmatpush1.msra.mxu0 %v466
    %2640 = vmatprep.subr.mxu0 0.0
    %2641 = vmatpush1.msra.mxu0 %v467
    %2642 = vmatprep.subr.mxu0 0.0
    %2643 = vmatpush1.msra.mxu0 %v468
    %2644 = vmatprep.subr.mxu0 0.0
    %2645 = vmatpush1.msra.mxu0 %v469
    %2646 = vmatprep.subr.mxu0 0.0
    %2647 = vmatpush1.msra.mxu0 %v470
    %2648 = vmatprep.subr.mxu0 0.0
    %2649 = vmatpush1.msra.mxu0 %v471
    %2650 = vmatprep.subr.mxu0 0.0
    %2651 = vmatpush1.msra.mxu0 %v472
    %2652 = vmatprep.subr.mxu0 0.0
    %2653 = vmatpush1.msra.mxu0 %v473
    %2654 = vmatprep.subr.mxu0 0.0
    %2655 = vmatpush1.msra.mxu0 0.0
    %2656 = vmatprep.subr.mxu0 0.0
    %2657 = vmatpush1.msra.mxu0 0.0
    %2658 = vmatprep.subr.mxu0 0.0
    %2659 = vmatpush1.msra.mxu0 0.0
    %2660 = vmatprep.subr.mxu0 0.0
    %2661 = vmatpush1.msra.mxu0 0.0
    %2662 = vmatprep.subr.mxu0 0.0
    %2663 = vmatpush1.msra.mxu0 0.0
    %2664 = vmatprep.subr.mxu0 0.0
    %2665 = vmatpush1.msra.mxu0 0.0
    %2666 = vmatprep.subr.mxu0 0.0
    %2667 = vmatpush1.msra.mxu0 0.0
    %2668 = vmatprep.subr.mxu0 0.0
    %2669 = vmatpush1.msra.mxu0 0.0
    %2670 = vmatprep.subr.mxu0 0.0
    %2671 = vmatpush1.msra.mxu0 0.0
    %2672 = vmatprep.subr.mxu0 0.0
    %2673 = vmatpush1.msra.mxu0 0.0
    %2674 = vmatprep.subr.mxu0 0.0
    %2675 = vmatpush1.msra.mxu0 0.0
    %2676 = vmatprep.subr.mxu0 0.0
    %2677 = vmatpush1.msra.mxu0 0.0
    %2678 = vmatprep.subr.mxu0 0.0
    %2679 = vmatpush1.msra.mxu0 0.0
    %2680 = vmatprep.subr.mxu0 0.0
    %2681 = vmatpush1.msra.mxu0 0.0
    %2682 = vmatprep.subr.mxu0 0.0
    %2683 = vmatpush1.msra.mxu0 0.0
    %2684 = vmatprep.subr.mxu0 0.0
    %2685 = vmatpush1.msra.mxu0 0.0
    %2686 = vmatprep.mubr.f32.mxu0 0.0
    %2687 = vmatmul.mubr.f32.gmra.mrb[0].mxu0 %v2551
    %v2688 = vpop.f32.mrb[0].mxu0
    %v2689 = vadd.f32 0.0, %v2688
    %v2690 = vpop.f32.mrb[0].mxu0
    %2691 = vdwg.mxu0
    %v2692 = vadd.f32 %v2619, %v2689
    %v2693 = vmax.f32 %v2692, 0.0
    %s2694 = scalar_lea.vmem [#allocation3], 56
    %v2695 = vld [vmem:[%s2694] sm:$0xff]
    %2696 = vmatprep.subr.mxu0 0.0
    %2697 = vmatpush1.msra.mxu0 %v107
    %2698 = vmatprep.subr.mxu0 0.0
    %2699 = vmatpush1.msra.mxu0 %v108
    %2700 = vmatprep.subr.mxu0 0.0
    %2701 = vmatpush1.msra.mxu0 %v109
    %2702 = vmatprep.subr.mxu0 0.0
    %2703 = vmatpush1.msra.mxu0 %v110
    %2704 = vmatprep.subr.mxu0 0.0
    %2705 = vmatpush1.msra.mxu0 %v111
    %2706 = vmatprep.subr.mxu0 0.0
    %2707 = vmatpush1.msra.mxu0 %v112
    %2708 = vmatprep.subr.mxu0 0.0
    %2709 = vmatpush1.msra.mxu0 %v113
    %2710 = vmatprep.subr.mxu0 0.0
    %2711 = vmatpush1.msra.mxu0 %v114
    %2712 = vmatprep.subr.mxu0 0.0
    %2713 = vmatpush1.msra.mxu0 %v115
    %2714 = vmatprep.subr.mxu0 0.0
    %2715 = vmatpush1.msra.mxu0 %v116
    %2716 = vmatprep.subr.mxu0 0.0
    %2717 = vmatpush1.msra.mxu0 %v117
    %2718 = vmatprep.subr.mxu0 0.0
    %2719 = vmatpush1.msra.mxu0 %v118
    %2720 = vmatprep.subr.mxu0 0.0
    %2721 = vmatpush1.msra.mxu0 %v119
    %2722 = vmatprep.subr.mxu0 0.0
    %2723 = vmatpush1.msra.mxu0 %v120
    %2724 = vmatprep.subr.mxu0 0.0
    %2725 = vmatpush1.msra.mxu0 %v121
    %2726 = vmatprep.subr.mxu0 0.0
    %2727 = vmatpush1.msra.mxu0 %v122
    %2728 = vmatprep.subr.mxu0 0.0
    %2729 = vmatpush1.msra.mxu0 0.0
    %2730 = vmatprep.subr.mxu0 0.0
    %2731 = vmatpush1.msra.mxu0 0.0
    %2732 = vmatprep.subr.mxu0 0.0
    %2733 = vmatpush1.msra.mxu0 0.0
    %2734 = vmatprep.subr.mxu0 0.0
    %2735 = vmatpush1.msra.mxu0 0.0
    %2736 = vmatprep.subr.mxu0 0.0
    %2737 = vmatpush1.msra.mxu0 0.0
    %2738 = vmatprep.subr.mxu0 0.0
    %2739 = vmatpush1.msra.mxu0 0.0
    %2740 = vmatprep.subr.mxu0 0.0
    %2741 = vmatpush1.msra.mxu0 0.0
    %2742 = vmatprep.subr.mxu0 0.0
    %2743 = vmatpush1.msra.mxu0 0.0
    %2744 = vmatprep.subr.mxu0 0.0
    %2745 = vmatpush1.msra.mxu0 0.0
    %2746 = vmatprep.subr.mxu0 0.0
    %2747 = vmatpush1.msra.mxu0 0.0
    %2748 = vmatprep.subr.mxu0 0.0
    %2749 = vmatpush1.msra.mxu0 0.0
    %2750 = vmatprep.subr.mxu0 0.0
    %2751 = vmatpush1.msra.mxu0 0.0
    %2752 = vmatprep.subr.mxu0 0.0
    %2753 = vmatpush1.msra.mxu0 0.0
    %2754 = vmatprep.subr.mxu0 0.0
    %2755 = vmatpush1.msra.mxu0 0.0
    %2756 = vmatprep.subr.mxu0 0.0
    %2757 = vmatpush1.msra.mxu0 0.0
    %2758 = vmatprep.subr.mxu0 0.0
    %2759 = vmatpush1.msra.mxu0 0.0
    %2760 = vmatprep.mubr.f32.mxu0 0.0
    %2761 = vmatmul.mubr.f32.gmra.mrb[0].mxu0 %v2409
    %v2762 = vpop.f32.mrb[0].mxu0
    %v2763 = vadd.f32 0.0, %v2762
    %v2764 = vpop.f32.mrb[0].mxu0
    %2765 = vdwg.mxu0
    %v2766 = vadd.f32 %v2695, %v2763
    %v2767 = vmax.f32 %v2766, 0.0
    %2768 = vmatprep.subr.mxu0 0.0
    %2769 = vmatpush1.msra.mxu0 %v194
    %2770 = vmatprep.subr.mxu0 0.0
    %2771 = vmatpush1.msra.mxu0 %v195
    %2772 = vmatprep.subr.mxu0 0.0
    %2773 = vmatpush1.msra.mxu0 %v196
    %2774 = vmatprep.subr.mxu0 0.0
    %2775 = vmatpush1.msra.mxu0 %v197
    %2776 = vmatprep.subr.mxu0 0.0
    %2777 = vmatpush1.msra.mxu0 %v198
    %2778 = vmatprep.subr.mxu0 0.0
    %2779 = vmatpush1.msra.mxu0 %v199
    %2780 = vmatprep.subr.mxu0 0.0
    %2781 = vmatpush1.msra.mxu0 %v200
    %2782 = vmatprep.subr.mxu0 0.0
    %2783 = vmatpush1.msra.mxu0 %v201
    %2784 = vmatprep.subr.mxu0 0.0
    %2785 = vmatpush1.msra.mxu0 %v202
    %2786 = vmatprep.subr.mxu0 0.0
    %2787 = vmatpush1.msra.mxu0 %v203
    %2788 = vmatprep.subr.mxu0 0.0
    %2789 = vmatpush1.msra.mxu0 %v204
    %2790 = vmatprep.subr.mxu0 0.0
    %2791 = vmatpush1.msra.mxu0 %v205
    %2792 = vmatprep.subr.mxu0 0.0
    %2793 = vmatpush1.msra.mxu0 %v206
    %2794 = vmatprep.subr.mxu0 0.0
    %2795 = vmatpush1.msra.mxu0 %v207
    %2796 = vmatprep.subr.mxu0 0.0
    %2797 = vmatpush1.msra.mxu0 %v208
    %2798 = vmatprep.subr.mxu0 0.0
    %2799 = vmatpush1.msra.mxu0 %v209
    %2800 = vmatprep.subr.mxu0 0.0
    %2801 = vmatpush1.msra.mxu0 0.0
    %2802 = vmatprep.subr.mxu0 0.0
    %2803 = vmatpush1.msra.mxu0 0.0
    %2804 = vmatprep.subr.mxu0 0.0
    %2805 = vmatpush1.msra.mxu0 0.0
    %2806 = vmatprep.subr.mxu0 0.0
    %2807 = vmatpush1.msra.mxu0 0.0
    %2808 = vmatprep.subr.mxu0 0.0
    %2809 = vmatpush1.msra.mxu0 0.0
    %2810 = vmatprep.subr.mxu0 0.0
    %2811 = vmatpush1.msra.mxu0 0.0
    %2812 = vmatprep.subr.mxu0 0.0
    %2813 = vmatpush1.msra.mxu0 0.0
    %2814 = vmatprep.subr.mxu0 0.0
    %2815 = vmatpush1.msra.mxu0 0.0
    %2816 = vmatprep.subr.mxu0 0.0
    %2817 = vmatpush1.msra.mxu0 0.0
    %2818 = vmatprep.subr.mxu0 0.0
    %2819 = vmatpush1.msra.mxu0 0.0
    %2820 = vmatprep.subr.mxu0 0.0
    %2821 = vmatpush1.msra.mxu0 0.0
    %2822 = vmatprep.subr.mxu0 0.0
    %2823 = vmatpush1.msra.mxu0 0.0
    %2824 = vmatprep.subr.mxu0 0.0
    %2825 = vmatpush1.msra.mxu0 0.0
    %2826 = vmatprep.subr.mxu0 0.0
    %2827 = vmatpush1.msra.mxu0 0.0
    %2828 = vmatprep.subr.mxu0 0.0
    %2829 = vmatpush1.msra.mxu0 0.0
    %2830 = vmatprep.subr.mxu0 0.0
    %2831 = vmatpush1.msra.mxu0 0.0
    %2832 = vmatprep.mubr.f32.mxu0 0.0
    %2833 = vmatmul.mubr.f32.gmra.mrb[0].mxu0 %v2551
    %v2834 = vpop.f32.mrb[0].mxu0
    %v2835 = vadd.f32 %v91, %v2834
    %v2836 = vpop.f32.mrb[0].mxu0
    %2837 = vdwg.mxu0
    %2838 = vmatprep.subr.mxu0 0.0
    %2839 = vmatpush1.msra.mxu0 %v299
    %2840 = vmatprep.subr.mxu0 0.0
    %2841 = vmatpush1.msra.mxu0 %v300
    %2842 = vmatprep.subr.mxu0 0.0
    %2843 = vmatpush1.msra.mxu0 %v301
    %2844 = vmatprep.subr.mxu0 0.0
    %2845 = vmatpush1.msra.mxu0 %v302
    %2846 = vmatprep.subr.mxu0 0.0
    %2847 = vmatpush1.msra.mxu0 %v303
    %2848 = vmatprep.subr.mxu0 0.0
    %2849 = vmatpush1.msra.mxu0 %v304
    %2850 = vmatprep.subr.mxu0 0.0
    %2851 = vmatpush1.msra.mxu0 %v305
    %2852 = vmatprep.subr.mxu0 0.0
    %2853 = vmatpush1.msra.mxu0 %v306
    %2854 = vmatprep.subr.mxu0 0.0
    %2855 = vmatpush1.msra.mxu0 %v307
    %2856 = vmatprep.subr.mxu0 0.0
    %2857 = vmatpush1.msra.mxu0 %v308
    %2858 = vmatprep.subr.mxu0 0.0
    %2859 = vmatpush1.msra.mxu0 %v309
    %2860 = vmatprep.subr.mxu0 0.0
    %2861 = vmatpush1.msra.mxu0 %v310
    %2862 = vmatprep.subr.mxu0 0.0
    %2863 = vmatpush1.msra.mxu0 %v311
    %2864 = vmatprep.subr.mxu0 0.0
    %2865 = vmatpush1.msra.mxu0 %v312
    %2866 = vmatprep.subr.mxu0 0.0
    %2867 = vmatpush1.msra.mxu0 %v313
    %2868 = vmatprep.subr.mxu0 0.0
    %2869 = vmatpush1.msra.mxu0 %v314
    %2870 = vmatprep.subr.mxu0 0.0
    %2871 = vmatpush1.msra.mxu0 0.0
    %2872 = vmatprep.subr.mxu0 0.0
    %2873 = vmatpush1.msra.mxu0 0.0
    %2874 = vmatprep.subr.mxu0 0.0
    %2875 = vmatpush1.msra.mxu0 0.0
    %2876 = vmatprep.subr.mxu0 0.0
    %2877 = vmatpush1.msra.mxu0 0.0
    %2878 = vmatprep.subr.mxu0 0.0
    %2879 = vmatpush1.msra.mxu0 0.0
    %2880 = vmatprep.subr.mxu0 0.0
    %2881 = vmatpush1.msra.mxu0 0.0
    %2882 = vmatprep.subr.mxu0 0.0
    %2883 = vmatpush1.msra.mxu0 0.0
    %2884 = vmatprep.subr.mxu0 0.0
    %2885 = vmatpush1.msra.mxu0 0.0
    %2886 = vmatprep.subr.mxu0 0.0
    %2887 = vmatpush1.msra.mxu0 0.0
    %2888 = vmatprep.subr.mxu0 0.0
    %2889 = vmatpush1.msra.mxu0 0.0
    %2890 = vmatprep.subr.mxu0 0.0
    %2891 = vmatpush1.msra.mxu0 0.0
    %2892 = vmatprep.subr.mxu0 0.0
    %2893 = vmatpush1.msra.mxu0 0.0
    %2894 = vmatprep.subr.mxu0 0.0
    %2895 = vmatpush1.msra.mxu0 0.0
    %2896 = vmatprep.subr.mxu0 0.0
    %2897 = vmatpush1.msra.mxu0 0.0
    %2898 = vmatprep.subr.mxu0 0.0
    %2899 = vmatpush1.msra.mxu0 0.0
    %2900 = vmatprep.subr.mxu0 0.0
    %2901 = vmatpush1.msra.mxu0 0.0
    %2902 = vmatprep.mubr.f32.mxu0 0.0
    %2903 = vmatmul.mubr.f32.gmra.mrb[0].mxu0 %v2767
    %v2904 = vpop.f32.mrb[0].mxu0
    %v2905 = vadd.f32 0.0, %v2904
    %v2906 = vpop.f32.mrb[0].mxu0
    %2907 = vdwg.mxu0
    %v2908 = vadd.f32 %v2835, %v2905
    %v2909 = vmax.f32 %v2908, 0.0
    %2910 = vmatprep.subr.mxu0 0.0
    %2911 = vmatpush1.msra.mxu0 %v211
    %2912 = vmatprep.subr.mxu0 0.0
    %2913 = vmatpush1.msra.mxu0 %v212
    %2914 = vmatprep.subr.mxu0 0.0
    %2915 = vmatpush1.msra.mxu0 %v213
    %2916 = vmatprep.subr.mxu0 0.0
    %2917 = vmatpush1.msra.mxu0 %v214
    %2918 = vmatprep.subr.mxu0 0.0
    %2919 = vmatpush1.msra.mxu0 %v215
    %2920 = vmatprep.subr.mxu0 0.0
    %2921 = vmatpush1.msra.mxu0 %v216
    %2922 = vmatprep.subr.mxu0 0.0
    %2923 = vmatpush1.msra.mxu0 %v217
    %2924 = vmatprep.subr.mxu0 0.0
    %2925 = vmatpush1.msra.mxu0 %v218
    %2926 = vmatprep.subr.mxu0 0.0
    %2927 = vmatpush1.msra.mxu0 %v219
    %2928 = vmatprep.subr.mxu0 0.0
    %2929 = vmatpush1.msra.mxu0 %v220
    %2930 = vmatprep.subr.mxu0 0.0
    %2931 = vmatpush1.msra.mxu0 %v221
    %2932 = vmatprep.subr.mxu0 0.0
    %2933 = vmatpush1.msra.mxu0 %v222
    %2934 = vmatprep.subr.mxu0 0.0
    %2935 = vmatpush1.msra.mxu0 %v223
    %2936 = vmatprep.subr.mxu0 0.0
    %2937 = vmatpush1.msra.mxu0 %v224
    %2938 = vmatprep.subr.mxu0 0.0
    %2939 = vmatpush1.msra.mxu0 %v225
    %2940 = vmatprep.subr.mxu0 0.0
    %2941 = vmatpush1.msra.mxu0 %v226
    %2942 = vmatprep.subr.mxu0 0.0
    %2943 = vmatpush1.msra.mxu0 0.0
    %2944 = vmatprep.subr.mxu0 0.0
    %2945 = vmatpush1.msra.mxu0 0.0
    %2946 = vmatprep.subr.mxu0 0.0
    %2947 = vmatpush1.msra.mxu0 0.0
    %2948 = vmatprep.subr.mxu0 0.0
    %2949 = vmatpush1.msra.mxu0 0.0
    %2950 = vmatprep.subr.mxu0 0.0
    %2951 = vmatpush1.msra.mxu0 0.0
    %2952 = vmatprep.subr.mxu0 0.0
    %2953 = vmatpush1.msra.mxu0 0.0
    %2954 = vmatprep.subr.mxu0 0.0
    %2955 = vmatpush1.msra.mxu0 0.0
    %2956 = vmatprep.subr.mxu0 0.0
    %2957 = vmatpush1.msra.mxu0 0.0
    %2958 = vmatprep.subr.mxu0 0.0
    %2959 = vmatpush1.msra.mxu0 0.0
    %2960 = vmatprep.subr.mxu0 0.0
    %2961 = vmatpush1.msra.mxu0 0.0
    %2962 = vmatprep.subr.mxu0 0.0
    %2963 = vmatpush1.msra.mxu0 0.0
    %2964 = vmatprep.subr.mxu0 0.0
    %2965 = vmatpush1.msra.mxu0 0.0
    %2966 = vmatprep.subr.mxu0 0.0
    %2967 = vmatpush1.msra.mxu0 0.0
    %2968 = vmatprep.subr.mxu0 0.0
    %2969 = vmatpush1.msra.mxu0 0.0
    %2970 = vmatprep.subr.mxu0 0.0
    %2971 = vmatpush1.msra.mxu0 0.0
    %2972 = vmatprep.subr.mxu0 0.0
    %2973 = vmatpush1.msra.mxu0 0.0
    %2974 = vmatprep.mubr.f32.mxu0 0.0
    %2975 = vmatmul.mubr.f32.gmra.mrb[0].mxu0 %v2693
    %v2976 = vpop.f32.mrb[0].mxu0
    %v2977 = vadd.f32 %v99, %v2976
    %v2978 = vpop.f32.mrb[0].mxu0
    %2979 = vdwg.mxu0
    %2980 = vmatprep.subr.mxu0 0.0
    %2981 = vmatpush1.msra.mxu0 %v458
    %2982 = vmatprep.subr.mxu0 0.0
    %2983 = vmatpush1.msra.mxu0 %v459
    %2984 = vmatprep.subr.mxu0 0.0
    %2985 = vmatpush1.msra.mxu0 %v460
    %2986 = vmatprep.subr.mxu0 0.0
    %2987 = vmatpush1.msra.mxu0 %v461
    %2988 = vmatprep.subr.mxu0 0.0
    %2989 = vmatpush1.msra.mxu0 %v462
    %2990 = vmatprep.subr.mxu0 0.0
    %2991 = vmatpush1.msra.mxu0 %v463
    %2992 = vmatprep.subr.mxu0 0.0
    %2993 = vmatpush1.msra.mxu0 %v464
    %2994 = vmatprep.subr.mxu0 0.0
    %2995 = vmatpush1.msra.mxu0 %v465
    %2996 = vmatprep.subr.mxu0 0.0
    %2997 = vmatpush1.msra.mxu0 %v466
    %2998 = vmatprep.subr.mxu0 0.0
    %2999 = vmatpush1.msra.mxu0 %v467
    %3000 = vmatprep.subr.mxu0 0.0
    %3001 = vmatpush1.msra.mxu0 %v468
    %3002 = vmatprep.subr.mxu0 0.0
    %3003 = vmatpush1.msra.mxu0 %v469
    %3004 = vmatprep.subr.mxu0 0.0
    %3005 = vmatpush1.msra.mxu0 %v470
    %3006 = vmatprep.subr.mxu0 0.0
    %3007 = vmatpush1.msra.mxu0 %v471
    %3008 = vmatprep.subr.mxu0 0.0
    %3009 = vmatpush1.msra.mxu0 %v472
    %3010 = vmatprep.subr.mxu0 0.0
    %3011 = vmatpush1.msra.mxu0 %v473
    %3012 = vmatprep.subr.mxu0 0.0
    %3013 = vmatpush1.msra.mxu0 0.0
    %3014 = vmatprep.subr.mxu0 0.0
    %3015 = vmatpush1.msra.mxu0 0.0
    %3016 = vmatprep.subr.mxu0 0.0
    %3017 = vmatpush1.msra.mxu0 0.0
    %3018 = vmatprep.subr.mxu0 0.0
    %3019 = vmatpush1.msra.mxu0 0.0
    %3020 = vmatprep.subr.mxu0 0.0
    %3021 = vmatpush1.msra.mxu0 0.0
    %3022 = vmatprep.subr.mxu0 0.0
    %3023 = vmatpush1.msra.mxu0 0.0
    %3024 = vmatprep.subr.mxu0 0.0
    %3025 = vmatpush1.msra.mxu0 0.0
    %3026 = vmatprep.subr.mxu0 0.0
    %3027 = vmatpush1.msra.mxu0 0.0
    %3028 = vmatprep.subr.mxu0 0.0
    %3029 = vmatpush1.msra.mxu0 0.0
    %3030 = vmatprep.subr.mxu0 0.0
    %3031 = vmatpush1.msra.mxu0 0.0
    %3032 = vmatprep.subr.mxu0 0.0
    %3033 = vmatpush1.msra.mxu0 0.0
    %3034 = vmatprep.subr.mxu0 0.0
    %3035 = vmatpush1.msra.mxu0 0.0
    %3036 = vmatprep.subr.mxu0 0.0
    %3037 = vmatpush1.msra.mxu0 0.0
    %3038 = vmatprep.subr.mxu0 0.0
    %3039 = vmatpush1.msra.mxu0 0.0
    %3040 = vmatprep.subr.mxu0 0.0
    %3041 = vmatpush1.msra.mxu0 0.0
    %3042 = vmatprep.subr.mxu0 0.0
    %3043 = vmatpush1.msra.mxu0 0.0
    %3044 = vmatprep.mubr.f32.mxu0 0.0
    %3045 = vmatmul.mubr.f32.gmra.mrb[0].mxu0 %v2909
    %v3046 = vpop.f32.mrb[0].mxu0
    %v3047 = vadd.f32 0.0, %v3046
    %v3048 = vpop.f32.mrb[0].mxu0
    %3049 = vdwg.mxu0
    %v3050 = vadd.f32 %v2977, %v3047
    %v3051 = vmax.f32 %v3050, 0.0
    %3052 = vst [vmem:[#allocation2] sm:$0xff] %v2767
    %3053 = vst [vmem:[%s102] sm:$0xff] %v2909
    %3054 = vst [vmem:[%s104] sm:$0xff] %v3051
    // Predicated region
    $region46: #{tpu_custom_call.1} parent=1 // pred_check
      %p3055 = pneg %p79
    $region47: #{tpu_custom_call.1} parent=1 // pred_check_branch
      %3057 = sbr.rel (%p3055) target = $region49
    $region48: #{tpu_custom_call.1} parent=1 // pred_region
      %v3058 = vld [vmem:[#allocation9] sm:$0xff]
      %v3059 = vld [vmem:[#allocation9 + $0x8] sm:$0xff]
      %v3060 = vld [vmem:[#allocation9 + $0x10] sm:$0xff]
      %v3061 = vld [vmem:[#allocation9 + $0x18] sm:$0xff]
      %v3062 = vld [vmem:[#allocation9 + $0x20] sm:$0xff]
      %v3063 = vld [vmem:[#allocation9 + $0x28] sm:$0xff]
      %v3064 = vld [vmem:[#allocation9 + $0x30] sm:$0xff]
      %v3065 = vld [vmem:[#allocation9 + $0x38] sm:$0xff]
      %v3066 = vld [vmem:[#allocation9 + $0x40] sm:$0xff]
      %v3067 = vld [vmem:[#allocation9 + $0x48] sm:$0xff]
      %v3068 = vld [vmem:[#allocation9 + $0x50] sm:$0xff]
      %v3069 = vld [vmem:[#allocation9 + $0x58] sm:$0xff]
      %v3070 = vld [vmem:[#allocation9 + $0x60] sm:$0xff]
      %v3071 = vld [vmem:[#allocation9 + $0x68] sm:$0xff]
      %v3072 = vld [vmem:[#allocation9 + $0x70] sm:$0xff]
      %v3073 = vld [vmem:[#allocation9 + $0x78] sm:$0xff]
      %v3074 = vld [vmem:[%s5] sm:$0x1]
      %v3076 = vlaneseq
      %v3077 = vshrl.u32 %v3076, 7
      %v3078 = vsub.s32 0, %v3077
      %v3079 = vrot.slane %v3074, %v3078
      %3081 = vmatprep.subr.mxu0 0.0
      %3082 = vmatpush1.msra.mxu0 %v3058
      %3083 = vmatprep.subr.mxu0 0.0
      %3084 = vmatpush1.msra.mxu0 %v3059
      %3085 = vmatprep.subr.mxu0 0.0
      %3086 = vmatpush1.msra.mxu0 %v3060
      %3087 = vmatprep.subr.mxu0 0.0
      %3088 = vmatpush1.msra.mxu0 %v3061
      %3089 = vmatprep.subr.mxu0 0.0
      %3090 = vmatpush1.msra.mxu0 %v3062
      %3091 = vmatprep.subr.mxu0 0.0
      %3092 = vmatpush1.msra.mxu0 %v3063
      %3093 = vmatprep.subr.mxu0 0.0
      %3094 = vmatpush1.msra.mxu0 %v3064
      %3095 = vmatprep.subr.mxu0 0.0
      %3096 = vmatpush1.msra.mxu0 %v3065
      %3097 = vmatprep.subr.mxu0 0.0
      %3098 = vmatpush1.msra.mxu0 %v3066
      %3099 = vmatprep.subr.mxu0 0.0
      %3100 = vmatpush1.msra.mxu0 %v3067
      %3101 = vmatprep.subr.mxu0 0.0
      %3102 = vmatpush1.msra.mxu0 %v3068
      %3103 = vmatprep.subr.mxu0 0.0
      %3104 = vmatpush1.msra.mxu0 %v3069
      %3105 = vmatprep.subr.mxu0 0.0
      %3106 = vmatpush1.msra.mxu0 %v3070
      %3107 = vmatprep.subr.mxu0 0.0
      %3108 = vmatpush1.msra.mxu0 %v3071
      %3109 = vmatprep.subr.mxu0 0.0
      %3110 = vmatpush1.msra.mxu0 %v3072
      %3111 = vmatprep.subr.mxu0 0.0
      %3112 = vmatpush1.msra.mxu0 %v3073
      %3113 = vmatprep.subr.mxu0 0.0
      %3114 = vmatpush1.msra.mxu0 0.0
      %3115 = vmatprep.subr.mxu0 0.0
      %3116 = vmatpush1.msra.mxu0 0.0
      %3117 = vmatprep.subr.mxu0 0.0
      %3118 = vmatpush1.msra.mxu0 0.0
      %3119 = vmatprep.subr.mxu0 0.0
      %3120 = vmatpush1.msra.mxu0 0.0
      %3121 = vmatprep.subr.mxu0 0.0
      %3122 = vmatpush1.msra.mxu0 0.0
      %3123 = vmatprep.subr.mxu0 0.0
      %3124 = vmatpush1.msra.mxu0 0.0
      %3125 = vmatprep.subr.mxu0 0.0
      %3126 = vmatpush1.msra.mxu0 0.0
      %3127 = vmatprep.subr.mxu0 0.0
      %3128 = vmatpush1.msra.mxu0 0.0
      %3129 = vmatprep.subr.mxu0 0.0
      %3130 = vmatpush1.msra.mxu0 0.0
      %3131 = vmatprep.subr.mxu0 0.0
      %3132 = vmatpush1.msra.mxu0 0.0
      %3133 = vmatprep.subr.mxu0 0.0
      %3134 = vmatpush1.msra.mxu0 0.0
      %3135 = vmatprep.subr.mxu0 0.0
      %3136 = vmatpush1.msra.mxu0 0.0
      %3137 = vmatprep.subr.mxu0 0.0
      %3138 = vmatpush1.msra.mxu0 0.0
      %3139 = vmatprep.subr.mxu0 0.0
      %3140 = vmatpush1.msra.mxu0 0.0
      %3141 = vmatprep.subr.mxu0 0.0
      %3142 = vmatpush1.msra.mxu0 0.0
      %3143 = vmatprep.subr.mxu0 0.0
      %3144 = vmatpush1.msra.mxu0 0.0
      %3145 = vmatprep.mubr.f32.mxu0 0.0
      %3146 = vmatmul.mubr.f32.gmra.mrb[0].mxu0 %v3051
      %v3147 = vpop.f32.mrb[0].mxu0
      %v3148 = vadd.f32 %v3079, %v3147
      %v3149 = vpop.f32.mrb[0].mxu0
      %3150 = vdwg.mxu0
      %3151 = vst [vmem:[#allocation11] sm:$0xff] %v3148
    $region49: #{tpu_custom_call.1} parent=1 // pred_fallthru
      _
    // Predicated region
    $region50: #{tpu_custom_call.1} parent=1 // pred_check
      _
    $region51: #{tpu_custom_call.1} parent=1 // pred_check_branch
      %3153 = sbr.rel (0) target = $region53
    $region52: #{tpu_custom_call.1} parent=1 // pred_region
      %s3155 = ssub.s32 128, 128
      %3156 = vsyncadd [#allocation5], %s3155
      %s3158 = sshll.u32 [#allocation11], 4
      %s3159 = int_to_ptr.vmem [resolvable:$true] %s3158
      %3161 = dma.vmem_to_hbm [thread:$0]  %s3159, 128, %s6, [#allocation5]
    $region53: #{tpu_custom_call.1} parent=1 // pred_fallthru
      _
    // Predicated region
    $region54: #{tpu_custom_call.1} parent=1 // pred_check
      _
    $region55: #{tpu_custom_call.1} parent=1 // pred_check_branch
      %3163 = sbr.rel (0) target = $region57
    $region56: #{tpu_custom_call.1} parent=1 // pred_region
      %3164 = dma.done [#allocation5], 128
    $region57: #{tpu_custom_call.1} parent=1 // pred_fallthru
      _
    %3165 = vsyncpa [#allocation4], 1
    %3166 = vsyncpa [#allocation7], 1
    %3167 = vsyncpa [#allocation10], 1
    %3168 = vsyncpa [#allocation5], 1

</llo_original>
